<compile_context>
chip_gen: v5e
topology: v5e:2x2
jax: 0.10.0
libtpu: 0.0.40
codegen_flags: <defaults>
</compile_context>

<pallas_src>
import functools

import jax
import jax.numpy as jnp
from jax.experimental import pallas as pl
from jax.experimental.pallas import tpu as pltpu

_MIB = 1024 * 1024


def edge_nn_kernel(x_ref, w1_ref, b1_ref, w2_ref, b2_ref, o_ref):
    """Fused 2-layer MLP on one row tile (P = rows packed per lane-dense row).

      x_ref : (tm//P, P*E)       w1_ref: (P*E,  P*2H)    b1_ref: (1, P*2H)
      o_ref : (tm//P, P*hh)      w2_ref: (P*2H, P*hh)    b2_ref: (1, P*hh)

    With block-diagonal (P-replicated) weights this is exactly the per-row MLP
    evaluated on the packed layout — pure matmuls + elementwise, no relayouts.
    """
    x = x_ref[...].astype(jnp.float32)
    h = jnp.dot(x, w1_ref[...], preferred_element_type=jnp.float32) + b1_ref[...]
    # sigmoid(z) == 0.5 * tanh(0.5 * z) + 0.5  -> single EUP op per element.
    h = 0.5 * jnp.tanh(0.5 * h) + 0.5
    o = jnp.dot(h, w2_ref[...], preferred_element_type=jnp.float32) + b2_ref[...]
    o_ref[...] = jnp.tanh(o).astype(o_ref.dtype)


def _round_up(x, m):
    return -(-x // m) * m


def _round_down(x, m):
    return (x // m) * m


def _vmem_capacity_bytes():
    try:
        return int(pltpu.get_tpu_info().vmem_capacity_bytes)
    except Exception:
        return 64 * _MIB  # v7x-sized conservative default


def _block_diag(w, p):
    """(k, n) -> (p*k, p*n) block-diagonal with p copies of w on the diagonal."""
    if p == 1:
        return w
    k, n = w.shape
    eye = jnp.eye(p, dtype=w.dtype)
    return jnp.einsum("ij,kn->ikjn", eye, w).reshape(p * k, p * n)


def _choose_tile_rows(m, align, cap_rows, min_steps=4):
    """Rows of x per grid step: a multiple of `align`, never larger than M
    (so no wrapper padding; the ragged tail is a masked partial block), as
    large as the VMEM budget allows, with >= min_steps grid steps for pipeline
    steady state and an even step count when possible (v7x: 2 TensorCores)."""
    cap_rows = max(align, _round_down(cap_rows, align))
    if m <= align:
        return m                                   # single block == full array
    tm = min(cap_rows, _round_down(m, align))
    if -(-m // tm) < min_steps:                    # too few steps to pipeline
        tm = min(tm, max(align, _round_up(-(-m // min_steps), align)))
    steps = -(-m // tm)
    if steps % 2 == 1 and steps > 1:               # prefer an even grid (v7x)
        tm_even = _round_up(-(-m // (steps + 1)), align)
        if align <= tm_even <= tm and (-(-m // tm_even)) % 2 == 0:
            tm = tm_even
    return tm


@functools.partial(jax.jit,
                   static_argnames=("n_max", "hidden_dim", "max_rows_per_tile"))
def edge_nn_forward(edges, w1, b1, w2, b2, *, n_max, hidden_dim,
                    max_rows_per_tile=65536):
    """edges: (B, n_max, n_max, E) -> (B, n_max, n_max, H, H).

    Equivalent to tanh(sigmoid(edges.view(-1, E) @ w1 + b1) @ w2 + b2)
    reshaped to (B, n_max, n_max, H, H)."""
    batch = edges.shape[0]
    edge_dim = edges.shape[-1]
    two_h = 2 * hidden_dim
    hh = hidden_dim * hidden_dim
    m = batch * n_max * n_max

    # ---- Row packing (lane-dense I/O, block-diagonal weights). --------------
    pack = 1
    if edge_dim < 128 and 128 % edge_dim == 0 and m % (128 // edge_dim) == 0:
        cand = 128 // edge_dim
        wbd_bytes = 4 * cand * cand * (edge_dim * two_h + two_h * hh)
        if wbd_bytes <= 8 * _MIB:      # keep the replicated weights VMEM-cheap
            pack = cand
    # TODO(synk): for hidden_dim large enough that the P-replicated W2 exceeds
    # the VMEM budget we fall back to the unpacked (pack=1) layout.

    in_lanes = pack * edge_dim
    mid_lanes = pack * two_h
    out_lanes = pack * hh

    x = edges.reshape(m // pack, in_lanes)          # bit-exact row-major repack
    w1p = _block_diag(w1.astype(jnp.float32), pack)
    w2p = _block_diag(w2.astype(jnp.float32), pack)
    b1p = jnp.tile(b1.astype(jnp.float32), pack).reshape(1, mid_lanes)
    b2p = jnp.tile(b2.astype(jnp.float32), pack).reshape(1, out_lanes)

    # ---- Row tile from an explicit, device-aware VMEM budget. ---------------
    vmem_cap = _vmem_capacity_bytes()               # 64 MiB v7x, 128 MiB v5e/v6e
    vmem_limit = max(32 * _MIB, vmem_cap - 4 * _MIB)
    lane_pad = lambda n: _round_up(n, 128)
    # VMEM bytes per logical row: double-buffered in/out tiles plus a
    # conservative allowance for materialized intermediates (h, pre-store o).
    per_row = (2 * 4 * lane_pad(in_lanes) // pack
               + 4 * 4 * lane_pad(out_lanes) // pack
               + 2 * 4 * lane_pad(mid_lanes) // pack)
    weights_vmem = 2 * 4 * (w1p.size + w2p.size + b1p.size + b2p.size)
    budget = max(4 * _MIB, vmem_limit - weights_vmem - 6 * _MIB)
    cap_rows = min(max_rows_per_tile, max(8 * pack, budget // per_row))

    align = 8 * pack
    tm = _choose_tile_rows(m, align, cap_rows)
    grid = (pl.cdiv(m // pack, tm // pack),)

    cost = pl.CostEstimate(
        flops=2 * m * (edge_dim * two_h + two_h * hh),
        transcendentals=m * (two_h + hh),
        bytes_accessed=(x.size * x.dtype.itemsize
                        + 4 * (m * hh + w1p.size + w2p.size + b1p.size + b2p.size)),
    )

    out = pl.pallas_call(
        edge_nn_kernel,
        out_shape=jax.ShapeDtypeStruct((m // pack, out_lanes), jnp.float32),
        grid_spec=pltpu.PrefetchScalarGridSpec(
            num_scalar_prefetch=0,
            grid=grid,
            in_specs=[
                pl.BlockSpec((tm // pack, in_lanes), lambda i: (i, 0)),   # x rows
                pl.BlockSpec((in_lanes, mid_lanes), lambda i: (0, 0)),    # W1 (resident)
                pl.BlockSpec((1, mid_lanes), lambda i: (0, 0)),           # b1
                pl.BlockSpec((mid_lanes, out_lanes), lambda i: (0, 0)),   # W2 (resident)
                pl.BlockSpec((1, out_lanes), lambda i: (0, 0)),           # b2
            ],
            out_specs=pl.BlockSpec((tm // pack, out_lanes), lambda i: (i, 0)),
        ),
        compiler_params=pltpu.CompilerParams(
            dimension_semantics=("parallel",),
            vmem_limit_bytes=int(vmem_limit)),
        cost_estimate=cost,
    )(x, w1p, b1p, w2p, b2p)

    # (M//P, P*hh) row-major == (M, hh) row-major: plain reshape, no slicing.
    return out.reshape(batch, n_max, n_max, hidden_dim, hidden_dim)


def init_params(key, edge_dim, hidden_dim):
    """Synthetic init matching nn.Linear shapes; weights stored as
    (in_features, out_features) so the forward is x @ W + b."""
    k1, k2, k3, k4 = jax.random.split(key, 4)
    two_h = 2 * hidden_dim
    hh = hidden_dim * hidden_dim
    s1 = 1.0 / jnp.sqrt(edge_dim)
    s2 = 1.0 / jnp.sqrt(two_h)
    w1 = jax.random.uniform(k1, (edge_dim, two_h), jnp.float32, -s1, s1)
    b1 = jax.random.uniform(k2, (two_h,), jnp.float32, -s1, s1)
    w2 = jax.random.uniform(k3, (two_h, hh), jnp.float32, -s2, s2)
    b2 = jax.random.uniform(k4, (hh,), jnp.float32, -s2, s2)
    return w1, b1, w2, b2


if __name__ == "__main__":
    key = jax.random.PRNGKey(0)
    k_edges, k_params, k_edges2 = jax.random.split(key, 3)

    batch_size, edge_dim, hidden_dim = 2, 4, 8
    w1, b1, w2, b2 = init_params(k_params, edge_dim, hidden_dim)

    # Case 1: lane-dense packed path (M = 2*16*16 = 512 rows, pack = 32).
    n_max = 16
    edges = jax.random.normal(
        k_edges, (batch_size, n_max, n_max, edge_dim), jnp.float32)
    out = jax.block_until_ready(
        edge_nn_forward(edges, w1, b1, w2, b2, n_max=n_max, hidden_dim=hidden_dim))
    ref = jnp.tanh(
        jax.nn.sigmoid(edges.reshape(-1, edge_dim) @ w1 + b1) @ w2 + b2
    ).reshape(batch_size, n_max, n_max, hidden_dim, hidden_dim)
    assert out.shape == ref.shape
    assert jnp.allclose(out, ref, atol=1e-5, rtol=1e-5)

    # Case 2: generic fallback path (odd n_max -> M = 162, pack = 1, ragged
    # last tile handled as a masked partial block -- no padding / slicing).
    n_max2 = 9
    edges2 = jax.random.normal(
        k_edges2, (batch_size, n_max2, n_max2, edge_dim), jnp.float32)
    out2 = jax.block_until_ready(
        edge_nn_forward(edges2, w1, b1, w2, b2, n_max=n_max2, hidden_dim=hidden_dim))
    ref2 = jnp.tanh(
        jax.nn.sigmoid(edges2.reshape(-1, edge_dim) @ w1 + b1) @ w2 + b2
    ).reshape(batch_size, n_max2, n_max2, hidden_dim, hidden_dim)
    assert jnp.allclose(out2, ref2, atol=1e-5, rtol=1e-5)

    print("KERNEL_OK")
</pallas_src>

<mosaic_0001>
module attributes {stable_mosaic.version = 11 : i64} {
  func.func @edge_nn_kernel(%arg0: i32, %arg1: memref<8x128xf32, #tpu.memory_space<vmem>>, %arg2: memref<128x512xf32, #tpu.memory_space<vmem>>, %arg3: memref<1x512xf32, #tpu.memory_space<vmem>>, %arg4: memref<512x2048xf32, #tpu.memory_space<vmem>>, %arg5: memref<1x2048xf32, #tpu.memory_space<vmem>>, %arg6: memref<8x2048xf32, #tpu.memory_space<vmem>>) attributes {dimension_semantics = [#tpu.dimension_semantics<parallel>], iteration_bounds = array<i64: 2>, scalar_prefetch = 0 : i64, scratch_operands = 0 : i64, tpu.core_type = #tpu.core_type<tc>, window_params = [{transform_indices = @transform_0, window_bounds = array<i64: 8, 128>}, {pipeline_mode = #tpu.pipeline_mode<synchronous>, transform_indices = @transform_1, window_bounds = array<i64: 128, 512>}, {pipeline_mode = #tpu.pipeline_mode<synchronous>, transform_indices = @transform_2, window_bounds = array<i64: 1, 512>}, {pipeline_mode = #tpu.pipeline_mode<synchronous>, transform_indices = @transform_3, window_bounds = array<i64: 512, 2048>}, {pipeline_mode = #tpu.pipeline_mode<synchronous>, transform_indices = @transform_4, window_bounds = array<i64: 1, 2048>}, {transform_indices = @transform_5, window_bounds = array<i64: 8, 2048>}]} {
    %c0 = arith.constant 0 : index
    %c0_0 = arith.constant 0 : index
    %0 = vector.load %arg1[%c0, %c0_0] : memref<8x128xf32, #tpu.memory_space<vmem>>, vector<8x128xf32>
    %c0_1 = arith.constant 0 : index
    %c0_2 = arith.constant 0 : index
    %1 = vector.load %arg2[%c0_1, %c0_2] : memref<128x512xf32, #tpu.memory_space<vmem>>, vector<128x512xf32>
    %cst = arith.constant dense<0.000000e+00> : vector<8x512xf32>
    %2 = tpu.matmul %0, %1, %cst {dimension_numbers = #tpu.dot_dimension_numbers<[1], [0], [0], [1], [0, 0, 1, 1], [], []>} : vector<8x128xf32>, vector<128x512xf32>, vector<8x512xf32> -> vector<8x512xf32>
    %c0_3 = arith.constant 0 : index
    %c0_4 = arith.constant 0 : index
    %3 = vector.load %arg3[%c0_3, %c0_4] : memref<1x512xf32, #tpu.memory_space<vmem>>, vector<1x512xf32>
    %4 = vector.broadcast %3 : vector<1x512xf32> to vector<8x512xf32>
    %5 = arith.addf %2, %4 : vector<8x512xf32>
    %cst_5 = arith.constant 5.000000e-01 : f32
    %6 = vector.broadcast %cst_5 : f32 to vector<8x512xf32>
    %7 = arith.mulf %6, %5 : vector<8x512xf32>
    %8 = math.tanh %7 : vector<8x512xf32>
    %cst_6 = arith.constant 5.000000e-01 : f32
    %9 = vector.broadcast %cst_6 : f32 to vector<8x512xf32>
    %10 = arith.mulf %9, %8 : vector<8x512xf32>
    %cst_7 = arith.constant 5.000000e-01 : f32
    %11 = vector.broadcast %cst_7 : f32 to vector<8x512xf32>
    %12 = arith.addf %10, %11 : vector<8x512xf32>
    %c0_8 = arith.constant 0 : index
    %c0_9 = arith.constant 0 : index
    %13 = vector.load %arg4[%c0_8, %c0_9] : memref<512x2048xf32, #tpu.memory_space<vmem>>, vector<512x2048xf32>
    %cst_10 = arith.constant dense<0.000000e+00> : vector<8x2048xf32>
    %14 = tpu.matmul %12, %13, %cst_10 {dimension_numbers = #tpu.dot_dimension_numbers<[1], [0], [0], [1], [0, 0, 1, 1], [], []>} : vector<8x512xf32>, vector<512x2048xf32>, vector<8x2048xf32> -> vector<8x2048xf32>
    %c0_11 = arith.constant 0 : index
    %c0_12 = arith.constant 0 : index
    %15 = vector.load %arg5[%c0_11, %c0_12] : memref<1x2048xf32, #tpu.memory_space<vmem>>, vector<1x2048xf32>
    %16 = vector.broadcast %15 : vector<1x2048xf32> to vector<8x2048xf32>
    %17 = arith.addf %14, %16 : vector<8x2048xf32>
    %18 = math.tanh %17 : vector<8x2048xf32>
    %c0_13 = arith.constant 0 : index
    %c0_14 = arith.constant 0 : index
    %19 = vector.load %arg6[%c0_13, %c0_14] : memref<8x2048xf32, #tpu.memory_space<vmem>>, vector<8x2048xf32>
    tpu.vector_store %arg6[%c0_13, %c0_14], %18 {strides = array<i32>} : memref<8x2048xf32, #tpu.memory_space<vmem>>, vector<8x2048xf32>,
    return
  }
  func.func @transform_0(%arg0: i32) -> (i32, i32) {
    %c0_i32 = arith.constant 0 : i32
    %c0_i32_0 = arith.constant 0 : i32
    return %arg0, %c0_i32 : i32, i32
  }
  func.func @transform_1(%arg0: i32) -> (i32, i32) {
    %c0_i32 = arith.constant 0 : i32
    %c0_i32_0 = arith.constant 0 : i32
    %c0_i32_1 = arith.constant 0 : i32
    return %c0_i32, %c0_i32_0 : i32, i32
  }
  func.func @transform_2(%arg0: i32) -> (i32, i32) {
    %c0_i32 = arith.constant 0 : i32
    %c0_i32_0 = arith.constant 0 : i32
    %c0_i32_1 = arith.constant 0 : i32
    return %c0_i32, %c0_i32_0 : i32, i32
  }
  func.func @transform_3(%arg0: i32) -> (i32, i32) {
    %c0_i32 = arith.constant 0 : i32
    %c0_i32_0 = arith.constant 0 : i32
    %c0_i32_1 = arith.constant 0 : i32
    return %c0_i32, %c0_i32_0 : i32, i32
  }
  func.func @transform_4(%arg0: i32) -> (i32, i32) {
    %c0_i32 = arith.constant 0 : i32
    %c0_i32_0 = arith.constant 0 : i32
    %c0_i32_1 = arith.constant 0 : i32
    return %c0_i32, %c0_i32_0 : i32, i32
  }
  func.func @transform_5(%arg0: i32) -> (i32, i32) {
    %c0_i32 = arith.constant 0 : i32
    %c0_i32_0 = arith.constant 0 : i32
    return %arg0, %c0_i32 : i32, i32
  }
}

</mosaic_0001>

<llo_original>
// kernel: tile.18
$region0: #{tile.18}
  #allocation0 [shape = 's32[1]{0}', space=sflag, size = 0x4, scoped, tag = 'scoped memory for tile.18']
  %s0 = inlined_call_operand.vmem [shape: f32[64], index: 0, kind: input, shape index: {}]
  %s1 = inlined_call_operand.vmem [shape: f32[32,64], index: 1, kind: output, shape index: {}]
  // Predicated region
  $region2: #{tile.18} parent=0 // pred_check
    _
  $region3: #{tile.18} parent=0 // pred_check_branch
    %3 = sbr.rel (0) target = $region5
  $region4: #{tile.18} parent=0 // pred_region
    _
  $region5: #{tile.18} parent=0 // pred_fallthru
    _
  %v4 = vld [vmem:[%s0] ss:$0 sm:$0xff]
  %5 = vst [vmem:[%s1] sm:$0xff] %v4
  %s6 = scalar_lea.vmem %s1, 8
  %7 = vst [vmem:[%s6] sm:$0xff] %v4
  %s8 = scalar_lea.vmem %s1, 16
  %9 = vst [vmem:[%s8] sm:$0xff] %v4
  %s10 = scalar_lea.vmem %s1, 24
  %11 = vst [vmem:[%s10] sm:$0xff] %v4

// kernel: tile.19
$region0: #{tile.19}
  %s0 = inlined_call_operand.vmem [shape: f32[32,64], index: 0, kind: input, shape index: {}]
  %s1 = inlined_call_operand.vmem [shape: f32[1,2048], index: 1, kind: output, shape index: {}]
  $region1: #{tile.19} parent=0
    #allocation0 [shape = 'u8[65536]{0}', space=vmem, size = 0x10000, scoped, tag = 'scoped mem for output reshape']
    %v2 = vld [vmem:[%s0] ss:$2 sm:$0xff]
    %vm3 = vcmask 523264
    %4 = vst.msk [vmem:[#allocation0] ss:$8 sm:$0xf] %vm3, %v2
    %5 = vst.msk [vmem:[#allocation0] ss:$8 sm:$0xf0] %vm3, %v2
    %s6 = scalar_lea.vmem %s0, 16
    %v7 = vld [vmem:[%s6] ss:$2 sm:$0xff]
    %vm8 = vcmask 523264
    %s9 = scalar_lea.vmem [#allocation0], 64
    %10 = vst.msk [vmem:[%s9] ss:$8 sm:$0xf] %vm8, %v7
    %s11 = scalar_lea.vmem [#allocation0], 64
    %12 = vst.msk [vmem:[%s11] ss:$8 sm:$0xf0] %vm8, %v7
    %s13 = scalar_lea.vmem %s0, 1
    %v14 = vld [vmem:[%s13] ss:$2 sm:$0xff]
    %15 = vrot.lane.b32.xlu0 %v14, 64
    %v16 = vpop.permute.xlu0 %15
    %vm17 = vcmask 1048064
    %18 = vst.msk [vmem:[#allocation0] ss:$8 sm:$0xf] %vm17, %v16
    %19 = vst.msk [vmem:[#allocation0] ss:$8 sm:$0xf0] %vm17, %v16
    %s20 = scalar_lea.vmem %s0, 17
    %v21 = vld [vmem:[%s20] ss:$2 sm:$0xff]
    %22 = vrot.lane.b32.xlu0 %v21, 64
    %v23 = vpop.permute.xlu0 %22
    %vm24 = vcmask 1048064
    %s25 = scalar_lea.vmem [#allocation0], 64
    %26 = vst.msk [vmem:[%s25] ss:$8 sm:$0xf] %vm24, %v23
    %s27 = scalar_lea.vmem [#allocation0], 64
    %28 = vst.msk [vmem:[%s27] ss:$8 sm:$0xf0] %vm24, %v23
    %s30 = ssub.s32 2, 1
    %v31 = vld [vmem:[#allocation0] sm:%s30]
    %s33 = ssub.s32 2, 1
    %34 = vst [vmem:[%s1] sm:%s33] %v31
    %s35 = scalar_lea.vmem [#allocation0], 8
    %v36 = vld [vmem:[%s35] sm:%s30]
    %s38 = ssub.s32 2, 1
    %s39 = scalar_lea.vmem %s1, 1
    %40 = vst [vmem:[%s39] sm:%s38] %v36
    %s41 = scalar_lea.vmem [#allocation0], 16
    %v42 = vld [vmem:[%s41] sm:%s30]
    %s44 = ssub.s32 2, 1
    %s45 = scalar_lea.vmem %s1, 2
    %46 = vst [vmem:[%s45] sm:%s44] %v42
    %s47 = scalar_lea.vmem [#allocation0], 24
    %v48 = vld [vmem:[%s47] sm:%s30]
    %s50 = ssub.s32 2, 1
    %s51 = scalar_lea.vmem %s1, 3
    %52 = vst [vmem:[%s51] sm:%s50] %v48
    %s53 = scalar_lea.vmem [#allocation0], 32
    %v54 = vld [vmem:[%s53] sm:%s30]
    %s56 = ssub.s32 2, 1
    %s57 = scalar_lea.vmem %s1, 4
    %58 = vst [vmem:[%s57] sm:%s56] %v54
    %s59 = scalar_lea.vmem [#allocation0], 40
    %v60 = vld [vmem:[%s59] sm:%s30]
    %s62 = ssub.s32 2, 1
    %s63 = scalar_lea.vmem %s1, 5
    %64 = vst [vmem:[%s63] sm:%s62] %v60
    %s65 = scalar_lea.vmem [#allocation0], 48
    %v66 = vld [vmem:[%s65] sm:%s30]
    %s68 = ssub.s32 2, 1
    %s69 = scalar_lea.vmem %s1, 6
    %70 = vst [vmem:[%s69] sm:%s68] %v66
    %s71 = scalar_lea.vmem [#allocation0], 56
    %v72 = vld [vmem:[%s71] sm:%s30]
    %s74 = ssub.s32 2, 1
    %s75 = scalar_lea.vmem %s1, 7
    %76 = vst [vmem:[%s75] sm:%s74] %v72
    %s77 = scalar_lea.vmem [#allocation0], 64
    %v78 = vld [vmem:[%s77] sm:%s30]
    %s80 = ssub.s32 2, 1
    %s81 = scalar_lea.vmem %s1, 8
    %82 = vst [vmem:[%s81] sm:%s80] %v78
    %s83 = scalar_lea.vmem [#allocation0], 72
    %v84 = vld [vmem:[%s83] sm:%s30]
    %s86 = ssub.s32 2, 1
    %s87 = scalar_lea.vmem %s1, 9
    %88 = vst [vmem:[%s87] sm:%s86] %v84
    %s89 = scalar_lea.vmem [#allocation0], 80
    %v90 = vld [vmem:[%s89] sm:%s30]
    %s92 = ssub.s32 2, 1
    %s93 = scalar_lea.vmem %s1, 10
    %94 = vst [vmem:[%s93] sm:%s92] %v90
    %s95 = scalar_lea.vmem [#allocation0], 88
    %v96 = vld [vmem:[%s95] sm:%s30]
    %s98 = ssub.s32 2, 1
    %s99 = scalar_lea.vmem %s1, 11
    %100 = vst [vmem:[%s99] sm:%s98] %v96
    %s101 = scalar_lea.vmem [#allocation0], 96
    %v102 = vld [vmem:[%s101] sm:%s30]
    %s104 = ssub.s32 2, 1
    %s105 = scalar_lea.vmem %s1, 12
    %106 = vst [vmem:[%s105] sm:%s104] %v102
    %s107 = scalar_lea.vmem [#allocation0], 104
    %v108 = vld [vmem:[%s107] sm:%s30]
    %s110 = ssub.s32 2, 1
    %s111 = scalar_lea.vmem %s1, 13
    %112 = vst [vmem:[%s111] sm:%s110] %v108
    %s113 = scalar_lea.vmem [#allocation0], 112
    %v114 = vld [vmem:[%s113] sm:%s30]
    %s116 = ssub.s32 2, 1
    %s117 = scalar_lea.vmem %s1, 14
    %118 = vst [vmem:[%s117] sm:%s116] %v114
    %s119 = scalar_lea.vmem [#allocation0], 120
    %v120 = vld [vmem:[%s119] sm:%s30]
    %s122 = ssub.s32 2, 1
    %s123 = scalar_lea.vmem %s1, 15
    %124 = vst [vmem:[%s123] sm:%s122] %v120

// kernel: tile.13
$region0: #{tile.13}
  #allocation0 [shape = 's32[1]{0}', space=sflag, size = 0x4, scoped, tag = 'scoped memory for tile.13']
  %s0 = inlined_call_operand.vmem [shape: f32[16], index: 0, kind: input, shape index: {}]
  %s1 = inlined_call_operand.vmem [shape: f32[32,16], index: 1, kind: output, shape index: {}]
  // Predicated region
  $region2: #{tile.13} parent=0 // pred_check
    _
  $region3: #{tile.13} parent=0 // pred_check_branch
    %3 = sbr.rel (0) target = $region5
  $region4: #{tile.13} parent=0 // pred_region
    _
  $region5: #{tile.13} parent=0 // pred_fallthru
    _
  %v4 = vld [vmem:[%s0] ss:$0 sm:$0xff]
  %5 = vst [vmem:[%s1] sm:$0xff] %v4
  %s6 = scalar_lea.vmem %s1, 8
  %7 = vst [vmem:[%s6] sm:$0xff] %v4
  %s8 = scalar_lea.vmem %s1, 16
  %9 = vst [vmem:[%s8] sm:$0xff] %v4
  %s10 = scalar_lea.vmem %s1, 24
  %11 = vst [vmem:[%s10] sm:$0xff] %v4

// kernel: tile.14
$region0: #{tile.14}
  %s0 = inlined_call_operand.vmem [shape: f32[32,16], index: 0, kind: input, shape index: {}]
  %s1 = inlined_call_operand.vmem [shape: f32[1,512], index: 1, kind: output, shape index: {}]
  $region1: #{tile.14} parent=0
    #allocation0 [shape = 'u8[16384]{0}', space=vmem, size = 0x4000, scoped, tag = 'scoped mem for output reshape']
    %v2 = vld [vmem:[%s0] ss:$8 sm:$0xf]
    %vm3 = vcmask 130048
    %4 = vst.msk [vmem:[#allocation0] ss:$8 sm:$0xf] %vm3, %v2
    %s5 = scalar_lea.vmem %s0, 7
    %v6 = vld [vmem:[%s5] ss:$8 sm:$0xf]
    %7 = vrot.lane.b32.xlu0 %v6, 112
    %v8 = vpop.permute.xlu0 %7
    %vm9 = vcmask 1048448
    %10 = vst.msk [vmem:[#allocation0] ss:$8 sm:$0xf] %vm9, %v8
    %s11 = scalar_lea.vmem %s0, 6
    %v12 = vld [vmem:[%s11] ss:$8 sm:$0xf]
    %13 = vrot.lane.b32.xlu0 %v12, 96
    %v14 = vpop.permute.xlu0 %13
    %vm15 = vcmask 917248
    %16 = vst.msk [vmem:[#allocation0] ss:$8 sm:$0xf] %vm15, %v14
    %s17 = scalar_lea.vmem %s0, 5
    %v18 = vld [vmem:[%s17] ss:$8 sm:$0xf]
    %19 = vrot.lane.b32.xlu0 %v18, 80
    %v20 = vpop.permute.xlu0 %19
    %vm21 = vcmask 786048
    %22 = vst.msk [vmem:[#allocation0] ss:$8 sm:$0xf] %vm21, %v20
    %s23 = scalar_lea.vmem %s0, 4
    %v24 = vld [vmem:[%s23] ss:$8 sm:$0xf]
    %25 = vrot.lane.b32.xlu0 %v24, 64
    %v26 = vpop.permute.xlu0 %25
    %vm27 = vcmask 654848
    %28 = vst.msk [vmem:[#allocation0] ss:$8 sm:$0xf] %vm27, %v26
    %s29 = scalar_lea.vmem %s0, 3
    %v30 = vld [vmem:[%s29] ss:$8 sm:$0xf]
    %31 = vrot.lane.b32.xlu0 %v30, 48
    %v32 = vpop.permute.xlu0 %31
    %vm33 = vcmask 523648
    %34 = vst.msk [vmem:[#allocation0] ss:$8 sm:$0xf] %vm33, %v32
    %s35 = scalar_lea.vmem %s0, 2
    %v36 = vld [vmem:[%s35] ss:$8 sm:$0xf]
    %37 = vrot.lane.b32.xlu0 %v36, 32
    %v38 = vpop.permute.xlu0 %37
    %vm39 = vcmask 392448
    %40 = vst.msk [vmem:[#allocation0] ss:$8 sm:$0xf] %vm39, %v38
    %s41 = scalar_lea.vmem %s0, 1
    %v42 = vld [vmem:[%s41] ss:$8 sm:$0xf]
    %43 = vrot.lane.b32.xlu0 %v42, 16
    %v44 = vpop.permute.xlu0 %43
    %vm45 = vcmask 261248
    %46 = vst.msk [vmem:[#allocation0] ss:$8 sm:$0xf] %vm45, %v44
    %s48 = ssub.s32 2, 1
    %v49 = vld [vmem:[#allocation0] sm:%s48]
    %s51 = ssub.s32 2, 1
    %52 = vst [vmem:[%s1] sm:%s51] %v49
    %s53 = scalar_lea.vmem [#allocation0], 8
    %v54 = vld [vmem:[%s53] sm:%s48]
    %s56 = ssub.s32 2, 1
    %s57 = scalar_lea.vmem %s1, 1
    %58 = vst [vmem:[%s57] sm:%s56] %v54
    %s59 = scalar_lea.vmem [#allocation0], 16
    %v60 = vld [vmem:[%s59] sm:%s48]
    %s62 = ssub.s32 2, 1
    %s63 = scalar_lea.vmem %s1, 2
    %64 = vst [vmem:[%s63] sm:%s62] %v60
    %s65 = scalar_lea.vmem [#allocation0], 24
    %v66 = vld [vmem:[%s65] sm:%s48]
    %s68 = ssub.s32 2, 1
    %s69 = scalar_lea.vmem %s1, 3
    %70 = vst [vmem:[%s69] sm:%s68] %v66

// kernel: edge_nn_forward.1
$region0: #{edge_nn_forward.1}
  #allocation0 [shape = 'u32[]', space=smem, size = 0x4, offset = 0x4, fixed_abs, tag = 'smem constant byte address 0x4 - core index']
  #allocation1 [shape = 'u32[72,128]{1,0:T(1,128)}', space=vmem, size = 0x9000, scoped, tag = 'internal scratch']
  %s0 = inlined_call_operand.vmem [shape: f32[16,128], index: 0, kind: input, shape index: {}]
  %s1 = inlined_call_operand.vmem [shape: f32[128,512], index: 1, kind: input, shape index: {}]
  %s2 = inlined_call_operand.vmem [shape: f32[1,512], index: 2, kind: input, shape index: {}]
  %s3 = inlined_call_operand.vmem [shape: f32[512,2048], index: 3, kind: input, shape index: {}]
  %s4 = inlined_call_operand.vmem [shape: f32[1,2048], index: 4, kind: input, shape index: {}]
  %s5 = inlined_call_operand.vmem [shape: f32[16,2048], index: 5, kind: output, shape index: {}]
  %s6 = sld [smem:[#allocation0]]
  $region53: #{edge_nn_forward.1} parent=0
    _
  %s8 = ssub.s32 1, %s6
  %s9 = scalar_select 0, %s8, %s6
  loop: start=0, step=1, limit=4
  $region2: #{edge_nn_forward.1} parent=0 // loop_pre_header
    _
  $region3: #{edge_nn_forward.1} parent=0 // loop_header
    %s11 = sphi 0, %s15
    %p12 = scmp.ge.s32.totalorder %s11, 4
    %s21 = sphi 0, %s23
    %s24 = sphi 0, %s21
    %s25 = sphi 0, %s24
    %s41 = sphi 0, %s25
    %s45 = sphi 0, %s45
    %s47 = sphi 0, %s45
    %s48 = sphi 0, %s47
    %s62 = sphi 0, %s48
    %s66 = sphi 0, %s66
    %s68 = sphi 0, %s66
    %s69 = sphi 0, %s68
    %s83 = sphi 0, %s69
    %s87 = sphi 0, %s87
    %s89 = sphi 0, %s87
    %s90 = sphi 0, %s89
    %s104 = sphi 0, %s90
    %s108 = sphi 0, %s108
    %s110 = sphi 0, %s108
    %s111 = sphi 0, %s110
    %s125 = sphi 0, %s111
    %s131 = sphi 0, %s133
    %s134 = sphi 0, %s131
    %s135 = sphi 0, %s134
    %s151 = sphi 0, %s135
  $region4: #{edge_nn_forward.1} parent=0 // loop_header_branch
    %14 = sbr.rel (%p12) target = $region8
  $region5: #{edge_nn_forward.1} parent=0 // loop_body
    %s16 = ssub.s32 %s11, 1
    %s17 = ssub.s32 %s11, 2
    %s18 = sadd.s32 %s11, 1
    %s19 = ssub.s32 %s11, %s18
    %p20 = scmp.eq.s32.totalorder %s19, 0
    %s22 = sadd.s32 %s21, 1
    %s23 = scalar_select %p20, %s21, %s22
    %p26 = pneg %p20
    %p27 = scmp.eq.s32.totalorder %s11, 1
    %p28 = por %p26, %p27
    %p29 = scmp.ne.s32.totalorder %s21, %s24
    %p30 = scmp.eq.s32.totalorder %s11, 0
    %p31 = por %p29, %p30
    %p32 = scmp.ne.s32.totalorder %s21, %s24
    %p33 = scmp.eq.s32.totalorder %s16, 1
    %p34 = por %p32, %p33
    %p35 = scmp.ne.s32.totalorder %s24, %s25
    %p36 = scmp.eq.s32.totalorder %s16, 0
    %p37 = por %p35, %p36
    %p38 = scmp.ne.s32.totalorder %s24, %s25
    %p39 = scmp.eq.s32.totalorder %s17, 1
    %p40 = por %p38, %p39
    %p42 = scmp.ne.s32.totalorder %s25, %s41
    %p43 = scmp.eq.s32.totalorder %s17, 0
    %p44 = por %p42, %p43
    %s46 = sadd.s32 %s45, 1
    %p49 = scmp.eq.s32.totalorder %s11, 1
    %p50 = scmp.ne.s32.totalorder %s45, %s47
    %p51 = scmp.eq.s32.totalorder %s11, 0
    %p52 = por %p50, %p51
    %p53 = scmp.ne.s32.totalorder %s45, %s47
    %p54 = scmp.eq.s32.totalorder %s16, 1
    %p55 = por %p53, %p54
    %p56 = scmp.ne.s32.totalorder %s47, %s48
    %p57 = scmp.eq.s32.totalorder %s16, 0
    %p58 = por %p56, %p57
    %p59 = scmp.ne.s32.totalorder %s47, %s48
    %p60 = scmp.eq.s32.totalorder %s17, 1
    %p61 = por %p59, %p60
    %p63 = scmp.ne.s32.totalorder %s48, %s62
    %p64 = scmp.eq.s32.totalorder %s17, 0
    %p65 = por %p63, %p64
    %s67 = sadd.s32 %s66, 1
    %p70 = scmp.eq.s32.totalorder %s11, 1
    %p71 = scmp.ne.s32.totalorder %s66, %s68
    %p72 = scmp.eq.s32.totalorder %s11, 0
    %p73 = por %p71, %p72
    %p74 = scmp.ne.s32.totalorder %s66, %s68
    %p75 = scmp.eq.s32.totalorder %s16, 1
    %p76 = por %p74, %p75
    %p77 = scmp.ne.s32.totalorder %s68, %s69
    %p78 = scmp.eq.s32.totalorder %s16, 0
    %p79 = por %p77, %p78
    %p80 = scmp.ne.s32.totalorder %s68, %s69
    %p81 = scmp.eq.s32.totalorder %s17, 1
    %p82 = por %p80, %p81
    %p84 = scmp.ne.s32.totalorder %s69, %s83
    %p85 = scmp.eq.s32.totalorder %s17, 0
    %p86 = por %p84, %p85
    %s88 = sadd.s32 %s87, 1
    %p91 = scmp.eq.s32.totalorder %s11, 1
    %p92 = scmp.ne.s32.totalorder %s87, %s89
    %p93 = scmp.eq.s32.totalorder %s11, 0
    %p94 = por %p92, %p93
    %p95 = scmp.ne.s32.totalorder %s87, %s89
    %p96 = scmp.eq.s32.totalorder %s16, 1
    %p97 = por %p95, %p96
    %p98 = scmp.ne.s32.totalorder %s89, %s90
    %p99 = scmp.eq.s32.totalorder %s16, 0
    %p100 = por %p98, %p99
    %p101 = scmp.ne.s32.totalorder %s89, %s90
    %p102 = scmp.eq.s32.totalorder %s17, 1
    %p103 = por %p101, %p102
    %p105 = scmp.ne.s32.totalorder %s90, %s104
    %p106 = scmp.eq.s32.totalorder %s17, 0
    %p107 = por %p105, %p106
    %s109 = sadd.s32 %s108, 1
    %p112 = scmp.eq.s32.totalorder %s11, 1
    %p113 = scmp.ne.s32.totalorder %s108, %s110
    %p114 = scmp.eq.s32.totalorder %s11, 0
    %p115 = por %p113, %p114
    %p116 = scmp.ne.s32.totalorder %s108, %s110
    %p117 = scmp.eq.s32.totalorder %s16, 1
    %p118 = por %p116, %p117
    %p119 = scmp.ne.s32.totalorder %s110, %s111
    %p120 = scmp.eq.s32.totalorder %s16, 0
    %p121 = por %p119, %p120
    %p122 = scmp.ne.s32.totalorder %s110, %s111
    %p123 = scmp.eq.s32.totalorder %s17, 1
    %p124 = por %p122, %p123
    %p126 = scmp.ne.s32.totalorder %s111, %s125
    %p127 = scmp.eq.s32.totalorder %s17, 0
    %p128 = por %p126, %p127
    %s129 = ssub.s32 %s11, %s18
    %p130 = scmp.eq.s32.totalorder %s129, 0
    %s132 = sadd.s32 %s131, 1
    %s133 = scalar_select %p130, %s131, %s132
    %p136 = pneg %p130
    %p137 = scmp.eq.s32.totalorder %s11, 1
    %p138 = por %p136, %p137
    %p139 = scmp.ne.s32.totalorder %s131, %s134
    %p140 = scmp.eq.s32.totalorder %s11, 0
    %p141 = por %p139, %p140
    %p142 = scmp.ne.s32.totalorder %s131, %s134
    %p143 = scmp.eq.s32.totalorder %s16, 1
    %p144 = por %p142, %p143
    %p145 = scmp.ne.s32.totalorder %s134, %s135
    %p146 = scmp.eq.s32.totalorder %s16, 0
    %p147 = por %p145, %p146
    %p148 = scmp.ne.s32.totalorder %s134, %s135
    %p149 = scmp.eq.s32.totalorder %s17, 1
    %p150 = por %p148, %p149
    %p152 = scmp.ne.s32.totalorder %s135, %s151
    %p153 = scmp.eq.s32.totalorder %s17, 0
    %p154 = por %p152, %p153
    %p155 = scmp.le.s32.totalorder 1, %s11
    %p156 = scmp.lt.s32.totalorder %s11, 3
    %p157 = pnand %p155, %p156
    %p158 = pneg %p157
    // Predicated region
    $region9: #{edge_nn_forward.1} parent=5 // pred_check
      _
    $region10: #{edge_nn_forward.1} parent=5 // pred_check_branch
      %160 = sbr.rel (%p157) target = $region12
    $region11: #{edge_nn_forward.1} parent=5 // pred_region
      %s161 = ssub.s32 %s11, 1
      // Predicated region
      $region13: #{edge_nn_forward.1} parent=11 // pred_check
        %p162 = pneg %p58
      $region14: #{edge_nn_forward.1} parent=11 // pred_check_branch
        %164 = sbr.rel (%p162) target = $region16
      $region15: #{edge_nn_forward.1} parent=11 // pred_region
        _
      $region16: #{edge_nn_forward.1} parent=11 // pred_fallthru
        _
      // Predicated region
      $region17: #{edge_nn_forward.1} parent=11 // pred_check
        %p165 = pneg %p79
      $region18: #{edge_nn_forward.1} parent=11 // pred_check_branch
        %167 = sbr.rel (%p165) target = $region20
      $region19: #{edge_nn_forward.1} parent=11 // pred_region
        _
      $region20: #{edge_nn_forward.1} parent=11 // pred_fallthru
        _
      // Predicated region
      $region21: #{edge_nn_forward.1} parent=11 // pred_check
        %p168 = pneg %p100
      $region22: #{edge_nn_forward.1} parent=11 // pred_check_branch
        %170 = sbr.rel (%p168) target = $region24
      $region23: #{edge_nn_forward.1} parent=11 // pred_region
        _
      $region24: #{edge_nn_forward.1} parent=11 // pred_fallthru
        _
      // Predicated region
      $region25: #{edge_nn_forward.1} parent=11 // pred_check
        %p171 = pneg %p121
      $region26: #{edge_nn_forward.1} parent=11 // pred_check_branch
        %173 = sbr.rel (%p171) target = $region28
      $region27: #{edge_nn_forward.1} parent=11 // pred_region
        _
      $region28: #{edge_nn_forward.1} parent=11 // pred_fallthru
        _
    $region12: #{edge_nn_forward.1} parent=5 // pred_fallthru
      _
    %p174 = scmp.lt.s32.totalorder %s11, 2
    // Predicated region
    $region29: #{edge_nn_forward.1} parent=5 // pred_check
      %p175 = pneg %p174
    $region30: #{edge_nn_forward.1} parent=5 // pred_check_branch
      %177 = sbr.rel (%p175) target = $region32
    $region31: #{edge_nn_forward.1} parent=5 // pred_region
      // Predicated region
      $region33: #{edge_nn_forward.1} parent=31 // pred_check
        %p178 = pneg %p31
      $region34: #{edge_nn_forward.1} parent=31 // pred_check_branch
        %180 = sbr.rel (%p178) target = $region36
      $region35: #{edge_nn_forward.1} parent=31 // pred_region
        %p181 = scmp.lt.s32.totalorder %s11, 1
        %s182 = scalar_select %p181, %s11, 1
        %s183 = smul.addr %s182, 8
        %s184 = scalar_lea.vmem %s0, %s183
      $region36: #{edge_nn_forward.1} parent=31 // pred_fallthru
        _
    $region32: #{edge_nn_forward.1} parent=5 // pred_fallthru
      _
    %p185 = scmp.le.s32.totalorder 1, %s11
    %p186 = scmp.lt.s32.totalorder %s11, 3
    %p187 = pnand %p185, %p186
    %p188 = pneg %p187
    // Predicated region
    $region37: #{edge_nn_forward.1} parent=5 // pred_check
      _
    $region38: #{edge_nn_forward.1} parent=5 // pred_check_branch
      %190 = sbr.rel (%p187) target = $region40
    $region39: #{edge_nn_forward.1} parent=5 // pred_region
      %s191 = ssub.s32 %s11, 1
      %p192 = scmp.lt.s32.totalorder %s16, 1
      %s193 = scalar_select %p192, %s16, 1
      %s194 = smul.addr %s193, 8
      %s195 = scalar_lea.vmem %s0, %s194
      %p196 = pneg %p37
      %p197 = pneg %p34
      %p198 = pneg %p58
      %p199 = pneg %p55
      %p200 = pneg %p79
      %p201 = pneg %p76
      %p202 = pneg %p100
      %p203 = pneg %p97
      %p204 = pneg %p121
      %p205 = pneg %p118
      %p206 = pneg %p147
      %p207 = pneg %p144
      %p208 = scmp.lt.s32.totalorder %s16, 1
      %s209 = scalar_select %p208, %s16, 1
      %s210 = smul.addr %s209, 16
      %s211 = smul.addr %s210, 8
      %s212 = scalar_lea.vmem %s5, %s211
      %p213 = scmp.lt.s32.totalorder %s16, 1
      %s214 = scalar_select %p213, %s16, 1
      %s215 = smul.addr %s214, 8
      %s216 = scalar_lea.vmem %s0, %s215
      %p217 = scmp.lt.s32.totalorder %s16, 1
      %s218 = scalar_select %p217, %s16, 1
      %s219 = smul.addr %s218, 16
      %s220 = smul.addr %s219, 8
      %s221 = scalar_lea.vmem %s5, %s220
      %v222 = vld [vmem:[%s216] sm:$0xff]
      %v223 = vld [vmem:[%s1] sm:$0xff]
      %v224 = vld [vmem:[%s1 + $0x8] sm:$0xff]
      %v225 = vld [vmem:[%s1 + $0x10] sm:$0xff]
      %v226 = vld [vmem:[%s1 + $0x18] sm:$0xff]
      %v227 = vld [vmem:[%s1 + $0x20] sm:$0xff]
      %v228 = vld [vmem:[%s1 + $0x28] sm:$0xff]
      %v229 = vld [vmem:[%s1 + $0x30] sm:$0xff]
      %v230 = vld [vmem:[%s1 + $0x38] sm:$0xff]
      %v231 = vld [vmem:[%s1 + $0x40] sm:$0xff]
      %v232 = vld [vmem:[%s1 + $0x48] sm:$0xff]
      %v233 = vld [vmem:[%s1 + $0x50] sm:$0xff]
      %v234 = vld [vmem:[%s1 + $0x58] sm:$0xff]
      %v235 = vld [vmem:[%s1 + $0x60] sm:$0xff]
      %v236 = vld [vmem:[%s1 + $0x68] sm:$0xff]
      %v237 = vld [vmem:[%s1 + $0x70] sm:$0xff]
      %v238 = vld [vmem:[%s1 + $0x78] sm:$0xff]
      %v239 = vld [vmem:[%s1 + $0x80] sm:$0xff]
      %v240 = vld [vmem:[%s1 + $0x88] sm:$0xff]
      %v241 = vld [vmem:[%s1 + $0x90] sm:$0xff]
      %v242 = vld [vmem:[%s1 + $0x98] sm:$0xff]
      %v243 = vld [vmem:[%s1 + $0xa0] sm:$0xff]
      %v244 = vld [vmem:[%s1 + $0xa8] sm:$0xff]
      %v245 = vld [vmem:[%s1 + $0xb0] sm:$0xff]
      %v246 = vld [vmem:[%s1 + $0xb8] sm:$0xff]
      %v247 = vld [vmem:[%s1 + $0xc0] sm:$0xff]
      %v248 = vld [vmem:[%s1 + $0xc8] sm:$0xff]
      %v249 = vld [vmem:[%s1 + $0xd0] sm:$0xff]
      %v250 = vld [vmem:[%s1 + $0xd8] sm:$0xff]
      %v251 = vld [vmem:[%s1 + $0xe0] sm:$0xff]
      %v252 = vld [vmem:[%s1 + $0xe8] sm:$0xff]
      %v253 = vld [vmem:[%s1 + $0xf0] sm:$0xff]
      %v254 = vld [vmem:[%s1 + $0xf8] sm:$0xff]
      %v255 = vld [vmem:[%s1 + $0x100] sm:$0xff]
      %v256 = vld [vmem:[%s1 + $0x108] sm:$0xff]
      %v257 = vld [vmem:[%s1 + $0x110] sm:$0xff]
      %v258 = vld [vmem:[%s1 + $0x118] sm:$0xff]
      %v259 = vld [vmem:[%s1 + $0x120] sm:$0xff]
      %v260 = vld [vmem:[%s1 + $0x128] sm:$0xff]
      %v261 = vld [vmem:[%s1 + $0x130] sm:$0xff]
      %v262 = vld [vmem:[%s1 + $0x138] sm:$0xff]
      %v263 = vld [vmem:[%s1 + $0x140] sm:$0xff]
      %v264 = vld [vmem:[%s1 + $0x148] sm:$0xff]
      %v265 = vld [vmem:[%s1 + $0x150] sm:$0xff]
      %v266 = vld [vmem:[%s1 + $0x158] sm:$0xff]
      %v267 = vld [vmem:[%s1 + $0x160] sm:$0xff]
      %v268 = vld [vmem:[%s1 + $0x168] sm:$0xff]
      %v269 = vld [vmem:[%s1 + $0x170] sm:$0xff]
      %v270 = vld [vmem:[%s1 + $0x178] sm:$0xff]
      %v271 = vld [vmem:[%s1 + $0x180] sm:$0xff]
      %v272 = vld [vmem:[%s1 + $0x188] sm:$0xff]
      %v273 = vld [vmem:[%s1 + $0x190] sm:$0xff]
      %v274 = vld [vmem:[%s1 + $0x198] sm:$0xff]
      %v275 = vld [vmem:[%s1 + $0x1a0] sm:$0xff]
      %v276 = vld [vmem:[%s1 + $0x1a8] sm:$0xff]
      %v277 = vld [vmem:[%s1 + $0x1b0] sm:$0xff]
      %v278 = vld [vmem:[%s1 + $0x1b8] sm:$0xff]
      %v279 = vld [vmem:[%s1 + $0x1c0] sm:$0xff]
      %v280 = vld [vmem:[%s1 + $0x1c8] sm:$0xff]
      %v281 = vld [vmem:[%s1 + $0x1d0] sm:$0xff]
      %v282 = vld [vmem:[%s1 + $0x1d8] sm:$0xff]
      %v283 = vld [vmem:[%s1 + $0x1e0] sm:$0xff]
      %v284 = vld [vmem:[%s1 + $0x1e8] sm:$0xff]
      %v285 = vld [vmem:[%s1 + $0x1f0] sm:$0xff]
      %v286 = vld [vmem:[%s1 + $0x1f8] sm:$0xff]
      %v287 = vld [vmem:[%s2] sm:$0xf]
      %v289 = vperm.slane %v287, 0
      %v290 = vperm.slane %v287, 1
      %v291 = vperm.slane %v287, 2
      %v292 = vperm.slane %v287, 3
      %297 = vmatpush.msra.mxu0 %v283
      %298 = vmatpush.msra.mxu0 %v279
      %299 = vmatpush.msra.mxu0 %v275
      %300 = vmatpush.msra.mxu0 %v271
      %301 = vmatpush.msra.mxu0 %v267
      %302 = vmatpush.msra.mxu0 %v263
      %303 = vmatpush.msra.mxu0 %v259
      %304 = vmatpush.msra.mxu0 %v255
      %305 = vmatpush.msra.mxu0 %v251
      %306 = vmatpush.msra.mxu0 %v247
      %307 = vmatpush.msra.mxu0 %v243
      %308 = vmatpush.msra.mxu0 %v239
      %309 = vmatpush.msra.mxu0 %v235
      %310 = vmatpush.msra.mxu0 %v231
      %311 = vmatpush.msra.mxu0 %v227
      %312 = vmatpush.msra.mxu0 %v223
      %313 = vmatmul.f32.gmra.mxu0 %v222
      %v314 = vpop.f32.mrf.mxu0
      %v315 = vadd.f32 %v289, %v314
      %316 = vdwg.mxu0
      %317 = vmatpush.msra.mxu0 %v284
      %318 = vmatpush.msra.mxu0 %v280
      %319 = vmatpush.msra.mxu0 %v276
      %320 = vmatpush.msra.mxu0 %v272
      %321 = vmatpush.msra.mxu0 %v268
      %322 = vmatpush.msra.mxu0 %v264
      %323 = vmatpush.msra.mxu0 %v260
      %324 = vmatpush.msra.mxu0 %v256
      %325 = vmatpush.msra.mxu0 %v252
      %326 = vmatpush.msra.mxu0 %v248
      %327 = vmatpush.msra.mxu0 %v244
      %328 = vmatpush.msra.mxu0 %v240
      %329 = vmatpush.msra.mxu0 %v236
      %330 = vmatpush.msra.mxu0 %v232
      %331 = vmatpush.msra.mxu0 %v228
      %332 = vmatpush.msra.mxu0 %v224
      %333 = vmatmul.f32.gmra.mxu0 %v222
      %v334 = vpop.f32.mrf.mxu0
      %v335 = vadd.f32 %v290, %v334
      %336 = vdwg.mxu0
      %337 = vmatpush.msra.mxu0 %v285
      %338 = vmatpush.msra.mxu0 %v281
      %339 = vmatpush.msra.mxu0 %v277
      %340 = vmatpush.msra.mxu0 %v273
      %341 = vmatpush.msra.mxu0 %v269
      %342 = vmatpush.msra.mxu0 %v265
      %343 = vmatpush.msra.mxu0 %v261
      %344 = vmatpush.msra.mxu0 %v257
      %345 = vmatpush.msra.mxu0 %v253
      %346 = vmatpush.msra.mxu0 %v249
      %347 = vmatpush.msra.mxu0 %v245
      %348 = vmatpush.msra.mxu0 %v241
      %349 = vmatpush.msra.mxu0 %v237
      %350 = vmatpush.msra.mxu0 %v233
      %351 = vmatpush.msra.mxu0 %v229
      %352 = vmatpush.msra.mxu0 %v225
      %353 = vmatmul.f32.gmra.mxu0 %v222
      %v354 = vpop.f32.mrf.mxu0
      %v355 = vadd.f32 %v291, %v354
      %356 = vdwg.mxu0
      %357 = vmatpush.msra.mxu0 %v286
      %358 = vmatpush.msra.mxu0 %v282
      %359 = vmatpush.msra.mxu0 %v278
      %360 = vmatpush.msra.mxu0 %v274
      %361 = vmatpush.msra.mxu0 %v270
      %362 = vmatpush.msra.mxu0 %v266
      %363 = vmatpush.msra.mxu0 %v262
      %364 = vmatpush.msra.mxu0 %v258
      %365 = vmatpush.msra.mxu0 %v254
      %366 = vmatpush.msra.mxu0 %v250
      %367 = vmatpush.msra.mxu0 %v246
      %368 = vmatpush.msra.mxu0 %v242
      %369 = vmatpush.msra.mxu0 %v238
      %370 = vmatpush.msra.mxu0 %v234
      %371 = vmatpush.msra.mxu0 %v230
      %372 = vmatpush.msra.mxu0 %v226
      %373 = vmatmul.f32.gmra.mxu0 %v222
      %v374 = vpop.f32.mrf.mxu0
      %v375 = vadd.f32 %v292, %v374
      %376 = vdwg.mxu0
      %v377 = vmul.f32 %v315, 0.5
      %v378 = vmul.f32 %v335, 0.5
      %v379 = vmul.f32 %v355, 0.5
      %v380 = vmul.f32 %v375, 0.5
      %v381 = vtanh.pop %v377
      %v382 = vtanh.pop %v378
      %v383 = vtanh.pop %v379
      %v384 = vtanh.pop %v380
      %v385 = vmul.f32 %v381, 0.5
      %v386 = vmul.f32 %v382, 0.5
      %v387 = vmul.f32 %v383, 0.5
      %v388 = vmul.f32 %v384, 0.5
      %v389 = vadd.f32 %v385, 0.5
      %v390 = vadd.f32 %v386, 0.5
      %v391 = vadd.f32 %v387, 0.5
      %v392 = vadd.f32 %v388, 0.5
      %v393 = vld [vmem:[%s3] sm:$0xff]
      %v394 = vld [vmem:[%s3 + $0x8] sm:$0xff]
      %v395 = vld [vmem:[%s3 + $0x10] sm:$0xff]
      %v396 = vld [vmem:[%s3 + $0x18] sm:$0xff]
      %v397 = vld [vmem:[%s3 + $0x20] sm:$0xff]
      %v398 = vld [vmem:[%s3 + $0x28] sm:$0xff]
      %v399 = vld [vmem:[%s3 + $0x30] sm:$0xff]
      %v400 = vld [vmem:[%s3 + $0x38] sm:$0xff]
      %v401 = vld [vmem:[%s3 + $0x40] sm:$0xff]
      %v402 = vld [vmem:[%s3 + $0x48] sm:$0xff]
      %v403 = vld [vmem:[%s3 + $0x50] sm:$0xff]
      %v404 = vld [vmem:[%s3 + $0x58] sm:$0xff]
      %v405 = vld [vmem:[%s3 + $0x60] sm:$0xff]
      %v406 = vld [vmem:[%s3 + $0x68] sm:$0xff]
      %v407 = vld [vmem:[%s3 + $0x70] sm:$0xff]
      %v408 = vld [vmem:[%s3 + $0x78] sm:$0xff]
      %v409 = vld [vmem:[%s3 + $0x80] sm:$0xff]
      %v410 = vld [vmem:[%s3 + $0x88] sm:$0xff]
      %v411 = vld [vmem:[%s3 + $0x90] sm:$0xff]
      %v412 = vld [vmem:[%s3 + $0x98] sm:$0xff]
      %v413 = vld [vmem:[%s3 + $0xa0] sm:$0xff]
      %v414 = vld [vmem:[%s3 + $0xa8] sm:$0xff]
      %v415 = vld [vmem:[%s3 + $0xb0] sm:$0xff]
      %v416 = vld [vmem:[%s3 + $0xb8] sm:$0xff]
      %v417 = vld [vmem:[%s3 + $0xc0] sm:$0xff]
      %v418 = vld [vmem:[%s3 + $0xc8] sm:$0xff]
      %v419 = vld [vmem:[%s3 + $0xd0] sm:$0xff]
      %v420 = vld [vmem:[%s3 + $0xd8] sm:$0xff]
      %v421 = vld [vmem:[%s3 + $0xe0] sm:$0xff]
      %v422 = vld [vmem:[%s3 + $0xe8] sm:$0xff]
      %v423 = vld [vmem:[%s3 + $0xf0] sm:$0xff]
      %v424 = vld [vmem:[%s3 + $0xf8] sm:$0xff]
      %v425 = vld [vmem:[%s3 + $0x100] sm:$0xff]
      %v426 = vld [vmem:[%s3 + $0x108] sm:$0xff]
      %v427 = vld [vmem:[%s3 + $0x110] sm:$0xff]
      %v428 = vld [vmem:[%s3 + $0x118] sm:$0xff]
      %v429 = vld [vmem:[%s3 + $0x120] sm:$0xff]
      %v430 = vld [vmem:[%s3 + $0x128] sm:$0xff]
      %v431 = vld [vmem:[%s3 + $0x130] sm:$0xff]
      %v432 = vld [vmem:[%s3 + $0x138] sm:$0xff]
      %v433 = vld [vmem:[%s3 + $0x140] sm:$0xff]
      %v434 = vld [vmem:[%s3 + $0x148] sm:$0xff]
      %v435 = vld [vmem:[%s3 + $0x150] sm:$0xff]
      %v436 = vld [vmem:[%s3 + $0x158] sm:$0xff]
      %v437 = vld [vmem:[%s3 + $0x160] sm:$0xff]
      %v438 = vld [vmem:[%s3 + $0x168] sm:$0xff]
      %v439 = vld [vmem:[%s3 + $0x170] sm:$0xff]
      %v440 = vld [vmem:[%s3 + $0x178] sm:$0xff]
      %v441 = vld [vmem:[%s3 + $0x180] sm:$0xff]
      %v442 = vld [vmem:[%s3 + $0x188] sm:$0xff]
      %v443 = vld [vmem:[%s3 + $0x190] sm:$0xff]
      %v444 = vld [vmem:[%s3 + $0x198] sm:$0xff]
      %v445 = vld [vmem:[%s3 + $0x1a0] sm:$0xff]
      %v446 = vld [vmem:[%s3 + $0x1a8] sm:$0xff]
      %v447 = vld [vmem:[%s3 + $0x1b0] sm:$0xff]
      %v448 = vld [vmem:[%s3 + $0x1b8] sm:$0xff]
      %v449 = vld [vmem:[%s3 + $0x1c0] sm:$0xff]
      %v450 = vld [vmem:[%s3 + $0x1c8] sm:$0xff]
      %v451 = vld [vmem:[%s3 + $0x1d0] sm:$0xff]
      %v452 = vld [vmem:[%s3 + $0x1d8] sm:$0xff]
      %v453 = vld [vmem:[%s3 + $0x1e0] sm:$0xff]
      %v454 = vld [vmem:[%s3 + $0x1e8] sm:$0xff]
      %v455 = vld [vmem:[%s3 + $0x1f0] sm:$0xff]
      %v456 = vld [vmem:[%s3 + $0x1f8] sm:$0xff]
      %v457 = vld [vmem:[%s3 + $0x200] sm:$0xff]
      %v458 = vld [vmem:[%s3 + $0x208] sm:$0xff]
      %v459 = vld [vmem:[%s3 + $0x210] sm:$0xff]
      %v460 = vld [vmem:[%s3 + $0x218] sm:$0xff]
      %v461 = vld [vmem:[%s3 + $0x220] sm:$0xff]
      %v462 = vld [vmem:[%s3 + $0x228] sm:$0xff]
      %v463 = vld [vmem:[%s3 + $0x230] sm:$0xff]
      %v464 = vld [vmem:[%s3 + $0x238] sm:$0xff]
      %v465 = vld [vmem:[%s3 + $0x240] sm:$0xff]
      %v466 = vld [vmem:[%s3 + $0x248] sm:$0xff]
      %v467 = vld [vmem:[%s3 + $0x250] sm:$0xff]
      %v468 = vld [vmem:[%s3 + $0x258] sm:$0xff]
      %v469 = vld [vmem:[%s3 + $0x260] sm:$0xff]
      %v470 = vld [vmem:[%s3 + $0x268] sm:$0xff]
      %v471 = vld [vmem:[%s3 + $0x270] sm:$0xff]
      %v472 = vld [vmem:[%s3 + $0x278] sm:$0xff]
      %v473 = vld [vmem:[%s3 + $0x280] sm:$0xff]
      %v474 = vld [vmem:[%s3 + $0x288] sm:$0xff]
      %v475 = vld [vmem:[%s3 + $0x290] sm:$0xff]
      %v476 = vld [vmem:[%s3 + $0x298] sm:$0xff]
      %v477 = vld [vmem:[%s3 + $0x2a0] sm:$0xff]
      %v478 = vld [vmem:[%s3 + $0x2a8] sm:$0xff]
      %v479 = vld [vmem:[%s3 + $0x2b0] sm:$0xff]
      %v480 = vld [vmem:[%s3 + $0x2b8] sm:$0xff]
      %v481 = vld [vmem:[%s3 + $0x2c0] sm:$0xff]
      %v482 = vld [vmem:[%s3 + $0x2c8] sm:$0xff]
      %v483 = vld [vmem:[%s3 + $0x2d0] sm:$0xff]
      %v484 = vld [vmem:[%s3 + $0x2d8] sm:$0xff]
      %v485 = vld [vmem:[%s3 + $0x2e0] sm:$0xff]
      %v486 = vld [vmem:[%s3 + $0x2e8] sm:$0xff]
      %v487 = vld [vmem:[%s3 + $0x2f0] sm:$0xff]
      %v488 = vld [vmem:[%s3 + $0x2f8] sm:$0xff]
      %v489 = vld [vmem:[%s3 + $0x300] sm:$0xff]
      %v490 = vld [vmem:[%s3 + $0x308] sm:$0xff]
      %v491 = vld [vmem:[%s3 + $0x310] sm:$0xff]
      %v492 = vld [vmem:[%s3 + $0x318] sm:$0xff]
      %v493 = vld [vmem:[%s3 + $0x320] sm:$0xff]
      %v494 = vld [vmem:[%s3 + $0x328] sm:$0xff]
      %v495 = vld [vmem:[%s3 + $0x330] sm:$0xff]
      %v496 = vld [vmem:[%s3 + $0x338] sm:$0xff]
      %v497 = vld [vmem:[%s3 + $0x340] sm:$0xff]
      %v498 = vld [vmem:[%s3 + $0x348] sm:$0xff]
      %v499 = vld [vmem:[%s3 + $0x350] sm:$0xff]
      %v500 = vld [vmem:[%s3 + $0x358] sm:$0xff]
      %v501 = vld [vmem:[%s3 + $0x360] sm:$0xff]
      %v502 = vld [vmem:[%s3 + $0x368] sm:$0xff]
      %v503 = vld [vmem:[%s3 + $0x370] sm:$0xff]
      %v504 = vld [vmem:[%s3 + $0x378] sm:$0xff]
      %v505 = vld [vmem:[%s3 + $0x380] sm:$0xff]
      %v506 = vld [vmem:[%s3 + $0x388] sm:$0xff]
      %v507 = vld [vmem:[%s3 + $0x390] sm:$0xff]
      %v508 = vld [vmem:[%s3 + $0x398] sm:$0xff]
      %v509 = vld [vmem:[%s3 + $0x3a0] sm:$0xff]
      %v510 = vld [vmem:[%s3 + $0x3a8] sm:$0xff]
      %v511 = vld [vmem:[%s3 + $0x3b0] sm:$0xff]
      %v512 = vld [vmem:[%s3 + $0x3b8] sm:$0xff]
      %v513 = vld [vmem:[%s3 + $0x3c0] sm:$0xff]
      %v514 = vld [vmem:[%s3 + $0x3c8] sm:$0xff]
      %v515 = vld [vmem:[%s3 + $0x3d0] sm:$0xff]
      %v516 = vld [vmem:[%s3 + $0x3d8] sm:$0xff]
      %v517 = vld [vmem:[%s3 + $0x3e0] sm:$0xff]
      %v518 = vld [vmem:[%s3 + $0x3e8] sm:$0xff]
      %v519 = vld [vmem:[%s3 + $0x3f0] sm:$0xff]
      %v520 = vld [vmem:[%s3 + $0x3f8] sm:$0xff]
      %v521 = vld [vmem:[%s3 + $0x400] sm:$0xff]
      %v522 = vld [vmem:[%s3 + $0x408] sm:$0xff]
      %v523 = vld [vmem:[%s3 + $0x410] sm:$0xff]
      %v524 = vld [vmem:[%s3 + $0x418] sm:$0xff]
      %v525 = vld [vmem:[%s3 + $0x420] sm:$0xff]
      %v526 = vld [vmem:[%s3 + $0x428] sm:$0xff]
      %v527 = vld [vmem:[%s3 + $0x430] sm:$0xff]
      %v528 = vld [vmem:[%s3 + $0x438] sm:$0xff]
      %v529 = vld [vmem:[%s3 + $0x440] sm:$0xff]
      %v530 = vld [vmem:[%s3 + $0x448] sm:$0xff]
      %v531 = vld [vmem:[%s3 + $0x450] sm:$0xff]
      %v532 = vld [vmem:[%s3 + $0x458] sm:$0xff]
      %v533 = vld [vmem:[%s3 + $0x460] sm:$0xff]
      %v534 = vld [vmem:[%s3 + $0x468] sm:$0xff]
      %v535 = vld [vmem:[%s3 + $0x470] sm:$0xff]
      %v536 = vld [vmem:[%s3 + $0x478] sm:$0xff]
      %v537 = vld [vmem:[%s3 + $0x480] sm:$0xff]
      %v538 = vld [vmem:[%s3 + $0x488] sm:$0xff]
      %v539 = vld [vmem:[%s3 + $0x490] sm:$0xff]
      %v540 = vld [vmem:[%s3 + $0x498] sm:$0xff]
      %v541 = vld [vmem:[%s3 + $0x4a0] sm:$0xff]
      %v542 = vld [vmem:[%s3 + $0x4a8] sm:$0xff]
      %v543 = vld [vmem:[%s3 + $0x4b0] sm:$0xff]
      %v544 = vld [vmem:[%s3 + $0x4b8] sm:$0xff]
      %v545 = vld [vmem:[%s3 + $0x4c0] sm:$0xff]
      %v546 = vld [vmem:[%s3 + $0x4c8] sm:$0xff]
      %v547 = vld [vmem:[%s3 + $0x4d0] sm:$0xff]
      %v548 = vld [vmem:[%s3 + $0x4d8] sm:$0xff]
      %v549 = vld [vmem:[%s3 + $0x4e0] sm:$0xff]
      %v550 = vld [vmem:[%s3 + $0x4e8] sm:$0xff]
      %v551 = vld [vmem:[%s3 + $0x4f0] sm:$0xff]
      %v552 = vld [vmem:[%s3 + $0x4f8] sm:$0xff]
      %v553 = vld [vmem:[%s3 + $0x500] sm:$0xff]
      %v554 = vld [vmem:[%s3 + $0x508] sm:$0xff]
      %v555 = vld [vmem:[%s3 + $0x510] sm:$0xff]
      %v556 = vld [vmem:[%s3 + $0x518] sm:$0xff]
      %v557 = vld [vmem:[%s3 + $0x520] sm:$0xff]
      %v558 = vld [vmem:[%s3 + $0x528] sm:$0xff]
      %v559 = vld [vmem:[%s3 + $0x530] sm:$0xff]
      %v560 = vld [vmem:[%s3 + $0x538] sm:$0xff]
      %v561 = vld [vmem:[%s3 + $0x540] sm:$0xff]
      %v562 = vld [vmem:[%s3 + $0x548] sm:$0xff]
      %v563 = vld [vmem:[%s3 + $0x550] sm:$0xff]
      %v564 = vld [vmem:[%s3 + $0x558] sm:$0xff]
      %v565 = vld [vmem:[%s3 + $0x560] sm:$0xff]
      %v566 = vld [vmem:[%s3 + $0x568] sm:$0xff]
      %v567 = vld [vmem:[%s3 + $0x570] sm:$0xff]
      %v568 = vld [vmem:[%s3 + $0x578] sm:$0xff]
      %v569 = vld [vmem:[%s3 + $0x580] sm:$0xff]
      %v570 = vld [vmem:[%s3 + $0x588] sm:$0xff]
      %v571 = vld [vmem:[%s3 + $0x590] sm:$0xff]
      %v572 = vld [vmem:[%s3 + $0x598] sm:$0xff]
      %v573 = vld [vmem:[%s3 + $0x5a0] sm:$0xff]
      %v574 = vld [vmem:[%s3 + $0x5a8] sm:$0xff]
      %v575 = vld [vmem:[%s3 + $0x5b0] sm:$0xff]
      %v576 = vld [vmem:[%s3 + $0x5b8] sm:$0xff]
      %v577 = vld [vmem:[%s3 + $0x5c0] sm:$0xff]
      %v578 = vld [vmem:[%s3 + $0x5c8] sm:$0xff]
      %v579 = vld [vmem:[%s3 + $0x5d0] sm:$0xff]
      %v580 = vld [vmem:[%s3 + $0x5d8] sm:$0xff]
      %v581 = vld [vmem:[%s3 + $0x5e0] sm:$0xff]
      %v582 = vld [vmem:[%s3 + $0x5e8] sm:$0xff]
      %v583 = vld [vmem:[%s3 + $0x5f0] sm:$0xff]
      %v584 = vld [vmem:[%s3 + $0x5f8] sm:$0xff]
      %v585 = vld [vmem:[%s3 + $0x600] sm:$0xff]
      %v586 = vld [vmem:[%s3 + $0x608] sm:$0xff]
      %v587 = vld [vmem:[%s3 + $0x610] sm:$0xff]
      %v588 = vld [vmem:[%s3 + $0x618] sm:$0xff]
      %v589 = vld [vmem:[%s3 + $0x620] sm:$0xff]
      %v590 = vld [vmem:[%s3 + $0x628] sm:$0xff]
      %v591 = vld [vmem:[%s3 + $0x630] sm:$0xff]
      %v592 = vld [vmem:[%s3 + $0x638] sm:$0xff]
      %v593 = vld [vmem:[%s3 + $0x640] sm:$0xff]
      %v594 = vld [vmem:[%s3 + $0x648] sm:$0xff]
      %v595 = vld [vmem:[%s3 + $0x650] sm:$0xff]
      %v596 = vld [vmem:[%s3 + $0x658] sm:$0xff]
      %v597 = vld [vmem:[%s3 + $0x660] sm:$0xff]
      %v598 = vld [vmem:[%s3 + $0x668] sm:$0xff]
      %v599 = vld [vmem:[%s3 + $0x670] sm:$0xff]
      %v600 = vld [vmem:[%s3 + $0x678] sm:$0xff]
      %v601 = vld [vmem:[%s3 + $0x680] sm:$0xff]
      %v602 = vld [vmem:[%s3 + $0x688] sm:$0xff]
      %v603 = vld [vmem:[%s3 + $0x690] sm:$0xff]
      %v604 = vld [vmem:[%s3 + $0x698] sm:$0xff]
      %v605 = vld [vmem:[%s3 + $0x6a0] sm:$0xff]
      %v606 = vld [vmem:[%s3 + $0x6a8] sm:$0xff]
      %v607 = vld [vmem:[%s3 + $0x6b0] sm:$0xff]
      %v608 = vld [vmem:[%s3 + $0x6b8] sm:$0xff]
      %v609 = vld [vmem:[%s3 + $0x6c0] sm:$0xff]
      %v610 = vld [vmem:[%s3 + $0x6c8] sm:$0xff]
      %v611 = vld [vmem:[%s3 + $0x6d0] sm:$0xff]
      %v612 = vld [vmem:[%s3 + $0x6d8] sm:$0xff]
      %v613 = vld [vmem:[%s3 + $0x6e0] sm:$0xff]
      %v614 = vld [vmem:[%s3 + $0x6e8] sm:$0xff]
      %v615 = vld [vmem:[%s3 + $0x6f0] sm:$0xff]
      %v616 = vld [vmem:[%s3 + $0x6f8] sm:$0xff]
      %v617 = vld [vmem:[%s3 + $0x700] sm:$0xff]
      %v618 = vld [vmem:[%s3 + $0x708] sm:$0xff]
      %v619 = vld [vmem:[%s3 + $0x710] sm:$0xff]
      %v620 = vld [vmem:[%s3 + $0x718] sm:$0xff]
      %v621 = vld [vmem:[%s3 + $0x720] sm:$0xff]
      %v622 = vld [vmem:[%s3 + $0x728] sm:$0xff]
      %v623 = vld [vmem:[%s3 + $0x730] sm:$0xff]
      %v624 = vld [vmem:[%s3 + $0x738] sm:$0xff]
      %v625 = vld [vmem:[%s3 + $0x740] sm:$0xff]
      %v626 = vld [vmem:[%s3 + $0x748] sm:$0xff]
      %v627 = vld [vmem:[%s3 + $0x750] sm:$0xff]
      %v628 = vld [vmem:[%s3 + $0x758] sm:$0xff]
      %v629 = vld [vmem:[%s3 + $0x760] sm:$0xff]
      %v630 = vld [vmem:[%s3 + $0x768] sm:$0xff]
      %v631 = vld [vmem:[%s3 + $0x770] sm:$0xff]
      %v632 = vld [vmem:[%s3 + $0x778] sm:$0xff]
      %v633 = vld [vmem:[%s3 + $0x780] sm:$0xff]
      %v634 = vld [vmem:[%s3 + $0x788] sm:$0xff]
      %v635 = vld [vmem:[%s3 + $0x790] sm:$0xff]
      %v636 = vld [vmem:[%s3 + $0x798] sm:$0xff]
      %v637 = vld [vmem:[%s3 + $0x7a0] sm:$0xff]
      %v638 = vld [vmem:[%s3 + $0x7a8] sm:$0xff]
      %v639 = vld [vmem:[%s3 + $0x7b0] sm:$0xff]
      %v640 = vld [vmem:[%s3 + $0x7b8] sm:$0xff]
      %v641 = vld [vmem:[%s3 + $0x7c0] sm:$0xff]
      %v642 = vld [vmem:[%s3 + $0x7c8] sm:$0xff]
      %v643 = vld [vmem:[%s3 + $0x7d0] sm:$0xff]
      %v644 = vld [vmem:[%s3 + $0x7d8] sm:$0xff]
      %v645 = vld [vmem:[%s3 + $0x7e0] sm:$0xff]
      %v646 = vld [vmem:[%s3 + $0x7e8] sm:$0xff]
      %v647 = vld [vmem:[%s3 + $0x7f0] sm:$0xff]
      %v648 = vld [vmem:[%s3 + $0x7f8] sm:$0xff]
      %v649 = vld [vmem:[%s3 + $0x800] sm:$0xff]
      %v650 = vld [vmem:[%s3 + $0x808] sm:$0xff]
      %v651 = vld [vmem:[%s3 + $0x810] sm:$0xff]
      %v652 = vld [vmem:[%s3 + $0x818] sm:$0xff]
      %v653 = vld [vmem:[%s3 + $0x820] sm:$0xff]
      %v654 = vld [vmem:[%s3 + $0x828] sm:$0xff]
      %v655 = vld [vmem:[%s3 + $0x830] sm:$0xff]
      %v656 = vld [vmem:[%s3 + $0x838] sm:$0xff]
      %v657 = vld [vmem:[%s3 + $0x840] sm:$0xff]
      %v658 = vld [vmem:[%s3 + $0x848] sm:$0xff]
      %v659 = vld [vmem:[%s3 + $0x850] sm:$0xff]
      %v660 = vld [vmem:[%s3 + $0x858] sm:$0xff]
      %v661 = vld [vmem:[%s3 + $0x860] sm:$0xff]
      %v662 = vld [vmem:[%s3 + $0x868] sm:$0xff]
      %v663 = vld [vmem:[%s3 + $0x870] sm:$0xff]
      %v664 = vld [vmem:[%s3 + $0x878] sm:$0xff]
      %v665 = vld [vmem:[%s3 + $0x880] sm:$0xff]
      %v666 = vld [vmem:[%s3 + $0x888] sm:$0xff]
      %v667 = vld [vmem:[%s3 + $0x890] sm:$0xff]
      %v668 = vld [vmem:[%s3 + $0x898] sm:$0xff]
      %v669 = vld [vmem:[%s3 + $0x8a0] sm:$0xff]
      %v670 = vld [vmem:[%s3 + $0x8a8] sm:$0xff]
      %v671 = vld [vmem:[%s3 + $0x8b0] sm:$0xff]
      %v672 = vld [vmem:[%s3 + $0x8b8] sm:$0xff]
      %v673 = vld [vmem:[%s3 + $0x8c0] sm:$0xff]
      %v674 = vld [vmem:[%s3 + $0x8c8] sm:$0xff]
      %v675 = vld [vmem:[%s3 + $0x8d0] sm:$0xff]
      %v676 = vld [vmem:[%s3 + $0x8d8] sm:$0xff]
      %v677 = vld [vmem:[%s3 + $0x8e0] sm:$0xff]
      %v678 = vld [vmem:[%s3 + $0x8e8] sm:$0xff]
      %v679 = vld [vmem:[%s3 + $0x8f0] sm:$0xff]
      %v680 = vld [vmem:[%s3 + $0x8f8] sm:$0xff]
      %v681 = vld [vmem:[%s3 + $0x900] sm:$0xff]
      %v682 = vld [vmem:[%s3 + $0x908] sm:$0xff]
      %v683 = vld [vmem:[%s3 + $0x910] sm:$0xff]
      %v684 = vld [vmem:[%s3 + $0x918] sm:$0xff]
      %v685 = vld [vmem:[%s3 + $0x920] sm:$0xff]
      %v686 = vld [vmem:[%s3 + $0x928] sm:$0xff]
      %v687 = vld [vmem:[%s3 + $0x930] sm:$0xff]
      %v688 = vld [vmem:[%s3 + $0x938] sm:$0xff]
      %v689 = vld [vmem:[%s3 + $0x940] sm:$0xff]
      %v690 = vld [vmem:[%s3 + $0x948] sm:$0xff]
      %v691 = vld [vmem:[%s3 + $0x950] sm:$0xff]
      %v692 = vld [vmem:[%s3 + $0x958] sm:$0xff]
      %v693 = vld [vmem:[%s3 + $0x960] sm:$0xff]
      %v694 = vld [vmem:[%s3 + $0x968] sm:$0xff]
      %v695 = vld [vmem:[%s3 + $0x970] sm:$0xff]
      %v696 = vld [vmem:[%s3 + $0x978] sm:$0xff]
      %v697 = vld [vmem:[%s3 + $0x980] sm:$0xff]
      %v698 = vld [vmem:[%s3 + $0x988] sm:$0xff]
      %v699 = vld [vmem:[%s3 + $0x990] sm:$0xff]
      %v700 = vld [vmem:[%s3 + $0x998] sm:$0xff]
      %v701 = vld [vmem:[%s3 + $0x9a0] sm:$0xff]
      %v702 = vld [vmem:[%s3 + $0x9a8] sm:$0xff]
      %v703 = vld [vmem:[%s3 + $0x9b0] sm:$0xff]
      %v704 = vld [vmem:[%s3 + $0x9b8] sm:$0xff]
      %v705 = vld [vmem:[%s3 + $0x9c0] sm:$0xff]
      %v706 = vld [vmem:[%s3 + $0x9c8] sm:$0xff]
      %v707 = vld [vmem:[%s3 + $0x9d0] sm:$0xff]
      %v708 = vld [vmem:[%s3 + $0x9d8] sm:$0xff]
      %v709 = vld [vmem:[%s3 + $0x9e0] sm:$0xff]
      %v710 = vld [vmem:[%s3 + $0x9e8] sm:$0xff]
      %v711 = vld [vmem:[%s3 + $0x9f0] sm:$0xff]
      %v712 = vld [vmem:[%s3 + $0x9f8] sm:$0xff]
      %v713 = vld [vmem:[%s3 + $0xa00] sm:$0xff]
      %v714 = vld [vmem:[%s3 + $0xa08] sm:$0xff]
      %v715 = vld [vmem:[%s3 + $0xa10] sm:$0xff]
      %v716 = vld [vmem:[%s3 + $0xa18] sm:$0xff]
      %v717 = vld [vmem:[%s3 + $0xa20] sm:$0xff]
      %v718 = vld [vmem:[%s3 + $0xa28] sm:$0xff]
      %v719 = vld [vmem:[%s3 + $0xa30] sm:$0xff]
      %v720 = vld [vmem:[%s3 + $0xa38] sm:$0xff]
      %v721 = vld [vmem:[%s3 + $0xa40] sm:$0xff]
      %v722 = vld [vmem:[%s3 + $0xa48] sm:$0xff]
      %v723 = vld [vmem:[%s3 + $0xa50] sm:$0xff]
      %v724 = vld [vmem:[%s3 + $0xa58] sm:$0xff]
      %v725 = vld [vmem:[%s3 + $0xa60] sm:$0xff]
      %v726 = vld [vmem:[%s3 + $0xa68] sm:$0xff]
      %v727 = vld [vmem:[%s3 + $0xa70] sm:$0xff]
      %v728 = vld [vmem:[%s3 + $0xa78] sm:$0xff]
      %v729 = vld [vmem:[%s3 + $0xa80] sm:$0xff]
      %v730 = vld [vmem:[%s3 + $0xa88] sm:$0xff]
      %v731 = vld [vmem:[%s3 + $0xa90] sm:$0xff]
      %v732 = vld [vmem:[%s3 + $0xa98] sm:$0xff]
      %v733 = vld [vmem:[%s3 + $0xaa0] sm:$0xff]
      %v734 = vld [vmem:[%s3 + $0xaa8] sm:$0xff]
      %v735 = vld [vmem:[%s3 + $0xab0] sm:$0xff]
      %v736 = vld [vmem:[%s3 + $0xab8] sm:$0xff]
      %v737 = vld [vmem:[%s3 + $0xac0] sm:$0xff]
      %v738 = vld [vmem:[%s3 + $0xac8] sm:$0xff]
      %v739 = vld [vmem:[%s3 + $0xad0] sm:$0xff]
      %v740 = vld [vmem:[%s3 + $0xad8] sm:$0xff]
      %v741 = vld [vmem:[%s3 + $0xae0] sm:$0xff]
      %v742 = vld [vmem:[%s3 + $0xae8] sm:$0xff]
      %v743 = vld [vmem:[%s3 + $0xaf0] sm:$0xff]
      %v744 = vld [vmem:[%s3 + $0xaf8] sm:$0xff]
      %v745 = vld [vmem:[%s3 + $0xb00] sm:$0xff]
      %v746 = vld [vmem:[%s3 + $0xb08] sm:$0xff]
      %v747 = vld [vmem:[%s3 + $0xb10] sm:$0xff]
      %v748 = vld [vmem:[%s3 + $0xb18] sm:$0xff]
      %v749 = vld [vmem:[%s3 + $0xb20] sm:$0xff]
      %v750 = vld [vmem:[%s3 + $0xb28] sm:$0xff]
      %v751 = vld [vmem:[%s3 + $0xb30] sm:$0xff]
      %v752 = vld [vmem:[%s3 + $0xb38] sm:$0xff]
      %v753 = vld [vmem:[%s3 + $0xb40] sm:$0xff]
      %v754 = vld [vmem:[%s3 + $0xb48] sm:$0xff]
      %v755 = vld [vmem:[%s3 + $0xb50] sm:$0xff]
      %v756 = vld [vmem:[%s3 + $0xb58] sm:$0xff]
      %v757 = vld [vmem:[%s3 + $0xb60] sm:$0xff]
      %v758 = vld [vmem:[%s3 + $0xb68] sm:$0xff]
      %v759 = vld [vmem:[%s3 + $0xb70] sm:$0xff]
      %v760 = vld [vmem:[%s3 + $0xb78] sm:$0xff]
      %v761 = vld [vmem:[%s3 + $0xb80] sm:$0xff]
      %v762 = vld [vmem:[%s3 + $0xb88] sm:$0xff]
      %v763 = vld [vmem:[%s3 + $0xb90] sm:$0xff]
      %v764 = vld [vmem:[%s3 + $0xb98] sm:$0xff]
      %v765 = vld [vmem:[%s3 + $0xba0] sm:$0xff]
      %v766 = vld [vmem:[%s3 + $0xba8] sm:$0xff]
      %v767 = vld [vmem:[%s3 + $0xbb0] sm:$0xff]
      %v768 = vld [vmem:[%s3 + $0xbb8] sm:$0xff]
      %v769 = vld [vmem:[%s3 + $0xbc0] sm:$0xff]
      %v770 = vld [vmem:[%s3 + $0xbc8] sm:$0xff]
      %v771 = vld [vmem:[%s3 + $0xbd0] sm:$0xff]
      %v772 = vld [vmem:[%s3 + $0xbd8] sm:$0xff]
      %v773 = vld [vmem:[%s3 + $0xbe0] sm:$0xff]
      %v774 = vld [vmem:[%s3 + $0xbe8] sm:$0xff]
      %v775 = vld [vmem:[%s3 + $0xbf0] sm:$0xff]
      %v776 = vld [vmem:[%s3 + $0xbf8] sm:$0xff]
      %v777 = vld [vmem:[%s3 + $0xc00] sm:$0xff]
      %v778 = vld [vmem:[%s3 + $0xc08] sm:$0xff]
      %v779 = vld [vmem:[%s3 + $0xc10] sm:$0xff]
      %v780 = vld [vmem:[%s3 + $0xc18] sm:$0xff]
      %v781 = vld [vmem:[%s3 + $0xc20] sm:$0xff]
      %v782 = vld [vmem:[%s3 + $0xc28] sm:$0xff]
      %v783 = vld [vmem:[%s3 + $0xc30] sm:$0xff]
      %v784 = vld [vmem:[%s3 + $0xc38] sm:$0xff]
      %v785 = vld [vmem:[%s3 + $0xc40] sm:$0xff]
      %v786 = vld [vmem:[%s3 + $0xc48] sm:$0xff]
      %v787 = vld [vmem:[%s3 + $0xc50] sm:$0xff]
      %v788 = vld [vmem:[%s3 + $0xc58] sm:$0xff]
      %v789 = vld [vmem:[%s3 + $0xc60] sm:$0xff]
      %v790 = vld [vmem:[%s3 + $0xc68] sm:$0xff]
      %v791 = vld [vmem:[%s3 + $0xc70] sm:$0xff]
      %v792 = vld [vmem:[%s3 + $0xc78] sm:$0xff]
      %v793 = vld [vmem:[%s3 + $0xc80] sm:$0xff]
      %v794 = vld [vmem:[%s3 + $0xc88] sm:$0xff]
      %v795 = vld [vmem:[%s3 + $0xc90] sm:$0xff]
      %v796 = vld [vmem:[%s3 + $0xc98] sm:$0xff]
      %v797 = vld [vmem:[%s3 + $0xca0] sm:$0xff]
      %v798 = vld [vmem:[%s3 + $0xca8] sm:$0xff]
      %v799 = vld [vmem:[%s3 + $0xcb0] sm:$0xff]
      %v800 = vld [vmem:[%s3 + $0xcb8] sm:$0xff]
      %v801 = vld [vmem:[%s3 + $0xcc0] sm:$0xff]
      %v802 = vld [vmem:[%s3 + $0xcc8] sm:$0xff]
      %v803 = vld [vmem:[%s3 + $0xcd0] sm:$0xff]
      %v804 = vld [vmem:[%s3 + $0xcd8] sm:$0xff]
      %v805 = vld [vmem:[%s3 + $0xce0] sm:$0xff]
      %v806 = vld [vmem:[%s3 + $0xce8] sm:$0xff]
      %v807 = vld [vmem:[%s3 + $0xcf0] sm:$0xff]
      %v808 = vld [vmem:[%s3 + $0xcf8] sm:$0xff]
      %v809 = vld [vmem:[%s3 + $0xd00] sm:$0xff]
      %v810 = vld [vmem:[%s3 + $0xd08] sm:$0xff]
      %v811 = vld [vmem:[%s3 + $0xd10] sm:$0xff]
      %v812 = vld [vmem:[%s3 + $0xd18] sm:$0xff]
      %v813 = vld [vmem:[%s3 + $0xd20] sm:$0xff]
      %v814 = vld [vmem:[%s3 + $0xd28] sm:$0xff]
      %v815 = vld [vmem:[%s3 + $0xd30] sm:$0xff]
      %v816 = vld [vmem:[%s3 + $0xd38] sm:$0xff]
      %v817 = vld [vmem:[%s3 + $0xd40] sm:$0xff]
      %v818 = vld [vmem:[%s3 + $0xd48] sm:$0xff]
      %v819 = vld [vmem:[%s3 + $0xd50] sm:$0xff]
      %v820 = vld [vmem:[%s3 + $0xd58] sm:$0xff]
      %v821 = vld [vmem:[%s3 + $0xd60] sm:$0xff]
      %v822 = vld [vmem:[%s3 + $0xd68] sm:$0xff]
      %v823 = vld [vmem:[%s3 + $0xd70] sm:$0xff]
      %v824 = vld [vmem:[%s3 + $0xd78] sm:$0xff]
      %v825 = vld [vmem:[%s3 + $0xd80] sm:$0xff]
      %v826 = vld [vmem:[%s3 + $0xd88] sm:$0xff]
      %v827 = vld [vmem:[%s3 + $0xd90] sm:$0xff]
      %v828 = vld [vmem:[%s3 + $0xd98] sm:$0xff]
      %v829 = vld [vmem:[%s3 + $0xda0] sm:$0xff]
      %v830 = vld [vmem:[%s3 + $0xda8] sm:$0xff]
      %v831 = vld [vmem:[%s3 + $0xdb0] sm:$0xff]
      %v832 = vld [vmem:[%s3 + $0xdb8] sm:$0xff]
      %v833 = vld [vmem:[%s3 + $0xdc0] sm:$0xff]
      %v834 = vld [vmem:[%s3 + $0xdc8] sm:$0xff]
      %v835 = vld [vmem:[%s3 + $0xdd0] sm:$0xff]
      %v836 = vld [vmem:[%s3 + $0xdd8] sm:$0xff]
      %v837 = vld [vmem:[%s3 + $0xde0] sm:$0xff]
      %v838 = vld [vmem:[%s3 + $0xde8] sm:$0xff]
      %v839 = vld [vmem:[%s3 + $0xdf0] sm:$0xff]
      %v840 = vld [vmem:[%s3 + $0xdf8] sm:$0xff]
      %v841 = vld [vmem:[%s3 + $0xe00] sm:$0xff]
      %v842 = vld [vmem:[%s3 + $0xe08] sm:$0xff]
      %v843 = vld [vmem:[%s3 + $0xe10] sm:$0xff]
      %v844 = vld [vmem:[%s3 + $0xe18] sm:$0xff]
      %v845 = vld [vmem:[%s3 + $0xe20] sm:$0xff]
      %v846 = vld [vmem:[%s3 + $0xe28] sm:$0xff]
      %v847 = vld [vmem:[%s3 + $0xe30] sm:$0xff]
      %v848 = vld [vmem:[%s3 + $0xe38] sm:$0xff]
      %v849 = vld [vmem:[%s3 + $0xe40] sm:$0xff]
      %v850 = vld [vmem:[%s3 + $0xe48] sm:$0xff]
      %v851 = vld [vmem:[%s3 + $0xe50] sm:$0xff]
      %v852 = vld [vmem:[%s3 + $0xe58] sm:$0xff]
      %v853 = vld [vmem:[%s3 + $0xe60] sm:$0xff]
      %v854 = vld [vmem:[%s3 + $0xe68] sm:$0xff]
      %v855 = vld [vmem:[%s3 + $0xe70] sm:$0xff]
      %v856 = vld [vmem:[%s3 + $0xe78] sm:$0xff]
      %v857 = vld [vmem:[%s3 + $0xe80] sm:$0xff]
      %v858 = vld [vmem:[%s3 + $0xe88] sm:$0xff]
      %v859 = vld [vmem:[%s3 + $0xe90] sm:$0xff]
      %v860 = vld [vmem:[%s3 + $0xe98] sm:$0xff]
      %v861 = vld [vmem:[%s3 + $0xea0] sm:$0xff]
      %v862 = vld [vmem:[%s3 + $0xea8] sm:$0xff]
      %v863 = vld [vmem:[%s3 + $0xeb0] sm:$0xff]
      %v864 = vld [vmem:[%s3 + $0xeb8] sm:$0xff]
      %v865 = vld [vmem:[%s3 + $0xec0] sm:$0xff]
      %v866 = vld [vmem:[%s3 + $0xec8] sm:$0xff]
      %v867 = vld [vmem:[%s3 + $0xed0] sm:$0xff]
      %v868 = vld [vmem:[%s3 + $0xed8] sm:$0xff]
      %v869 = vld [vmem:[%s3 + $0xee0] sm:$0xff]
      %v870 = vld [vmem:[%s3 + $0xee8] sm:$0xff]
      %v871 = vld [vmem:[%s3 + $0xef0] sm:$0xff]
      %v872 = vld [vmem:[%s3 + $0xef8] sm:$0xff]
      %v873 = vld [vmem:[%s3 + $0xf00] sm:$0xff]
      %v874 = vld [vmem:[%s3 + $0xf08] sm:$0xff]
      %v875 = vld [vmem:[%s3 + $0xf10] sm:$0xff]
      %v876 = vld [vmem:[%s3 + $0xf18] sm:$0xff]
      %v877 = vld [vmem:[%s3 + $0xf20] sm:$0xff]
      %v878 = vld [vmem:[%s3 + $0xf28] sm:$0xff]
      %v879 = vld [vmem:[%s3 + $0xf30] sm:$0xff]
      %v880 = vld [vmem:[%s3 + $0xf38] sm:$0xff]
      %v881 = vld [vmem:[%s3 + $0xf40] sm:$0xff]
      %v882 = vld [vmem:[%s3 + $0xf48] sm:$0xff]
      %v883 = vld [vmem:[%s3 + $0xf50] sm:$0xff]
      %v884 = vld [vmem:[%s3 + $0xf58] sm:$0xff]
      %v885 = vld [vmem:[%s3 + $0xf60] sm:$0xff]
      %v886 = vld [vmem:[%s3 + $0xf68] sm:$0xff]
      %v887 = vld [vmem:[%s3 + $0xf70] sm:$0xff]
      %v888 = vld [vmem:[%s3 + $0xf78] sm:$0xff]
      %v889 = vld [vmem:[%s3 + $0xf80] sm:$0xff]
      %v890 = vld [vmem:[%s3 + $0xf88] sm:$0xff]
      %v891 = vld [vmem:[%s3 + $0xf90] sm:$0xff]
      %v892 = vld [vmem:[%s3 + $0xf98] sm:$0xff]
      %v893 = vld [vmem:[%s3 + $0xfa0] sm:$0xff]
      %v894 = vld [vmem:[%s3 + $0xfa8] sm:$0xff]
      %v895 = vld [vmem:[%s3 + $0xfb0] sm:$0xff]
      %v896 = vld [vmem:[%s3 + $0xfb8] sm:$0xff]
      %v897 = vld [vmem:[%s3 + $0xfc0] sm:$0xff]
      %v898 = vld [vmem:[%s3 + $0xfc8] sm:$0xff]
      %v899 = vld [vmem:[%s3 + $0xfd0] sm:$0xff]
      %v900 = vld [vmem:[%s3 + $0xfd8] sm:$0xff]
      %v901 = vld [vmem:[%s3 + $0xfe0] sm:$0xff]
      %v902 = vld [vmem:[%s3 + $0xfe8] sm:$0xff]
      %v903 = vld [vmem:[%s3 + $0xff0] sm:$0xff]
      %v904 = vld [vmem:[%s3 + $0xff8] sm:$0xff]
      %v905 = vld [vmem:[%s3 + $0x1000] sm:$0xff]
      %v906 = vld [vmem:[%s3 + $0x1008] sm:$0xff]
      %v907 = vld [vmem:[%s3 + $0x1010] sm:$0xff]
      %v908 = vld [vmem:[%s3 + $0x1018] sm:$0xff]
      %v909 = vld [vmem:[%s3 + $0x1020] sm:$0xff]
      %v910 = vld [vmem:[%s3 + $0x1028] sm:$0xff]
      %v911 = vld [vmem:[%s3 + $0x1030] sm:$0xff]
      %v912 = vld [vmem:[%s3 + $0x1038] sm:$0xff]
      %v913 = vld [vmem:[%s3 + $0x1040] sm:$0xff]
      %v914 = vld [vmem:[%s3 + $0x1048] sm:$0xff]
      %v915 = vld [vmem:[%s3 + $0x1050] sm:$0xff]
      %v916 = vld [vmem:[%s3 + $0x1058] sm:$0xff]
      %v917 = vld [vmem:[%s3 + $0x1060] sm:$0xff]
      %v918 = vld [vmem:[%s3 + $0x1068] sm:$0xff]
      %v919 = vld [vmem:[%s3 + $0x1070] sm:$0xff]
      %v920 = vld [vmem:[%s3 + $0x1078] sm:$0xff]
      %v921 = vld [vmem:[%s3 + $0x1080] sm:$0xff]
      %v922 = vld [vmem:[%s3 + $0x1088] sm:$0xff]
      %v923 = vld [vmem:[%s3 + $0x1090] sm:$0xff]
      %v924 = vld [vmem:[%s3 + $0x1098] sm:$0xff]
      %v925 = vld [vmem:[%s3 + $0x10a0] sm:$0xff]
      %v926 = vld [vmem:[%s3 + $0x10a8] sm:$0xff]
      %v927 = vld [vmem:[%s3 + $0x10b0] sm:$0xff]
      %v928 = vld [vmem:[%s3 + $0x10b8] sm:$0xff]
      %v929 = vld [vmem:[%s3 + $0x10c0] sm:$0xff]
      %v930 = vld [vmem:[%s3 + $0x10c8] sm:$0xff]
      %v931 = vld [vmem:[%s3 + $0x10d0] sm:$0xff]
      %v932 = vld [vmem:[%s3 + $0x10d8] sm:$0xff]
      %v933 = vld [vmem:[%s3 + $0x10e0] sm:$0xff]
      %v934 = vld [vmem:[%s3 + $0x10e8] sm:$0xff]
      %v935 = vld [vmem:[%s3 + $0x10f0] sm:$0xff]
      %v936 = vld [vmem:[%s3 + $0x10f8] sm:$0xff]
      %v937 = vld [vmem:[%s3 + $0x1100] sm:$0xff]
      %v938 = vld [vmem:[%s3 + $0x1108] sm:$0xff]
      %v939 = vld [vmem:[%s3 + $0x1110] sm:$0xff]
      %v940 = vld [vmem:[%s3 + $0x1118] sm:$0xff]
      %v941 = vld [vmem:[%s3 + $0x1120] sm:$0xff]
      %v942 = vld [vmem:[%s3 + $0x1128] sm:$0xff]
      %v943 = vld [vmem:[%s3 + $0x1130] sm:$0xff]
      %v944 = vld [vmem:[%s3 + $0x1138] sm:$0xff]
      %v945 = vld [vmem:[%s3 + $0x1140] sm:$0xff]
      %v946 = vld [vmem:[%s3 + $0x1148] sm:$0xff]
      %v947 = vld [vmem:[%s3 + $0x1150] sm:$0xff]
      %v948 = vld [vmem:[%s3 + $0x1158] sm:$0xff]
      %v949 = vld [vmem:[%s3 + $0x1160] sm:$0xff]
      %v950 = vld [vmem:[%s3 + $0x1168] sm:$0xff]
      %v951 = vld [vmem:[%s3 + $0x1170] sm:$0xff]
      %v952 = vld [vmem:[%s3 + $0x1178] sm:$0xff]
      %v953 = vld [vmem:[%s3 + $0x1180] sm:$0xff]
      %v954 = vld [vmem:[%s3 + $0x1188] sm:$0xff]
      %v955 = vld [vmem:[%s3 + $0x1190] sm:$0xff]
      %v956 = vld [vmem:[%s3 + $0x1198] sm:$0xff]
      %v957 = vld [vmem:[%s3 + $0x11a0] sm:$0xff]
      %v958 = vld [vmem:[%s3 + $0x11a8] sm:$0xff]
      %v959 = vld [vmem:[%s3 + $0x11b0] sm:$0xff]
      %v960 = vld [vmem:[%s3 + $0x11b8] sm:$0xff]
      %v961 = vld [vmem:[%s3 + $0x11c0] sm:$0xff]
      %v962 = vld [vmem:[%s3 + $0x11c8] sm:$0xff]
      %v963 = vld [vmem:[%s3 + $0x11d0] sm:$0xff]
      %v964 = vld [vmem:[%s3 + $0x11d8] sm:$0xff]
      %v965 = vld [vmem:[%s3 + $0x11e0] sm:$0xff]
      %v966 = vld [vmem:[%s3 + $0x11e8] sm:$0xff]
      %v967 = vld [vmem:[%s3 + $0x11f0] sm:$0xff]
      %v968 = vld [vmem:[%s3 + $0x11f8] sm:$0xff]
      %v969 = vld [vmem:[%s3 + $0x1200] sm:$0xff]
      %v970 = vld [vmem:[%s3 + $0x1208] sm:$0xff]
      %v971 = vld [vmem:[%s3 + $0x1210] sm:$0xff]
      %v972 = vld [vmem:[%s3 + $0x1218] sm:$0xff]
      %v973 = vld [vmem:[%s3 + $0x1220] sm:$0xff]
      %v974 = vld [vmem:[%s3 + $0x1228] sm:$0xff]
      %v975 = vld [vmem:[%s3 + $0x1230] sm:$0xff]
      %v976 = vld [vmem:[%s3 + $0x1238] sm:$0xff]
      %v977 = vld [vmem:[%s3 + $0x1240] sm:$0xff]
      %v978 = vld [vmem:[%s3 + $0x1248] sm:$0xff]
      %v979 = vld [vmem:[%s3 + $0x1250] sm:$0xff]
      %v980 = vld [vmem:[%s3 + $0x1258] sm:$0xff]
      %v981 = vld [vmem:[%s3 + $0x1260] sm:$0xff]
      %v982 = vld [vmem:[%s3 + $0x1268] sm:$0xff]
      %v983 = vld [vmem:[%s3 + $0x1270] sm:$0xff]
      %v984 = vld [vmem:[%s3 + $0x1278] sm:$0xff]
      %v985 = vld [vmem:[%s3 + $0x1280] sm:$0xff]
      %v986 = vld [vmem:[%s3 + $0x1288] sm:$0xff]
      %v987 = vld [vmem:[%s3 + $0x1290] sm:$0xff]
      %v988 = vld [vmem:[%s3 + $0x1298] sm:$0xff]
      %v989 = vld [vmem:[%s3 + $0x12a0] sm:$0xff]
      %v990 = vld [vmem:[%s3 + $0x12a8] sm:$0xff]
      %v991 = vld [vmem:[%s3 + $0x12b0] sm:$0xff]
      %v992 = vld [vmem:[%s3 + $0x12b8] sm:$0xff]
      %v993 = vld [vmem:[%s3 + $0x12c0] sm:$0xff]
      %v994 = vld [vmem:[%s3 + $0x12c8] sm:$0xff]
      %v995 = vld [vmem:[%s3 + $0x12d0] sm:$0xff]
      %v996 = vld [vmem:[%s3 + $0x12d8] sm:$0xff]
      %v997 = vld [vmem:[%s3 + $0x12e0] sm:$0xff]
      %v998 = vld [vmem:[%s3 + $0x12e8] sm:$0xff]
      %v999 = vld [vmem:[%s3 + $0x12f0] sm:$0xff]
      %v1000 = vld [vmem:[%s3 + $0x12f8] sm:$0xff]
      %v1001 = vld [vmem:[%s3 + $0x1300] sm:$0xff]
      %v1002 = vld [vmem:[%s3 + $0x1308] sm:$0xff]
      %v1003 = vld [vmem:[%s3 + $0x1310] sm:$0xff]
      %v1004 = vld [vmem:[%s3 + $0x1318] sm:$0xff]
      %v1005 = vld [vmem:[%s3 + $0x1320] sm:$0xff]
      %v1006 = vld [vmem:[%s3 + $0x1328] sm:$0xff]
      %v1007 = vld [vmem:[%s3 + $0x1330] sm:$0xff]
      %v1008 = vld [vmem:[%s3 + $0x1338] sm:$0xff]
      %v1009 = vld [vmem:[%s3 + $0x1340] sm:$0xff]
      %v1010 = vld [vmem:[%s3 + $0x1348] sm:$0xff]
      %v1011 = vld [vmem:[%s3 + $0x1350] sm:$0xff]
      %v1012 = vld [vmem:[%s3 + $0x1358] sm:$0xff]
      %v1013 = vld [vmem:[%s3 + $0x1360] sm:$0xff]
      %v1014 = vld [vmem:[%s3 + $0x1368] sm:$0xff]
      %v1015 = vld [vmem:[%s3 + $0x1370] sm:$0xff]
      %v1016 = vld [vmem:[%s3 + $0x1378] sm:$0xff]
      %v1017 = vld [vmem:[%s3 + $0x1380] sm:$0xff]
      %v1018 = vld [vmem:[%s3 + $0x1388] sm:$0xff]
      %v1019 = vld [vmem:[%s3 + $0x1390] sm:$0xff]
      %v1020 = vld [vmem:[%s3 + $0x1398] sm:$0xff]
      %v1021 = vld [vmem:[%s3 + $0x13a0] sm:$0xff]
      %v1022 = vld [vmem:[%s3 + $0x13a8] sm:$0xff]
      %v1023 = vld [vmem:[%s3 + $0x13b0] sm:$0xff]
      %v1024 = vld [vmem:[%s3 + $0x13b8] sm:$0xff]
      %v1025 = vld [vmem:[%s3 + $0x13c0] sm:$0xff]
      %v1026 = vld [vmem:[%s3 + $0x13c8] sm:$0xff]
      %v1027 = vld [vmem:[%s3 + $0x13d0] sm:$0xff]
      %v1028 = vld [vmem:[%s3 + $0x13d8] sm:$0xff]
      %v1029 = vld [vmem:[%s3 + $0x13e0] sm:$0xff]
      %v1030 = vld [vmem:[%s3 + $0x13e8] sm:$0xff]
      %v1031 = vld [vmem:[%s3 + $0x13f0] sm:$0xff]
      %v1032 = vld [vmem:[%s3 + $0x13f8] sm:$0xff]
      %v1033 = vld [vmem:[%s3 + $0x1400] sm:$0xff]
      %v1034 = vld [vmem:[%s3 + $0x1408] sm:$0xff]
      %v1035 = vld [vmem:[%s3 + $0x1410] sm:$0xff]
      %v1036 = vld [vmem:[%s3 + $0x1418] sm:$0xff]
      %v1037 = vld [vmem:[%s3 + $0x1420] sm:$0xff]
      %v1038 = vld [vmem:[%s3 + $0x1428] sm:$0xff]
      %v1039 = vld [vmem:[%s3 + $0x1430] sm:$0xff]
      %v1040 = vld [vmem:[%s3 + $0x1438] sm:$0xff]
      %v1041 = vld [vmem:[%s3 + $0x1440] sm:$0xff]
      %v1042 = vld [vmem:[%s3 + $0x1448] sm:$0xff]
      %v1043 = vld [vmem:[%s3 + $0x1450] sm:$0xff]
      %v1044 = vld [vmem:[%s3 + $0x1458] sm:$0xff]
      %v1045 = vld [vmem:[%s3 + $0x1460] sm:$0xff]
      %v1046 = vld [vmem:[%s3 + $0x1468] sm:$0xff]
      %v1047 = vld [vmem:[%s3 + $0x1470] sm:$0xff]
      %v1048 = vld [vmem:[%s3 + $0x1478] sm:$0xff]
      %v1049 = vld [vmem:[%s3 + $0x1480] sm:$0xff]
      %v1050 = vld [vmem:[%s3 + $0x1488] sm:$0xff]
      %v1051 = vld [vmem:[%s3 + $0x1490] sm:$0xff]
      %v1052 = vld [vmem:[%s3 + $0x1498] sm:$0xff]
      %v1053 = vld [vmem:[%s3 + $0x14a0] sm:$0xff]
      %v1054 = vld [vmem:[%s3 + $0x14a8] sm:$0xff]
      %v1055 = vld [vmem:[%s3 + $0x14b0] sm:$0xff]
      %v1056 = vld [vmem:[%s3 + $0x14b8] sm:$0xff]
      %v1057 = vld [vmem:[%s3 + $0x14c0] sm:$0xff]
      %v1058 = vld [vmem:[%s3 + $0x14c8] sm:$0xff]
      %v1059 = vld [vmem:[%s3 + $0x14d0] sm:$0xff]
      %v1060 = vld [vmem:[%s3 + $0x14d8] sm:$0xff]
      %v1061 = vld [vmem:[%s3 + $0x14e0] sm:$0xff]
      %v1062 = vld [vmem:[%s3 + $0x14e8] sm:$0xff]
      %v1063 = vld [vmem:[%s3 + $0x14f0] sm:$0xff]
      %v1064 = vld [vmem:[%s3 + $0x14f8] sm:$0xff]
      %v1065 = vld [vmem:[%s3 + $0x1500] sm:$0xff]
      %v1066 = vld [vmem:[%s3 + $0x1508] sm:$0xff]
      %v1067 = vld [vmem:[%s3 + $0x1510] sm:$0xff]
      %v1068 = vld [vmem:[%s3 + $0x1518] sm:$0xff]
      %v1069 = vld [vmem:[%s3 + $0x1520] sm:$0xff]
      %v1070 = vld [vmem:[%s3 + $0x1528] sm:$0xff]
      %v1071 = vld [vmem:[%s3 + $0x1530] sm:$0xff]
      %v1072 = vld [vmem:[%s3 + $0x1538] sm:$0xff]
      %v1073 = vld [vmem:[%s3 + $0x1540] sm:$0xff]
      %v1074 = vld [vmem:[%s3 + $0x1548] sm:$0xff]
      %v1075 = vld [vmem:[%s3 + $0x1550] sm:$0xff]
      %v1076 = vld [vmem:[%s3 + $0x1558] sm:$0xff]
      %v1077 = vld [vmem:[%s3 + $0x1560] sm:$0xff]
      %v1078 = vld [vmem:[%s3 + $0x1568] sm:$0xff]
      %v1079 = vld [vmem:[%s3 + $0x1570] sm:$0xff]
      %v1080 = vld [vmem:[%s3 + $0x1578] sm:$0xff]
      %v1081 = vld [vmem:[%s3 + $0x1580] sm:$0xff]
      %v1082 = vld [vmem:[%s3 + $0x1588] sm:$0xff]
      %v1083 = vld [vmem:[%s3 + $0x1590] sm:$0xff]
      %v1084 = vld [vmem:[%s3 + $0x1598] sm:$0xff]
      %v1085 = vld [vmem:[%s3 + $0x15a0] sm:$0xff]
      %v1086 = vld [vmem:[%s3 + $0x15a8] sm:$0xff]
      %v1087 = vld [vmem:[%s3 + $0x15b0] sm:$0xff]
      %v1088 = vld [vmem:[%s3 + $0x15b8] sm:$0xff]
      %v1089 = vld [vmem:[%s3 + $0x15c0] sm:$0xff]
      %v1090 = vld [vmem:[%s3 + $0x15c8] sm:$0xff]
      %v1091 = vld [vmem:[%s3 + $0x15d0] sm:$0xff]
      %v1092 = vld [vmem:[%s3 + $0x15d8] sm:$0xff]
      %v1093 = vld [vmem:[%s3 + $0x15e0] sm:$0xff]
      %v1094 = vld [vmem:[%s3 + $0x15e8] sm:$0xff]
      %v1095 = vld [vmem:[%s3 + $0x15f0] sm:$0xff]
      %v1096 = vld [vmem:[%s3 + $0x15f8] sm:$0xff]
      %v1097 = vld [vmem:[%s3 + $0x1600] sm:$0xff]
      %v1098 = vld [vmem:[%s3 + $0x1608] sm:$0xff]
      %v1099 = vld [vmem:[%s3 + $0x1610] sm:$0xff]
      %v1100 = vld [vmem:[%s3 + $0x1618] sm:$0xff]
      %v1101 = vld [vmem:[%s3 + $0x1620] sm:$0xff]
      %v1102 = vld [vmem:[%s3 + $0x1628] sm:$0xff]
      %v1103 = vld [vmem:[%s3 + $0x1630] sm:$0xff]
      %v1104 = vld [vmem:[%s3 + $0x1638] sm:$0xff]
      %v1105 = vld [vmem:[%s3 + $0x1640] sm:$0xff]
      %v1106 = vld [vmem:[%s3 + $0x1648] sm:$0xff]
      %v1107 = vld [vmem:[%s3 + $0x1650] sm:$0xff]
      %v1108 = vld [vmem:[%s3 + $0x1658] sm:$0xff]
      %v1109 = vld [vmem:[%s3 + $0x1660] sm:$0xff]
      %v1110 = vld [vmem:[%s3 + $0x1668] sm:$0xff]
      %v1111 = vld [vmem:[%s3 + $0x1670] sm:$0xff]
      %v1112 = vld [vmem:[%s3 + $0x1678] sm:$0xff]
      %v1113 = vld [vmem:[%s3 + $0x1680] sm:$0xff]
      %v1114 = vld [vmem:[%s3 + $0x1688] sm:$0xff]
      %v1115 = vld [vmem:[%s3 + $0x1690] sm:$0xff]
      %v1116 = vld [vmem:[%s3 + $0x1698] sm:$0xff]
      %v1117 = vld [vmem:[%s3 + $0x16a0] sm:$0xff]
      %v1118 = vld [vmem:[%s3 + $0x16a8] sm:$0xff]
      %v1119 = vld [vmem:[%s3 + $0x16b0] sm:$0xff]
      %v1120 = vld [vmem:[%s3 + $0x16b8] sm:$0xff]
      %v1121 = vld [vmem:[%s3 + $0x16c0] sm:$0xff]
      %v1122 = vld [vmem:[%s3 + $0x16c8] sm:$0xff]
      %v1123 = vld [vmem:[%s3 + $0x16d0] sm:$0xff]
      %v1124 = vld [vmem:[%s3 + $0x16d8] sm:$0xff]
      %v1125 = vld [vmem:[%s3 + $0x16e0] sm:$0xff]
      %v1126 = vld [vmem:[%s3 + $0x16e8] sm:$0xff]
      %v1127 = vld [vmem:[%s3 + $0x16f0] sm:$0xff]
      %v1128 = vld [vmem:[%s3 + $0x16f8] sm:$0xff]
      %v1129 = vld [vmem:[%s3 + $0x1700] sm:$0xff]
      %v1130 = vld [vmem:[%s3 + $0x1708] sm:$0xff]
      %v1131 = vld [vmem:[%s3 + $0x1710] sm:$0xff]
      %v1132 = vld [vmem:[%s3 + $0x1718] sm:$0xff]
      %v1133 = vld [vmem:[%s3 + $0x1720] sm:$0xff]
      %v1134 = vld [vmem:[%s3 + $0x1728] sm:$0xff]
      %v1135 = vld [vmem:[%s3 + $0x1730] sm:$0xff]
      %v1136 = vld [vmem:[%s3 + $0x1738] sm:$0xff]
      %v1137 = vld [vmem:[%s3 + $0x1740] sm:$0xff]
      %v1138 = vld [vmem:[%s3 + $0x1748] sm:$0xff]
      %v1139 = vld [vmem:[%s3 + $0x1750] sm:$0xff]
      %v1140 = vld [vmem:[%s3 + $0x1758] sm:$0xff]
      %v1141 = vld [vmem:[%s3 + $0x1760] sm:$0xff]
      %v1142 = vld [vmem:[%s3 + $0x1768] sm:$0xff]
      %v1143 = vld [vmem:[%s3 + $0x1770] sm:$0xff]
      %v1144 = vld [vmem:[%s3 + $0x1778] sm:$0xff]
      %v1145 = vld [vmem:[%s3 + $0x1780] sm:$0xff]
      %v1146 = vld [vmem:[%s3 + $0x1788] sm:$0xff]
      %v1147 = vld [vmem:[%s3 + $0x1790] sm:$0xff]
      %v1148 = vld [vmem:[%s3 + $0x1798] sm:$0xff]
      %v1149 = vld [vmem:[%s3 + $0x17a0] sm:$0xff]
      %v1150 = vld [vmem:[%s3 + $0x17a8] sm:$0xff]
      %v1151 = vld [vmem:[%s3 + $0x17b0] sm:$0xff]
      %v1152 = vld [vmem:[%s3 + $0x17b8] sm:$0xff]
      %v1153 = vld [vmem:[%s3 + $0x17c0] sm:$0xff]
      %v1154 = vld [vmem:[%s3 + $0x17c8] sm:$0xff]
      %v1155 = vld [vmem:[%s3 + $0x17d0] sm:$0xff]
      %v1156 = vld [vmem:[%s3 + $0x17d8] sm:$0xff]
      %v1157 = vld [vmem:[%s3 + $0x17e0] sm:$0xff]
      %v1158 = vld [vmem:[%s3 + $0x17e8] sm:$0xff]
      %v1159 = vld [vmem:[%s3 + $0x17f0] sm:$0xff]
      %v1160 = vld [vmem:[%s3 + $0x17f8] sm:$0xff]
      %v1161 = vld [vmem:[%s3 + $0x1800] sm:$0xff]
      %v1162 = vld [vmem:[%s3 + $0x1808] sm:$0xff]
      %v1163 = vld [vmem:[%s3 + $0x1810] sm:$0xff]
      %v1164 = vld [vmem:[%s3 + $0x1818] sm:$0xff]
      %v1165 = vld [vmem:[%s3 + $0x1820] sm:$0xff]
      %v1166 = vld [vmem:[%s3 + $0x1828] sm:$0xff]
      %v1167 = vld [vmem:[%s3 + $0x1830] sm:$0xff]
      %v1168 = vld [vmem:[%s3 + $0x1838] sm:$0xff]
      %v1169 = vld [vmem:[%s3 + $0x1840] sm:$0xff]
      %v1170 = vld [vmem:[%s3 + $0x1848] sm:$0xff]
      %v1171 = vld [vmem:[%s3 + $0x1850] sm:$0xff]
      %v1172 = vld [vmem:[%s3 + $0x1858] sm:$0xff]
      %v1173 = vld [vmem:[%s3 + $0x1860] sm:$0xff]
      %v1174 = vld [vmem:[%s3 + $0x1868] sm:$0xff]
      %v1175 = vld [vmem:[%s3 + $0x1870] sm:$0xff]
      %v1176 = vld [vmem:[%s3 + $0x1878] sm:$0xff]
      %v1177 = vld [vmem:[%s3 + $0x1880] sm:$0xff]
      %v1178 = vld [vmem:[%s3 + $0x1888] sm:$0xff]
      %v1179 = vld [vmem:[%s3 + $0x1890] sm:$0xff]
      %v1180 = vld [vmem:[%s3 + $0x1898] sm:$0xff]
      %v1181 = vld [vmem:[%s3 + $0x18a0] sm:$0xff]
      %v1182 = vld [vmem:[%s3 + $0x18a8] sm:$0xff]
      %v1183 = vld [vmem:[%s3 + $0x18b0] sm:$0xff]
      %v1184 = vld [vmem:[%s3 + $0x18b8] sm:$0xff]
      %v1185 = vld [vmem:[%s3 + $0x18c0] sm:$0xff]
      %v1186 = vld [vmem:[%s3 + $0x18c8] sm:$0xff]
      %v1187 = vld [vmem:[%s3 + $0x18d0] sm:$0xff]
      %v1188 = vld [vmem:[%s3 + $0x18d8] sm:$0xff]
      %v1189 = vld [vmem:[%s3 + $0x18e0] sm:$0xff]
      %v1190 = vld [vmem:[%s3 + $0x18e8] sm:$0xff]
      %v1191 = vld [vmem:[%s3 + $0x18f0] sm:$0xff]
      %v1192 = vld [vmem:[%s3 + $0x18f8] sm:$0xff]
      %v1193 = vld [vmem:[%s3 + $0x1900] sm:$0xff]
      %v1194 = vld [vmem:[%s3 + $0x1908] sm:$0xff]
      %v1195 = vld [vmem:[%s3 + $0x1910] sm:$0xff]
      %v1196 = vld [vmem:[%s3 + $0x1918] sm:$0xff]
      %v1197 = vld [vmem:[%s3 + $0x1920] sm:$0xff]
      %v1198 = vld [vmem:[%s3 + $0x1928] sm:$0xff]
      %v1199 = vld [vmem:[%s3 + $0x1930] sm:$0xff]
      %v1200 = vld [vmem:[%s3 + $0x1938] sm:$0xff]
      %v1201 = vld [vmem:[%s3 + $0x1940] sm:$0xff]
      %v1202 = vld [vmem:[%s3 + $0x1948] sm:$0xff]
      %v1203 = vld [vmem:[%s3 + $0x1950] sm:$0xff]
      %v1204 = vld [vmem:[%s3 + $0x1958] sm:$0xff]
      %v1205 = vld [vmem:[%s3 + $0x1960] sm:$0xff]
      %v1206 = vld [vmem:[%s3 + $0x1968] sm:$0xff]
      %v1207 = vld [vmem:[%s3 + $0x1970] sm:$0xff]
      %v1208 = vld [vmem:[%s3 + $0x1978] sm:$0xff]
      %v1209 = vld [vmem:[%s3 + $0x1980] sm:$0xff]
      %v1210 = vld [vmem:[%s3 + $0x1988] sm:$0xff]
      %v1211 = vld [vmem:[%s3 + $0x1990] sm:$0xff]
      %v1212 = vld [vmem:[%s3 + $0x1998] sm:$0xff]
      %v1213 = vld [vmem:[%s3 + $0x19a0] sm:$0xff]
      %v1214 = vld [vmem:[%s3 + $0x19a8] sm:$0xff]
      %v1215 = vld [vmem:[%s3 + $0x19b0] sm:$0xff]
      %v1216 = vld [vmem:[%s3 + $0x19b8] sm:$0xff]
      %v1217 = vld [vmem:[%s3 + $0x19c0] sm:$0xff]
      %v1218 = vld [vmem:[%s3 + $0x19c8] sm:$0xff]
      %v1219 = vld [vmem:[%s3 + $0x19d0] sm:$0xff]
      %v1220 = vld [vmem:[%s3 + $0x19d8] sm:$0xff]
      %v1221 = vld [vmem:[%s3 + $0x19e0] sm:$0xff]
      %v1222 = vld [vmem:[%s3 + $0x19e8] sm:$0xff]
      %v1223 = vld [vmem:[%s3 + $0x19f0] sm:$0xff]
      %v1224 = vld [vmem:[%s3 + $0x19f8] sm:$0xff]
      %v1225 = vld [vmem:[%s3 + $0x1a00] sm:$0xff]
      %v1226 = vld [vmem:[%s3 + $0x1a08] sm:$0xff]
      %v1227 = vld [vmem:[%s3 + $0x1a10] sm:$0xff]
      %v1228 = vld [vmem:[%s3 + $0x1a18] sm:$0xff]
      %v1229 = vld [vmem:[%s3 + $0x1a20] sm:$0xff]
      %v1230 = vld [vmem:[%s3 + $0x1a28] sm:$0xff]
      %v1231 = vld [vmem:[%s3 + $0x1a30] sm:$0xff]
      %v1232 = vld [vmem:[%s3 + $0x1a38] sm:$0xff]
      %v1233 = vld [vmem:[%s3 + $0x1a40] sm:$0xff]
      %v1234 = vld [vmem:[%s3 + $0x1a48] sm:$0xff]
      %v1235 = vld [vmem:[%s3 + $0x1a50] sm:$0xff]
      %v1236 = vld [vmem:[%s3 + $0x1a58] sm:$0xff]
      %v1237 = vld [vmem:[%s3 + $0x1a60] sm:$0xff]
      %v1238 = vld [vmem:[%s3 + $0x1a68] sm:$0xff]
      %v1239 = vld [vmem:[%s3 + $0x1a70] sm:$0xff]
      %v1240 = vld [vmem:[%s3 + $0x1a78] sm:$0xff]
      %v1241 = vld [vmem:[%s3 + $0x1a80] sm:$0xff]
      %v1242 = vld [vmem:[%s3 + $0x1a88] sm:$0xff]
      %v1243 = vld [vmem:[%s3 + $0x1a90] sm:$0xff]
      %v1244 = vld [vmem:[%s3 + $0x1a98] sm:$0xff]
      %v1245 = vld [vmem:[%s3 + $0x1aa0] sm:$0xff]
      %v1246 = vld [vmem:[%s3 + $0x1aa8] sm:$0xff]
      %v1247 = vld [vmem:[%s3 + $0x1ab0] sm:$0xff]
      %v1248 = vld [vmem:[%s3 + $0x1ab8] sm:$0xff]
      %v1249 = vld [vmem:[%s3 + $0x1ac0] sm:$0xff]
      %v1250 = vld [vmem:[%s3 + $0x1ac8] sm:$0xff]
      %v1251 = vld [vmem:[%s3 + $0x1ad0] sm:$0xff]
      %v1252 = vld [vmem:[%s3 + $0x1ad8] sm:$0xff]
      %v1253 = vld [vmem:[%s3 + $0x1ae0] sm:$0xff]
      %v1254 = vld [vmem:[%s3 + $0x1ae8] sm:$0xff]
      %v1255 = vld [vmem:[%s3 + $0x1af0] sm:$0xff]
      %v1256 = vld [vmem:[%s3 + $0x1af8] sm:$0xff]
      %v1257 = vld [vmem:[%s3 + $0x1b00] sm:$0xff]
      %v1258 = vld [vmem:[%s3 + $0x1b08] sm:$0xff]
      %v1259 = vld [vmem:[%s3 + $0x1b10] sm:$0xff]
      %v1260 = vld [vmem:[%s3 + $0x1b18] sm:$0xff]
      %v1261 = vld [vmem:[%s3 + $0x1b20] sm:$0xff]
      %v1262 = vld [vmem:[%s3 + $0x1b28] sm:$0xff]
      %v1263 = vld [vmem:[%s3 + $0x1b30] sm:$0xff]
      %v1264 = vld [vmem:[%s3 + $0x1b38] sm:$0xff]
      %v1265 = vld [vmem:[%s3 + $0x1b40] sm:$0xff]
      %v1266 = vld [vmem:[%s3 + $0x1b48] sm:$0xff]
      %v1267 = vld [vmem:[%s3 + $0x1b50] sm:$0xff]
      %v1268 = vld [vmem:[%s3 + $0x1b58] sm:$0xff]
      %v1269 = vld [vmem:[%s3 + $0x1b60] sm:$0xff]
      %v1270 = vld [vmem:[%s3 + $0x1b68] sm:$0xff]
      %v1271 = vld [vmem:[%s3 + $0x1b70] sm:$0xff]
      %v1272 = vld [vmem:[%s3 + $0x1b78] sm:$0xff]
      %v1273 = vld [vmem:[%s3 + $0x1b80] sm:$0xff]
      %v1274 = vld [vmem:[%s3 + $0x1b88] sm:$0xff]
      %v1275 = vld [vmem:[%s3 + $0x1b90] sm:$0xff]
      %v1276 = vld [vmem:[%s3 + $0x1b98] sm:$0xff]
      %v1277 = vld [vmem:[%s3 + $0x1ba0] sm:$0xff]
      %v1278 = vld [vmem:[%s3 + $0x1ba8] sm:$0xff]
      %v1279 = vld [vmem:[%s3 + $0x1bb0] sm:$0xff]
      %v1280 = vld [vmem:[%s3 + $0x1bb8] sm:$0xff]
      %v1281 = vld [vmem:[%s3 + $0x1bc0] sm:$0xff]
      %v1282 = vld [vmem:[%s3 + $0x1bc8] sm:$0xff]
      %v1283 = vld [vmem:[%s3 + $0x1bd0] sm:$0xff]
      %v1284 = vld [vmem:[%s3 + $0x1bd8] sm:$0xff]
      %v1285 = vld [vmem:[%s3 + $0x1be0] sm:$0xff]
      %v1286 = vld [vmem:[%s3 + $0x1be8] sm:$0xff]
      %v1287 = vld [vmem:[%s3 + $0x1bf0] sm:$0xff]
      %v1288 = vld [vmem:[%s3 + $0x1bf8] sm:$0xff]
      %v1289 = vld [vmem:[%s3 + $0x1c00] sm:$0xff]
      %v1290 = vld [vmem:[%s3 + $0x1c08] sm:$0xff]
      %v1291 = vld [vmem:[%s3 + $0x1c10] sm:$0xff]
      %v1292 = vld [vmem:[%s3 + $0x1c18] sm:$0xff]
      %v1293 = vld [vmem:[%s3 + $0x1c20] sm:$0xff]
      %v1294 = vld [vmem:[%s3 + $0x1c28] sm:$0xff]
      %v1295 = vld [vmem:[%s3 + $0x1c30] sm:$0xff]
      %v1296 = vld [vmem:[%s3 + $0x1c38] sm:$0xff]
      %v1297 = vld [vmem:[%s3 + $0x1c40] sm:$0xff]
      %v1298 = vld [vmem:[%s3 + $0x1c48] sm:$0xff]
      %v1299 = vld [vmem:[%s3 + $0x1c50] sm:$0xff]
      %v1300 = vld [vmem:[%s3 + $0x1c58] sm:$0xff]
      %v1301 = vld [vmem:[%s3 + $0x1c60] sm:$0xff]
      %v1302 = vld [vmem:[%s3 + $0x1c68] sm:$0xff]
      %v1303 = vld [vmem:[%s3 + $0x1c70] sm:$0xff]
      %v1304 = vld [vmem:[%s3 + $0x1c78] sm:$0xff]
      %v1305 = vld [vmem:[%s3 + $0x1c80] sm:$0xff]
      %v1306 = vld [vmem:[%s3 + $0x1c88] sm:$0xff]
      %v1307 = vld [vmem:[%s3 + $0x1c90] sm:$0xff]
      %v1308 = vld [vmem:[%s3 + $0x1c98] sm:$0xff]
      %v1309 = vld [vmem:[%s3 + $0x1ca0] sm:$0xff]
      %v1310 = vld [vmem:[%s3 + $0x1ca8] sm:$0xff]
      %v1311 = vld [vmem:[%s3 + $0x1cb0] sm:$0xff]
      %v1312 = vld [vmem:[%s3 + $0x1cb8] sm:$0xff]
      %v1313 = vld [vmem:[%s3 + $0x1cc0] sm:$0xff]
      %v1314 = vld [vmem:[%s3 + $0x1cc8] sm:$0xff]
      %v1315 = vld [vmem:[%s3 + $0x1cd0] sm:$0xff]
      %v1316 = vld [vmem:[%s3 + $0x1cd8] sm:$0xff]
      %v1317 = vld [vmem:[%s3 + $0x1ce0] sm:$0xff]
      %v1318 = vld [vmem:[%s3 + $0x1ce8] sm:$0xff]
      %v1319 = vld [vmem:[%s3 + $0x1cf0] sm:$0xff]
      %v1320 = vld [vmem:[%s3 + $0x1cf8] sm:$0xff]
      %v1321 = vld [vmem:[%s3 + $0x1d00] sm:$0xff]
      %v1322 = vld [vmem:[%s3 + $0x1d08] sm:$0xff]
      %v1323 = vld [vmem:[%s3 + $0x1d10] sm:$0xff]
      %v1324 = vld [vmem:[%s3 + $0x1d18] sm:$0xff]
      %v1325 = vld [vmem:[%s3 + $0x1d20] sm:$0xff]
      %v1326 = vld [vmem:[%s3 + $0x1d28] sm:$0xff]
      %v1327 = vld [vmem:[%s3 + $0x1d30] sm:$0xff]
      %v1328 = vld [vmem:[%s3 + $0x1d38] sm:$0xff]
      %v1329 = vld [vmem:[%s3 + $0x1d40] sm:$0xff]
      %v1330 = vld [vmem:[%s3 + $0x1d48] sm:$0xff]
      %v1331 = vld [vmem:[%s3 + $0x1d50] sm:$0xff]
      %v1332 = vld [vmem:[%s3 + $0x1d58] sm:$0xff]
      %v1333 = vld [vmem:[%s3 + $0x1d60] sm:$0xff]
      %v1334 = vld [vmem:[%s3 + $0x1d68] sm:$0xff]
      %v1335 = vld [vmem:[%s3 + $0x1d70] sm:$0xff]
      %v1336 = vld [vmem:[%s3 + $0x1d78] sm:$0xff]
      %v1337 = vld [vmem:[%s3 + $0x1d80] sm:$0xff]
      %v1338 = vld [vmem:[%s3 + $0x1d88] sm:$0xff]
      %v1339 = vld [vmem:[%s3 + $0x1d90] sm:$0xff]
      %v1340 = vld [vmem:[%s3 + $0x1d98] sm:$0xff]
      %v1341 = vld [vmem:[%s3 + $0x1da0] sm:$0xff]
      %v1342 = vld [vmem:[%s3 + $0x1da8] sm:$0xff]
      %v1343 = vld [vmem:[%s3 + $0x1db0] sm:$0xff]
      %v1344 = vld [vmem:[%s3 + $0x1db8] sm:$0xff]
      %v1345 = vld [vmem:[%s3 + $0x1dc0] sm:$0xff]
      %v1346 = vld [vmem:[%s3 + $0x1dc8] sm:$0xff]
      %v1347 = vld [vmem:[%s3 + $0x1dd0] sm:$0xff]
      %v1348 = vld [vmem:[%s3 + $0x1dd8] sm:$0xff]
      %v1349 = vld [vmem:[%s3 + $0x1de0] sm:$0xff]
      %v1350 = vld [vmem:[%s3 + $0x1de8] sm:$0xff]
      %v1351 = vld [vmem:[%s3 + $0x1df0] sm:$0xff]
      %v1352 = vld [vmem:[%s3 + $0x1df8] sm:$0xff]
      %v1353 = vld [vmem:[%s3 + $0x1e00] sm:$0xff]
      %v1354 = vld [vmem:[%s3 + $0x1e08] sm:$0xff]
      %v1355 = vld [vmem:[%s3 + $0x1e10] sm:$0xff]
      %v1356 = vld [vmem:[%s3 + $0x1e18] sm:$0xff]
      %v1357 = vld [vmem:[%s3 + $0x1e20] sm:$0xff]
      %v1358 = vld [vmem:[%s3 + $0x1e28] sm:$0xff]
      %v1359 = vld [vmem:[%s3 + $0x1e30] sm:$0xff]
      %v1360 = vld [vmem:[%s3 + $0x1e38] sm:$0xff]
      %v1361 = vld [vmem:[%s3 + $0x1e40] sm:$0xff]
      %v1362 = vld [vmem:[%s3 + $0x1e48] sm:$0xff]
      %v1363 = vld [vmem:[%s3 + $0x1e50] sm:$0xff]
      %v1364 = vld [vmem:[%s3 + $0x1e58] sm:$0xff]
      %v1365 = vld [vmem:[%s3 + $0x1e60] sm:$0xff]
      %v1366 = vld [vmem:[%s3 + $0x1e68] sm:$0xff]
      %v1367 = vld [vmem:[%s3 + $0x1e70] sm:$0xff]
      %v1368 = vld [vmem:[%s3 + $0x1e78] sm:$0xff]
      %v1369 = vld [vmem:[%s3 + $0x1e80] sm:$0xff]
      %v1370 = vld [vmem:[%s3 + $0x1e88] sm:$0xff]
      %v1371 = vld [vmem:[%s3 + $0x1e90] sm:$0xff]
      %v1372 = vld [vmem:[%s3 + $0x1e98] sm:$0xff]
      %v1373 = vld [vmem:[%s3 + $0x1ea0] sm:$0xff]
      %v1374 = vld [vmem:[%s3 + $0x1ea8] sm:$0xff]
      %v1375 = vld [vmem:[%s3 + $0x1eb0] sm:$0xff]
      %v1376 = vld [vmem:[%s3 + $0x1eb8] sm:$0xff]
      %v1377 = vld [vmem:[%s3 + $0x1ec0] sm:$0xff]
      %v1378 = vld [vmem:[%s3 + $0x1ec8] sm:$0xff]
      %v1379 = vld [vmem:[%s3 + $0x1ed0] sm:$0xff]
      %v1380 = vld [vmem:[%s3 + $0x1ed8] sm:$0xff]
      %v1381 = vld [vmem:[%s3 + $0x1ee0] sm:$0xff]
      %v1382 = vld [vmem:[%s3 + $0x1ee8] sm:$0xff]
      %v1383 = vld [vmem:[%s3 + $0x1ef0] sm:$0xff]
      %v1384 = vld [vmem:[%s3 + $0x1ef8] sm:$0xff]
      %v1385 = vld [vmem:[%s3 + $0x1f00] sm:$0xff]
      %v1386 = vld [vmem:[%s3 + $0x1f08] sm:$0xff]
      %v1387 = vld [vmem:[%s3 + $0x1f10] sm:$0xff]
      %v1388 = vld [vmem:[%s3 + $0x1f18] sm:$0xff]
      %v1389 = vld [vmem:[%s3 + $0x1f20] sm:$0xff]
      %v1390 = vld [vmem:[%s3 + $0x1f28] sm:$0xff]
      %v1391 = vld [vmem:[%s3 + $0x1f30] sm:$0xff]
      %v1392 = vld [vmem:[%s3 + $0x1f38] sm:$0xff]
      %v1393 = vld [vmem:[%s3 + $0x1f40] sm:$0xff]
      %v1394 = vld [vmem:[%s3 + $0x1f48] sm:$0xff]
      %v1395 = vld [vmem:[%s3 + $0x1f50] sm:$0xff]
      %v1396 = vld [vmem:[%s3 + $0x1f58] sm:$0xff]
      %v1397 = vld [vmem:[%s3 + $0x1f60] sm:$0xff]
      %v1398 = vld [vmem:[%s3 + $0x1f68] sm:$0xff]
      %v1399 = vld [vmem:[%s3 + $0x1f70] sm:$0xff]
      %v1400 = vld [vmem:[%s3 + $0x1f78] sm:$0xff]
      %v1401 = vld [vmem:[%s3 + $0x1f80] sm:$0xff]
      %v1402 = vld [vmem:[%s3 + $0x1f88] sm:$0xff]
      %v1403 = vld [vmem:[%s3 + $0x1f90] sm:$0xff]
      %v1404 = vld [vmem:[%s3 + $0x1f98] sm:$0xff]
      %v1405 = vld [vmem:[%s3 + $0x1fa0] sm:$0xff]
      %v1406 = vld [vmem:[%s3 + $0x1fa8] sm:$0xff]
      %v1407 = vld [vmem:[%s3 + $0x1fb0] sm:$0xff]
      %v1408 = vld [vmem:[%s3 + $0x1fb8] sm:$0xff]
      %v1409 = vld [vmem:[%s3 + $0x1fc0] sm:$0xff]
      %v1410 = vld [vmem:[%s3 + $0x1fc8] sm:$0xff]
      %v1411 = vld [vmem:[%s3 + $0x1fd0] sm:$0xff]
      %v1412 = vld [vmem:[%s3 + $0x1fd8] sm:$0xff]
      %v1413 = vld [vmem:[%s3 + $0x1fe0] sm:$0xff]
      %v1414 = vld [vmem:[%s3 + $0x1fe8] sm:$0xff]
      %v1415 = vld [vmem:[%s3 + $0x1ff0] sm:$0xff]
      %v1416 = vld [vmem:[%s3 + $0x1ff8] sm:$0xff]
      %v1417 = vld [vmem:[%s4] sm:$0xff]
      %v1418 = vld [vmem:[%s4 + $0x8] sm:$0xff]
      %v1421 = vperm.slane %v1417, 0
      %v1422 = vperm.slane %v1417, 1
      %v1423 = vperm.slane %v1417, 2
      %v1424 = vperm.slane %v1417, 3
      %v1425 = vperm.slane %v1417, 4
      %v1426 = vperm.slane %v1417, 5
      %v1427 = vperm.slane %v1417, 6
      %v1428 = vperm.slane %v1417, 7
      %v1429 = vperm.slane %v1418, 0
      %v1430 = vperm.slane %v1418, 1
      %v1431 = vperm.slane %v1418, 2
      %v1432 = vperm.slane %v1418, 3
      %v1433 = vperm.slane %v1418, 4
      %v1434 = vperm.slane %v1418, 5
      %v1435 = vperm.slane %v1418, 6
      %v1436 = vperm.slane %v1418, 7
      %1453 = vmatpush.msra.mxu0 %v633
      %1454 = vmatpush.msra.mxu0 %v617
      %1455 = vmatpush.msra.mxu0 %v601
      %1456 = vmatpush.msra.mxu0 %v585
      %1457 = vmatpush.msra.mxu0 %v569
      %1458 = vmatpush.msra.mxu0 %v553
      %1459 = vmatpush.msra.mxu0 %v537
      %1460 = vmatpush.msra.mxu0 %v521
      %1461 = vmatpush.msra.mxu0 %v505
      %1462 = vmatpush.msra.mxu0 %v489
      %1463 = vmatpush.msra.mxu0 %v473
      %1464 = vmatpush.msra.mxu0 %v457
      %1465 = vmatpush.msra.mxu0 %v441
      %1466 = vmatpush.msra.mxu0 %v425
      %1467 = vmatpush.msra.mxu0 %v409
      %1468 = vmatpush.msra.mxu0 %v393
      %1469 = vmatmul.f32.gmra.mxu0 %v389
      %v1470 = vpop.f32.mrf.mxu0
      %v1471 = vadd.f32 %v1421, %v1470
      %1472 = vdwg.mxu0
      %1473 = vmatpush.msra.mxu0 %v889
      %1474 = vmatpush.msra.mxu0 %v873
      %1475 = vmatpush.msra.mxu0 %v857
      %1476 = vmatpush.msra.mxu0 %v841
      %1477 = vmatpush.msra.mxu0 %v825
      %1478 = vmatpush.msra.mxu0 %v809
      %1479 = vmatpush.msra.mxu0 %v793
      %1480 = vmatpush.msra.mxu0 %v777
      %1481 = vmatpush.msra.mxu0 %v761
      %1482 = vmatpush.msra.mxu0 %v745
      %1483 = vmatpush.msra.mxu0 %v729
      %1484 = vmatpush.msra.mxu0 %v713
      %1485 = vmatpush.msra.mxu0 %v697
      %1486 = vmatpush.msra.mxu0 %v681
      %1487 = vmatpush.msra.mxu0 %v665
      %1488 = vmatpush.msra.mxu0 %v649
      %1489 = vmatmul.f32.gmra.mxu0 %v390
      %v1490 = vpop.f32.mrf.mxu0
      %v1491 = vadd.f32 %v1471, %v1490
      %1492 = vdwg.mxu0
      %1493 = vmatpush.msra.mxu0 %v1145
      %1494 = vmatpush.msra.mxu0 %v1129
      %1495 = vmatpush.msra.mxu0 %v1113
      %1496 = vmatpush.msra.mxu0 %v1097
      %1497 = vmatpush.msra.mxu0 %v1081
      %1498 = vmatpush.msra.mxu0 %v1065
      %1499 = vmatpush.msra.mxu0 %v1049
      %1500 = vmatpush.msra.mxu0 %v1033
      %1501 = vmatpush.msra.mxu0 %v1017
      %1502 = vmatpush.msra.mxu0 %v1001
      %1503 = vmatpush.msra.mxu0 %v985
      %1504 = vmatpush.msra.mxu0 %v969
      %1505 = vmatpush.msra.mxu0 %v953
      %1506 = vmatpush.msra.mxu0 %v937
      %1507 = vmatpush.msra.mxu0 %v921
      %1508 = vmatpush.msra.mxu0 %v905
      %1509 = vmatmul.f32.gmra.mxu0 %v391
      %v1510 = vpop.f32.mrf.mxu0
      %v1511 = vadd.f32 %v1491, %v1510
      %1512 = vdwg.mxu0
      %1513 = vmatpush.msra.mxu0 %v1401
      %1514 = vmatpush.msra.mxu0 %v1385
      %1515 = vmatpush.msra.mxu0 %v1369
      %1516 = vmatpush.msra.mxu0 %v1353
      %1517 = vmatpush.msra.mxu0 %v1337
      %1518 = vmatpush.msra.mxu0 %v1321
      %1519 = vmatpush.msra.mxu0 %v1305
      %1520 = vmatpush.msra.mxu0 %v1289
      %1521 = vmatpush.msra.mxu0 %v1273
      %1522 = vmatpush.msra.mxu0 %v1257
      %1523 = vmatpush.msra.mxu0 %v1241
      %1524 = vmatpush.msra.mxu0 %v1225
      %1525 = vmatpush.msra.mxu0 %v1209
      %1526 = vmatpush.msra.mxu0 %v1193
      %1527 = vmatpush.msra.mxu0 %v1177
      %1528 = vmatpush.msra.mxu0 %v1161
      %1529 = vmatmul.f32.gmra.mxu0 %v392
      %v1530 = vpop.f32.mrf.mxu0
      %v1531 = vadd.f32 %v1511, %v1530
      %1532 = vdwg.mxu0
      %1533 = vmatpush.msra.mxu0 %v634
      %1534 = vmatpush.msra.mxu0 %v618
      %1535 = vmatpush.msra.mxu0 %v602
      %1536 = vmatpush.msra.mxu0 %v586
      %1537 = vmatpush.msra.mxu0 %v570
      %1538 = vmatpush.msra.mxu0 %v554
      %1539 = vmatpush.msra.mxu0 %v538
      %1540 = vmatpush.msra.mxu0 %v522
      %1541 = vmatpush.msra.mxu0 %v506
      %1542 = vmatpush.msra.mxu0 %v490
      %1543 = vmatpush.msra.mxu0 %v474
      %1544 = vmatpush.msra.mxu0 %v458
      %1545 = vmatpush.msra.mxu0 %v442
      %1546 = vmatpush.msra.mxu0 %v426
      %1547 = vmatpush.msra.mxu0 %v410
      %1548 = vmatpush.msra.mxu0 %v394
      %1549 = vmatmul.f32.gmra.mxu0 %v389
      %v1550 = vpop.f32.mrf.mxu0
      %v1551 = vadd.f32 %v1422, %v1550
      %1552 = vdwg.mxu0
      %1553 = vmatpush.msra.mxu0 %v890
      %1554 = vmatpush.msra.mxu0 %v874
      %1555 = vmatpush.msra.mxu0 %v858
      %1556 = vmatpush.msra.mxu0 %v842
      %1557 = vmatpush.msra.mxu0 %v826
      %1558 = vmatpush.msra.mxu0 %v810
      %1559 = vmatpush.msra.mxu0 %v794
      %1560 = vmatpush.msra.mxu0 %v778
      %1561 = vmatpush.msra.mxu0 %v762
      %1562 = vmatpush.msra.mxu0 %v746
      %1563 = vmatpush.msra.mxu0 %v730
      %1564 = vmatpush.msra.mxu0 %v714
      %1565 = vmatpush.msra.mxu0 %v698
      %1566 = vmatpush.msra.mxu0 %v682
      %1567 = vmatpush.msra.mxu0 %v666
      %1568 = vmatpush.msra.mxu0 %v650
      %1569 = vmatmul.f32.gmra.mxu0 %v390
      %v1570 = vpop.f32.mrf.mxu0
      %v1571 = vadd.f32 %v1551, %v1570
      %1572 = vdwg.mxu0
      %1573 = vmatpush.msra.mxu0 %v1146
      %1574 = vmatpush.msra.mxu0 %v1130
      %1575 = vmatpush.msra.mxu0 %v1114
      %1576 = vmatpush.msra.mxu0 %v1098
      %1577 = vmatpush.msra.mxu0 %v1082
      %1578 = vmatpush.msra.mxu0 %v1066
      %1579 = vmatpush.msra.mxu0 %v1050
      %1580 = vmatpush.msra.mxu0 %v1034
      %1581 = vmatpush.msra.mxu0 %v1018
      %1582 = vmatpush.msra.mxu0 %v1002
      %1583 = vmatpush.msra.mxu0 %v986
      %1584 = vmatpush.msra.mxu0 %v970
      %1585 = vmatpush.msra.mxu0 %v954
      %1586 = vmatpush.msra.mxu0 %v938
      %1587 = vmatpush.msra.mxu0 %v922
      %1588 = vmatpush.msra.mxu0 %v906
      %1589 = vmatmul.f32.gmra.mxu0 %v391
      %v1590 = vpop.f32.mrf.mxu0
      %v1591 = vadd.f32 %v1571, %v1590
      %1592 = vdwg.mxu0
      %1593 = vmatpush.msra.mxu0 %v1402
      %1594 = vmatpush.msra.mxu0 %v1386
      %1595 = vmatpush.msra.mxu0 %v1370
      %1596 = vmatpush.msra.mxu0 %v1354
      %1597 = vmatpush.msra.mxu0 %v1338
      %1598 = vmatpush.msra.mxu0 %v1322
      %1599 = vmatpush.msra.mxu0 %v1306
      %1600 = vmatpush.msra.mxu0 %v1290
      %1601 = vmatpush.msra.mxu0 %v1274
      %1602 = vmatpush.msra.mxu0 %v1258
      %1603 = vmatpush.msra.mxu0 %v1242
      %1604 = vmatpush.msra.mxu0 %v1226
      %1605 = vmatpush.msra.mxu0 %v1210
      %1606 = vmatpush.msra.mxu0 %v1194
      %1607 = vmatpush.msra.mxu0 %v1178
      %1608 = vmatpush.msra.mxu0 %v1162
      %1609 = vmatmul.f32.gmra.mxu0 %v392
      %v1610 = vpop.f32.mrf.mxu0
      %v1611 = vadd.f32 %v1591, %v1610
      %1612 = vdwg.mxu0
      %1613 = vmatpush.msra.mxu0 %v635
      %1614 = vmatpush.msra.mxu0 %v619
      %1615 = vmatpush.msra.mxu0 %v603
      %1616 = vmatpush.msra.mxu0 %v587
      %1617 = vmatpush.msra.mxu0 %v571
      %1618 = vmatpush.msra.mxu0 %v555
      %1619 = vmatpush.msra.mxu0 %v539
      %1620 = vmatpush.msra.mxu0 %v523
      %1621 = vmatpush.msra.mxu0 %v507
      %1622 = vmatpush.msra.mxu0 %v491
      %1623 = vmatpush.msra.mxu0 %v475
      %1624 = vmatpush.msra.mxu0 %v459
      %1625 = vmatpush.msra.mxu0 %v443
      %1626 = vmatpush.msra.mxu0 %v427
      %1627 = vmatpush.msra.mxu0 %v411
      %1628 = vmatpush.msra.mxu0 %v395
      %1629 = vmatmul.f32.gmra.mxu0 %v389
      %v1630 = vpop.f32.mrf.mxu0
      %v1631 = vadd.f32 %v1423, %v1630
      %1632 = vdwg.mxu0
      %1633 = vmatpush.msra.mxu0 %v891
      %1634 = vmatpush.msra.mxu0 %v875
      %1635 = vmatpush.msra.mxu0 %v859
      %1636 = vmatpush.msra.mxu0 %v843
      %1637 = vmatpush.msra.mxu0 %v827
      %1638 = vmatpush.msra.mxu0 %v811
      %1639 = vmatpush.msra.mxu0 %v795
      %1640 = vmatpush.msra.mxu0 %v779
      %1641 = vmatpush.msra.mxu0 %v763
      %1642 = vmatpush.msra.mxu0 %v747
      %1643 = vmatpush.msra.mxu0 %v731
      %1644 = vmatpush.msra.mxu0 %v715
      %1645 = vmatpush.msra.mxu0 %v699
      %1646 = vmatpush.msra.mxu0 %v683
      %1647 = vmatpush.msra.mxu0 %v667
      %1648 = vmatpush.msra.mxu0 %v651
      %1649 = vmatmul.f32.gmra.mxu0 %v390
      %v1650 = vpop.f32.mrf.mxu0
      %v1651 = vadd.f32 %v1631, %v1650
      %1652 = vdwg.mxu0
      %1653 = vmatpush.msra.mxu0 %v1147
      %1654 = vmatpush.msra.mxu0 %v1131
      %1655 = vmatpush.msra.mxu0 %v1115
      %1656 = vmatpush.msra.mxu0 %v1099
      %1657 = vmatpush.msra.mxu0 %v1083
      %1658 = vmatpush.msra.mxu0 %v1067
      %1659 = vmatpush.msra.mxu0 %v1051
      %1660 = vmatpush.msra.mxu0 %v1035
      %1661 = vmatpush.msra.mxu0 %v1019
      %1662 = vmatpush.msra.mxu0 %v1003
      %1663 = vmatpush.msra.mxu0 %v987
      %1664 = vmatpush.msra.mxu0 %v971
      %1665 = vmatpush.msra.mxu0 %v955
      %1666 = vmatpush.msra.mxu0 %v939
      %1667 = vmatpush.msra.mxu0 %v923
      %1668 = vmatpush.msra.mxu0 %v907
      %1669 = vmatmul.f32.gmra.mxu0 %v391
      %v1670 = vpop.f32.mrf.mxu0
      %v1671 = vadd.f32 %v1651, %v1670
      %1672 = vdwg.mxu0
      %1673 = vmatpush.msra.mxu0 %v1403
      %1674 = vmatpush.msra.mxu0 %v1387
      %1675 = vmatpush.msra.mxu0 %v1371
      %1676 = vmatpush.msra.mxu0 %v1355
      %1677 = vmatpush.msra.mxu0 %v1339
      %1678 = vmatpush.msra.mxu0 %v1323
      %1679 = vmatpush.msra.mxu0 %v1307
      %1680 = vmatpush.msra.mxu0 %v1291
      %1681 = vmatpush.msra.mxu0 %v1275
      %1682 = vmatpush.msra.mxu0 %v1259
      %1683 = vmatpush.msra.mxu0 %v1243
      %1684 = vmatpush.msra.mxu0 %v1227
      %1685 = vmatpush.msra.mxu0 %v1211
      %1686 = vmatpush.msra.mxu0 %v1195
      %1687 = vmatpush.msra.mxu0 %v1179
      %1688 = vmatpush.msra.mxu0 %v1163
      %1689 = vmatmul.f32.gmra.mxu0 %v392
      %v1690 = vpop.f32.mrf.mxu0
      %v1691 = vadd.f32 %v1671, %v1690
      %1692 = vdwg.mxu0
      %1693 = vmatpush.msra.mxu0 %v636
      %1694 = vmatpush.msra.mxu0 %v620
      %1695 = vmatpush.msra.mxu0 %v604
      %1696 = vmatpush.msra.mxu0 %v588
      %1697 = vmatpush.msra.mxu0 %v572
      %1698 = vmatpush.msra.mxu0 %v556
      %1699 = vmatpush.msra.mxu0 %v540
      %1700 = vmatpush.msra.mxu0 %v524
      %1701 = vmatpush.msra.mxu0 %v508
      %1702 = vmatpush.msra.mxu0 %v492
      %1703 = vmatpush.msra.mxu0 %v476
      %1704 = vmatpush.msra.mxu0 %v460
      %1705 = vmatpush.msra.mxu0 %v444
      %1706 = vmatpush.msra.mxu0 %v428
      %1707 = vmatpush.msra.mxu0 %v412
      %1708 = vmatpush.msra.mxu0 %v396
      %1709 = vmatmul.f32.gmra.mxu0 %v389
      %v1710 = vpop.f32.mrf.mxu0
      %v1711 = vadd.f32 %v1424, %v1710
      %1712 = vdwg.mxu0
      %1713 = vmatpush.msra.mxu0 %v892
      %1714 = vmatpush.msra.mxu0 %v876
      %1715 = vmatpush.msra.mxu0 %v860
      %1716 = vmatpush.msra.mxu0 %v844
      %1717 = vmatpush.msra.mxu0 %v828
      %1718 = vmatpush.msra.mxu0 %v812
      %1719 = vmatpush.msra.mxu0 %v796
      %1720 = vmatpush.msra.mxu0 %v780
      %1721 = vmatpush.msra.mxu0 %v764
      %1722 = vmatpush.msra.mxu0 %v748
      %1723 = vmatpush.msra.mxu0 %v732
      %1724 = vmatpush.msra.mxu0 %v716
      %1725 = vmatpush.msra.mxu0 %v700
      %1726 = vmatpush.msra.mxu0 %v684
      %1727 = vmatpush.msra.mxu0 %v668
      %1728 = vmatpush.msra.mxu0 %v652
      %1729 = vmatmul.f32.gmra.mxu0 %v390
      %v1730 = vpop.f32.mrf.mxu0
      %v1731 = vadd.f32 %v1711, %v1730
      %1732 = vdwg.mxu0
      %1733 = vmatpush.msra.mxu0 %v1148
      %1734 = vmatpush.msra.mxu0 %v1132
      %1735 = vmatpush.msra.mxu0 %v1116
      %1736 = vmatpush.msra.mxu0 %v1100
      %1737 = vmatpush.msra.mxu0 %v1084
      %1738 = vmatpush.msra.mxu0 %v1068
      %1739 = vmatpush.msra.mxu0 %v1052
      %1740 = vmatpush.msra.mxu0 %v1036
      %1741 = vmatpush.msra.mxu0 %v1020
      %1742 = vmatpush.msra.mxu0 %v1004
      %1743 = vmatpush.msra.mxu0 %v988
      %1744 = vmatpush.msra.mxu0 %v972
      %1745 = vmatpush.msra.mxu0 %v956
      %1746 = vmatpush.msra.mxu0 %v940
      %1747 = vmatpush.msra.mxu0 %v924
      %1748 = vmatpush.msra.mxu0 %v908
      %1749 = vmatmul.f32.gmra.mxu0 %v391
      %v1750 = vpop.f32.mrf.mxu0
      %v1751 = vadd.f32 %v1731, %v1750
      %1752 = vdwg.mxu0
      %1753 = vmatpush.msra.mxu0 %v1404
      %1754 = vmatpush.msra.mxu0 %v1388
      %1755 = vmatpush.msra.mxu0 %v1372
      %1756 = vmatpush.msra.mxu0 %v1356
      %1757 = vmatpush.msra.mxu0 %v1340
      %1758 = vmatpush.msra.mxu0 %v1324
      %1759 = vmatpush.msra.mxu0 %v1308
      %1760 = vmatpush.msra.mxu0 %v1292
      %1761 = vmatpush.msra.mxu0 %v1276
      %1762 = vmatpush.msra.mxu0 %v1260
      %1763 = vmatpush.msra.mxu0 %v1244
      %1764 = vmatpush.msra.mxu0 %v1228
      %1765 = vmatpush.msra.mxu0 %v1212
      %1766 = vmatpush.msra.mxu0 %v1196
      %1767 = vmatpush.msra.mxu0 %v1180
      %1768 = vmatpush.msra.mxu0 %v1164
      %1769 = vmatmul.f32.gmra.mxu0 %v392
      %v1770 = vpop.f32.mrf.mxu0
      %v1771 = vadd.f32 %v1751, %v1770
      %1772 = vdwg.mxu0
      %1773 = vmatpush.msra.mxu0 %v637
      %1774 = vmatpush.msra.mxu0 %v621
      %1775 = vmatpush.msra.mxu0 %v605
      %1776 = vmatpush.msra.mxu0 %v589
      %1777 = vmatpush.msra.mxu0 %v573
      %1778 = vmatpush.msra.mxu0 %v557
      %1779 = vmatpush.msra.mxu0 %v541
      %1780 = vmatpush.msra.mxu0 %v525
      %1781 = vmatpush.msra.mxu0 %v509
      %1782 = vmatpush.msra.mxu0 %v493
      %1783 = vmatpush.msra.mxu0 %v477
      %1784 = vmatpush.msra.mxu0 %v461
      %1785 = vmatpush.msra.mxu0 %v445
      %1786 = vmatpush.msra.mxu0 %v429
      %1787 = vmatpush.msra.mxu0 %v413
      %1788 = vmatpush.msra.mxu0 %v397
      %1789 = vmatmul.f32.gmra.mxu0 %v389
      %v1790 = vpop.f32.mrf.mxu0
      %v1791 = vadd.f32 %v1425, %v1790
      %1792 = vdwg.mxu0
      %1793 = vmatpush.msra.mxu0 %v893
      %1794 = vmatpush.msra.mxu0 %v877
      %1795 = vmatpush.msra.mxu0 %v861
      %1796 = vmatpush.msra.mxu0 %v845
      %1797 = vmatpush.msra.mxu0 %v829
      %1798 = vmatpush.msra.mxu0 %v813
      %1799 = vmatpush.msra.mxu0 %v797
      %1800 = vmatpush.msra.mxu0 %v781
      %1801 = vmatpush.msra.mxu0 %v765
      %1802 = vmatpush.msra.mxu0 %v749
      %1803 = vmatpush.msra.mxu0 %v733
      %1804 = vmatpush.msra.mxu0 %v717
      %1805 = vmatpush.msra.mxu0 %v701
      %1806 = vmatpush.msra.mxu0 %v685
      %1807 = vmatpush.msra.mxu0 %v669
      %1808 = vmatpush.msra.mxu0 %v653
      %1809 = vmatmul.f32.gmra.mxu0 %v390
      %v1810 = vpop.f32.mrf.mxu0
      %v1811 = vadd.f32 %v1791, %v1810
      %1812 = vdwg.mxu0
      %1813 = vmatpush.msra.mxu0 %v1149
      %1814 = vmatpush.msra.mxu0 %v1133
      %1815 = vmatpush.msra.mxu0 %v1117
      %1816 = vmatpush.msra.mxu0 %v1101
      %1817 = vmatpush.msra.mxu0 %v1085
      %1818 = vmatpush.msra.mxu0 %v1069
      %1819 = vmatpush.msra.mxu0 %v1053
      %1820 = vmatpush.msra.mxu0 %v1037
      %1821 = vmatpush.msra.mxu0 %v1021
      %1822 = vmatpush.msra.mxu0 %v1005
      %1823 = vmatpush.msra.mxu0 %v989
      %1824 = vmatpush.msra.mxu0 %v973
      %1825 = vmatpush.msra.mxu0 %v957
      %1826 = vmatpush.msra.mxu0 %v941
      %1827 = vmatpush.msra.mxu0 %v925
      %1828 = vmatpush.msra.mxu0 %v909
      %1829 = vmatmul.f32.gmra.mxu0 %v391
      %v1830 = vpop.f32.mrf.mxu0
      %v1831 = vadd.f32 %v1811, %v1830
      %1832 = vdwg.mxu0
      %1833 = vmatpush.msra.mxu0 %v1405
      %1834 = vmatpush.msra.mxu0 %v1389
      %1835 = vmatpush.msra.mxu0 %v1373
      %1836 = vmatpush.msra.mxu0 %v1357
      %1837 = vmatpush.msra.mxu0 %v1341
      %1838 = vmatpush.msra.mxu0 %v1325
      %1839 = vmatpush.msra.mxu0 %v1309
      %1840 = vmatpush.msra.mxu0 %v1293
      %1841 = vmatpush.msra.mxu0 %v1277
      %1842 = vmatpush.msra.mxu0 %v1261
      %1843 = vmatpush.msra.mxu0 %v1245
      %1844 = vmatpush.msra.mxu0 %v1229
      %1845 = vmatpush.msra.mxu0 %v1213
      %1846 = vmatpush.msra.mxu0 %v1197
      %1847 = vmatpush.msra.mxu0 %v1181
      %1848 = vmatpush.msra.mxu0 %v1165
      %1849 = vmatmul.f32.gmra.mxu0 %v392
      %v1850 = vpop.f32.mrf.mxu0
      %v1851 = vadd.f32 %v1831, %v1850
      %1852 = vdwg.mxu0
      %1853 = vmatpush.msra.mxu0 %v638
      %1854 = vmatpush.msra.mxu0 %v622
      %1855 = vmatpush.msra.mxu0 %v606
      %1856 = vmatpush.msra.mxu0 %v590
      %1857 = vmatpush.msra.mxu0 %v574
      %1858 = vmatpush.msra.mxu0 %v558
      %1859 = vmatpush.msra.mxu0 %v542
      %1860 = vmatpush.msra.mxu0 %v526
      %1861 = vmatpush.msra.mxu0 %v510
      %1862 = vmatpush.msra.mxu0 %v494
      %1863 = vmatpush.msra.mxu0 %v478
      %1864 = vmatpush.msra.mxu0 %v462
      %1865 = vmatpush.msra.mxu0 %v446
      %1866 = vmatpush.msra.mxu0 %v430
      %1867 = vmatpush.msra.mxu0 %v414
      %1868 = vmatpush.msra.mxu0 %v398
      %1869 = vmatmul.f32.gmra.mxu0 %v389
      %v1870 = vpop.f32.mrf.mxu0
      %v1871 = vadd.f32 %v1426, %v1870
      %1872 = vdwg.mxu0
      %1873 = vmatpush.msra.mxu0 %v894
      %1874 = vmatpush.msra.mxu0 %v878
      %1875 = vmatpush.msra.mxu0 %v862
      %1876 = vmatpush.msra.mxu0 %v846
      %1877 = vmatpush.msra.mxu0 %v830
      %1878 = vmatpush.msra.mxu0 %v814
      %1879 = vmatpush.msra.mxu0 %v798
      %1880 = vmatpush.msra.mxu0 %v782
      %1881 = vmatpush.msra.mxu0 %v766
      %1882 = vmatpush.msra.mxu0 %v750
      %1883 = vmatpush.msra.mxu0 %v734
      %1884 = vmatpush.msra.mxu0 %v718
      %1885 = vmatpush.msra.mxu0 %v702
      %1886 = vmatpush.msra.mxu0 %v686
      %1887 = vmatpush.msra.mxu0 %v670
      %1888 = vmatpush.msra.mxu0 %v654
      %1889 = vmatmul.f32.gmra.mxu0 %v390
      %v1890 = vpop.f32.mrf.mxu0
      %v1891 = vadd.f32 %v1871, %v1890
      %1892 = vdwg.mxu0
      %1893 = vmatpush.msra.mxu0 %v1150
      %1894 = vmatpush.msra.mxu0 %v1134
      %1895 = vmatpush.msra.mxu0 %v1118
      %1896 = vmatpush.msra.mxu0 %v1102
      %1897 = vmatpush.msra.mxu0 %v1086
      %1898 = vmatpush.msra.mxu0 %v1070
      %1899 = vmatpush.msra.mxu0 %v1054
      %1900 = vmatpush.msra.mxu0 %v1038
      %1901 = vmatpush.msra.mxu0 %v1022
      %1902 = vmatpush.msra.mxu0 %v1006
      %1903 = vmatpush.msra.mxu0 %v990
      %1904 = vmatpush.msra.mxu0 %v974
      %1905 = vmatpush.msra.mxu0 %v958
      %1906 = vmatpush.msra.mxu0 %v942
      %1907 = vmatpush.msra.mxu0 %v926
      %1908 = vmatpush.msra.mxu0 %v910
      %1909 = vmatmul.f32.gmra.mxu0 %v391
      %v1910 = vpop.f32.mrf.mxu0
      %v1911 = vadd.f32 %v1891, %v1910
      %1912 = vdwg.mxu0
      %1913 = vmatpush.msra.mxu0 %v1406
      %1914 = vmatpush.msra.mxu0 %v1390
      %1915 = vmatpush.msra.mxu0 %v1374
      %1916 = vmatpush.msra.mxu0 %v1358
      %1917 = vmatpush.msra.mxu0 %v1342
      %1918 = vmatpush.msra.mxu0 %v1326
      %1919 = vmatpush.msra.mxu0 %v1310
      %1920 = vmatpush.msra.mxu0 %v1294
      %1921 = vmatpush.msra.mxu0 %v1278
      %1922 = vmatpush.msra.mxu0 %v1262
      %1923 = vmatpush.msra.mxu0 %v1246
      %1924 = vmatpush.msra.mxu0 %v1230
      %1925 = vmatpush.msra.mxu0 %v1214
      %1926 = vmatpush.msra.mxu0 %v1198
      %1927 = vmatpush.msra.mxu0 %v1182
      %1928 = vmatpush.msra.mxu0 %v1166
      %1929 = vmatmul.f32.gmra.mxu0 %v392
      %v1930 = vpop.f32.mrf.mxu0
      %v1931 = vadd.f32 %v1911, %v1930
      %1932 = vdwg.mxu0
      %1933 = vmatpush.msra.mxu0 %v639
      %1934 = vmatpush.msra.mxu0 %v623
      %1935 = vmatpush.msra.mxu0 %v607
      %1936 = vmatpush.msra.mxu0 %v591
      %1937 = vmatpush.msra.mxu0 %v575
      %1938 = vmatpush.msra.mxu0 %v559
      %1939 = vmatpush.msra.mxu0 %v543
      %1940 = vmatpush.msra.mxu0 %v527
      %1941 = vmatpush.msra.mxu0 %v511
      %1942 = vmatpush.msra.mxu0 %v495
      %1943 = vmatpush.msra.mxu0 %v479
      %1944 = vmatpush.msra.mxu0 %v463
      %1945 = vmatpush.msra.mxu0 %v447
      %1946 = vmatpush.msra.mxu0 %v431
      %1947 = vmatpush.msra.mxu0 %v415
      %1948 = vmatpush.msra.mxu0 %v399
      %1949 = vmatmul.f32.gmra.mxu0 %v389
      %v1950 = vpop.f32.mrf.mxu0
      %v1951 = vadd.f32 %v1427, %v1950
      %1952 = vdwg.mxu0
      %1953 = vmatpush.msra.mxu0 %v895
      %1954 = vmatpush.msra.mxu0 %v879
      %1955 = vmatpush.msra.mxu0 %v863
      %1956 = vmatpush.msra.mxu0 %v847
      %1957 = vmatpush.msra.mxu0 %v831
      %1958 = vmatpush.msra.mxu0 %v815
      %1959 = vmatpush.msra.mxu0 %v799
      %1960 = vmatpush.msra.mxu0 %v783
      %1961 = vmatpush.msra.mxu0 %v767
      %1962 = vmatpush.msra.mxu0 %v751
      %1963 = vmatpush.msra.mxu0 %v735
      %1964 = vmatpush.msra.mxu0 %v719
      %1965 = vmatpush.msra.mxu0 %v703
      %1966 = vmatpush.msra.mxu0 %v687
      %1967 = vmatpush.msra.mxu0 %v671
      %1968 = vmatpush.msra.mxu0 %v655
      %1969 = vmatmul.f32.gmra.mxu0 %v390
      %v1970 = vpop.f32.mrf.mxu0
      %v1971 = vadd.f32 %v1951, %v1970
      %1972 = vdwg.mxu0
      %1973 = vmatpush.msra.mxu0 %v1151
      %1974 = vmatpush.msra.mxu0 %v1135
      %1975 = vmatpush.msra.mxu0 %v1119
      %1976 = vmatpush.msra.mxu0 %v1103
      %1977 = vmatpush.msra.mxu0 %v1087
      %1978 = vmatpush.msra.mxu0 %v1071
      %1979 = vmatpush.msra.mxu0 %v1055
      %1980 = vmatpush.msra.mxu0 %v1039
      %1981 = vmatpush.msra.mxu0 %v1023
      %1982 = vmatpush.msra.mxu0 %v1007
      %1983 = vmatpush.msra.mxu0 %v991
      %1984 = vmatpush.msra.mxu0 %v975
      %1985 = vmatpush.msra.mxu0 %v959
      %1986 = vmatpush.msra.mxu0 %v943
      %1987 = vmatpush.msra.mxu0 %v927
      %1988 = vmatpush.msra.mxu0 %v911
      %1989 = vmatmul.f32.gmra.mxu0 %v391
      %v1990 = vpop.f32.mrf.mxu0
      %v1991 = vadd.f32 %v1971, %v1990
      %1992 = vdwg.mxu0
      %1993 = vmatpush.msra.mxu0 %v1407
      %1994 = vmatpush.msra.mxu0 %v1391
      %1995 = vmatpush.msra.mxu0 %v1375
      %1996 = vmatpush.msra.mxu0 %v1359
      %1997 = vmatpush.msra.mxu0 %v1343
      %1998 = vmatpush.msra.mxu0 %v1327
      %1999 = vmatpush.msra.mxu0 %v1311
      %2000 = vmatpush.msra.mxu0 %v1295
      %2001 = vmatpush.msra.mxu0 %v1279
      %2002 = vmatpush.msra.mxu0 %v1263
      %2003 = vmatpush.msra.mxu0 %v1247
      %2004 = vmatpush.msra.mxu0 %v1231
      %2005 = vmatpush.msra.mxu0 %v1215
      %2006 = vmatpush.msra.mxu0 %v1199
      %2007 = vmatpush.msra.mxu0 %v1183
      %2008 = vmatpush.msra.mxu0 %v1167
      %2009 = vmatmul.f32.gmra.mxu0 %v392
      %v2010 = vpop.f32.mrf.mxu0
      %v2011 = vadd.f32 %v1991, %v2010
      %2012 = vdwg.mxu0
      %2013 = vmatpush.msra.mxu0 %v640
      %2014 = vmatpush.msra.mxu0 %v624
      %2015 = vmatpush.msra.mxu0 %v608
      %2016 = vmatpush.msra.mxu0 %v592
      %2017 = vmatpush.msra.mxu0 %v576
      %2018 = vmatpush.msra.mxu0 %v560
      %2019 = vmatpush.msra.mxu0 %v544
      %2020 = vmatpush.msra.mxu0 %v528
      %2021 = vmatpush.msra.mxu0 %v512
      %2022 = vmatpush.msra.mxu0 %v496
      %2023 = vmatpush.msra.mxu0 %v480
      %2024 = vmatpush.msra.mxu0 %v464
      %2025 = vmatpush.msra.mxu0 %v448
      %2026 = vmatpush.msra.mxu0 %v432
      %2027 = vmatpush.msra.mxu0 %v416
      %2028 = vmatpush.msra.mxu0 %v400
      %2029 = vmatmul.f32.gmra.mxu0 %v389
      %v2030 = vpop.f32.mrf.mxu0
      %v2031 = vadd.f32 %v1428, %v2030
      %2032 = vdwg.mxu0
      %2033 = vmatpush.msra.mxu0 %v896
      %2034 = vmatpush.msra.mxu0 %v880
      %2035 = vmatpush.msra.mxu0 %v864
      %2036 = vmatpush.msra.mxu0 %v848
      %2037 = vmatpush.msra.mxu0 %v832
      %2038 = vmatpush.msra.mxu0 %v816
      %2039 = vmatpush.msra.mxu0 %v800
      %2040 = vmatpush.msra.mxu0 %v784
      %2041 = vmatpush.msra.mxu0 %v768
      %2042 = vmatpush.msra.mxu0 %v752
      %2043 = vmatpush.msra.mxu0 %v736
      %2044 = vmatpush.msra.mxu0 %v720
      %2045 = vmatpush.msra.mxu0 %v704
      %2046 = vmatpush.msra.mxu0 %v688
      %2047 = vmatpush.msra.mxu0 %v672
      %2048 = vmatpush.msra.mxu0 %v656
      %2049 = vmatmul.f32.gmra.mxu0 %v390
      %v2050 = vpop.f32.mrf.mxu0
      %v2051 = vadd.f32 %v2031, %v2050
      %2052 = vdwg.mxu0
      %2053 = vmatpush.msra.mxu0 %v1152
      %2054 = vmatpush.msra.mxu0 %v1136
      %2055 = vmatpush.msra.mxu0 %v1120
      %2056 = vmatpush.msra.mxu0 %v1104
      %2057 = vmatpush.msra.mxu0 %v1088
      %2058 = vmatpush.msra.mxu0 %v1072
      %2059 = vmatpush.msra.mxu0 %v1056
      %2060 = vmatpush.msra.mxu0 %v1040
      %2061 = vmatpush.msra.mxu0 %v1024
      %2062 = vmatpush.msra.mxu0 %v1008
      %2063 = vmatpush.msra.mxu0 %v992
      %2064 = vmatpush.msra.mxu0 %v976
      %2065 = vmatpush.msra.mxu0 %v960
      %2066 = vmatpush.msra.mxu0 %v944
      %2067 = vmatpush.msra.mxu0 %v928
      %2068 = vmatpush.msra.mxu0 %v912
      %2069 = vmatmul.f32.gmra.mxu0 %v391
      %v2070 = vpop.f32.mrf.mxu0
      %v2071 = vadd.f32 %v2051, %v2070
      %2072 = vdwg.mxu0
      %2073 = vmatpush.msra.mxu0 %v1408
      %2074 = vmatpush.msra.mxu0 %v1392
      %2075 = vmatpush.msra.mxu0 %v1376
      %2076 = vmatpush.msra.mxu0 %v1360
      %2077 = vmatpush.msra.mxu0 %v1344
      %2078 = vmatpush.msra.mxu0 %v1328
      %2079 = vmatpush.msra.mxu0 %v1312
      %2080 = vmatpush.msra.mxu0 %v1296
      %2081 = vmatpush.msra.mxu0 %v1280
      %2082 = vmatpush.msra.mxu0 %v1264
      %2083 = vmatpush.msra.mxu0 %v1248
      %2084 = vmatpush.msra.mxu0 %v1232
      %2085 = vmatpush.msra.mxu0 %v1216
      %2086 = vmatpush.msra.mxu0 %v1200
      %2087 = vmatpush.msra.mxu0 %v1184
      %2088 = vmatpush.msra.mxu0 %v1168
      %2089 = vmatmul.f32.gmra.mxu0 %v392
      %v2090 = vpop.f32.mrf.mxu0
      %v2091 = vadd.f32 %v2071, %v2090
      %2092 = vdwg.mxu0
      %2093 = vmatpush.msra.mxu0 %v641
      %2094 = vmatpush.msra.mxu0 %v625
      %2095 = vmatpush.msra.mxu0 %v609
      %2096 = vmatpush.msra.mxu0 %v593
      %2097 = vmatpush.msra.mxu0 %v577
      %2098 = vmatpush.msra.mxu0 %v561
      %2099 = vmatpush.msra.mxu0 %v545
      %2100 = vmatpush.msra.mxu0 %v529
      %2101 = vmatpush.msra.mxu0 %v513
      %2102 = vmatpush.msra.mxu0 %v497
      %2103 = vmatpush.msra.mxu0 %v481
      %2104 = vmatpush.msra.mxu0 %v465
      %2105 = vmatpush.msra.mxu0 %v449
      %2106 = vmatpush.msra.mxu0 %v433
      %2107 = vmatpush.msra.mxu0 %v417
      %2108 = vmatpush.msra.mxu0 %v401
      %2109 = vmatmul.f32.gmra.mxu0 %v389
      %v2110 = vpop.f32.mrf.mxu0
      %v2111 = vadd.f32 %v1429, %v2110
      %2112 = vdwg.mxu0
      %2113 = vmatpush.msra.mxu0 %v897
      %2114 = vmatpush.msra.mxu0 %v881
      %2115 = vmatpush.msra.mxu0 %v865
      %2116 = vmatpush.msra.mxu0 %v849
      %2117 = vmatpush.msra.mxu0 %v833
      %2118 = vmatpush.msra.mxu0 %v817
      %2119 = vmatpush.msra.mxu0 %v801
      %2120 = vmatpush.msra.mxu0 %v785
      %2121 = vmatpush.msra.mxu0 %v769
      %2122 = vmatpush.msra.mxu0 %v753
      %2123 = vmatpush.msra.mxu0 %v737
      %2124 = vmatpush.msra.mxu0 %v721
      %2125 = vmatpush.msra.mxu0 %v705
      %2126 = vmatpush.msra.mxu0 %v689
      %2127 = vmatpush.msra.mxu0 %v673
      %2128 = vmatpush.msra.mxu0 %v657
      %2129 = vmatmul.f32.gmra.mxu0 %v390
      %v2130 = vpop.f32.mrf.mxu0
      %v2131 = vadd.f32 %v2111, %v2130
      %2132 = vdwg.mxu0
      %2133 = vmatpush.msra.mxu0 %v1153
      %2134 = vmatpush.msra.mxu0 %v1137
      %2135 = vmatpush.msra.mxu0 %v1121
      %2136 = vmatpush.msra.mxu0 %v1105
      %2137 = vmatpush.msra.mxu0 %v1089
      %2138 = vmatpush.msra.mxu0 %v1073
      %2139 = vmatpush.msra.mxu0 %v1057
      %2140 = vmatpush.msra.mxu0 %v1041
      %2141 = vmatpush.msra.mxu0 %v1025
      %2142 = vmatpush.msra.mxu0 %v1009
      %2143 = vmatpush.msra.mxu0 %v993
      %2144 = vmatpush.msra.mxu0 %v977
      %2145 = vmatpush.msra.mxu0 %v961
      %2146 = vmatpush.msra.mxu0 %v945
      %2147 = vmatpush.msra.mxu0 %v929
      %2148 = vmatpush.msra.mxu0 %v913
      %2149 = vmatmul.f32.gmra.mxu0 %v391
      %v2150 = vpop.f32.mrf.mxu0
      %v2151 = vadd.f32 %v2131, %v2150
      %2152 = vdwg.mxu0
      %2153 = vmatpush.msra.mxu0 %v1409
      %2154 = vmatpush.msra.mxu0 %v1393
      %2155 = vmatpush.msra.mxu0 %v1377
      %2156 = vmatpush.msra.mxu0 %v1361
      %2157 = vmatpush.msra.mxu0 %v1345
      %2158 = vmatpush.msra.mxu0 %v1329
      %2159 = vmatpush.msra.mxu0 %v1313
      %2160 = vmatpush.msra.mxu0 %v1297
      %2161 = vmatpush.msra.mxu0 %v1281
      %2162 = vmatpush.msra.mxu0 %v1265
      %2163 = vmatpush.msra.mxu0 %v1249
      %2164 = vmatpush.msra.mxu0 %v1233
      %2165 = vmatpush.msra.mxu0 %v1217
      %2166 = vmatpush.msra.mxu0 %v1201
      %2167 = vmatpush.msra.mxu0 %v1185
      %2168 = vmatpush.msra.mxu0 %v1169
      %2169 = vmatmul.f32.gmra.mxu0 %v392
      %v2170 = vpop.f32.mrf.mxu0
      %v2171 = vadd.f32 %v2151, %v2170
      %2172 = vdwg.mxu0
      %2173 = vmatpush.msra.mxu0 %v642
      %2174 = vmatpush.msra.mxu0 %v626
      %2175 = vmatpush.msra.mxu0 %v610
      %2176 = vmatpush.msra.mxu0 %v594
      %2177 = vmatpush.msra.mxu0 %v578
      %2178 = vmatpush.msra.mxu0 %v562
      %2179 = vmatpush.msra.mxu0 %v546
      %2180 = vmatpush.msra.mxu0 %v530
      %2181 = vmatpush.msra.mxu0 %v514
      %2182 = vmatpush.msra.mxu0 %v498
      %2183 = vmatpush.msra.mxu0 %v482
      %2184 = vmatpush.msra.mxu0 %v466
      %2185 = vmatpush.msra.mxu0 %v450
      %2186 = vmatpush.msra.mxu0 %v434
      %2187 = vmatpush.msra.mxu0 %v418
      %2188 = vmatpush.msra.mxu0 %v402
      %2189 = vmatmul.f32.gmra.mxu0 %v389
      %v2190 = vpop.f32.mrf.mxu0
      %v2191 = vadd.f32 %v1430, %v2190
      %2192 = vdwg.mxu0
      %2193 = vmatpush.msra.mxu0 %v898
      %2194 = vmatpush.msra.mxu0 %v882
      %2195 = vmatpush.msra.mxu0 %v866
      %2196 = vmatpush.msra.mxu0 %v850
      %2197 = vmatpush.msra.mxu0 %v834
      %2198 = vmatpush.msra.mxu0 %v818
      %2199 = vmatpush.msra.mxu0 %v802
      %2200 = vmatpush.msra.mxu0 %v786
      %2201 = vmatpush.msra.mxu0 %v770
      %2202 = vmatpush.msra.mxu0 %v754
      %2203 = vmatpush.msra.mxu0 %v738
      %2204 = vmatpush.msra.mxu0 %v722
      %2205 = vmatpush.msra.mxu0 %v706
      %2206 = vmatpush.msra.mxu0 %v690
      %2207 = vmatpush.msra.mxu0 %v674
      %2208 = vmatpush.msra.mxu0 %v658
      %2209 = vmatmul.f32.gmra.mxu0 %v390
      %v2210 = vpop.f32.mrf.mxu0
      %v2211 = vadd.f32 %v2191, %v2210
      %2212 = vdwg.mxu0
      %2213 = vmatpush.msra.mxu0 %v1154
      %2214 = vmatpush.msra.mxu0 %v1138
      %2215 = vmatpush.msra.mxu0 %v1122
      %2216 = vmatpush.msra.mxu0 %v1106
      %2217 = vmatpush.msra.mxu0 %v1090
      %2218 = vmatpush.msra.mxu0 %v1074
      %2219 = vmatpush.msra.mxu0 %v1058
      %2220 = vmatpush.msra.mxu0 %v1042
      %2221 = vmatpush.msra.mxu0 %v1026
      %2222 = vmatpush.msra.mxu0 %v1010
      %2223 = vmatpush.msra.mxu0 %v994
      %2224 = vmatpush.msra.mxu0 %v978
      %2225 = vmatpush.msra.mxu0 %v962
      %2226 = vmatpush.msra.mxu0 %v946
      %2227 = vmatpush.msra.mxu0 %v930
      %2228 = vmatpush.msra.mxu0 %v914
      %2229 = vmatmul.f32.gmra.mxu0 %v391
      %v2230 = vpop.f32.mrf.mxu0
      %v2231 = vadd.f32 %v2211, %v2230
      %2232 = vdwg.mxu0
      %2233 = vmatpush.msra.mxu0 %v1410
      %2234 = vmatpush.msra.mxu0 %v1394
      %2235 = vmatpush.msra.mxu0 %v1378
      %2236 = vmatpush.msra.mxu0 %v1362
      %2237 = vmatpush.msra.mxu0 %v1346
      %2238 = vmatpush.msra.mxu0 %v1330
      %2239 = vmatpush.msra.mxu0 %v1314
      %2240 = vmatpush.msra.mxu0 %v1298
      %2241 = vmatpush.msra.mxu0 %v1282
      %2242 = vmatpush.msra.mxu0 %v1266
      %2243 = vmatpush.msra.mxu0 %v1250
      %2244 = vmatpush.msra.mxu0 %v1234
      %2245 = vmatpush.msra.mxu0 %v1218
      %2246 = vmatpush.msra.mxu0 %v1202
      %2247 = vmatpush.msra.mxu0 %v1186
      %2248 = vmatpush.msra.mxu0 %v1170
      %2249 = vmatmul.f32.gmra.mxu0 %v392
      %v2250 = vpop.f32.mrf.mxu0
      %v2251 = vadd.f32 %v2231, %v2250
      %2252 = vdwg.mxu0
      %2253 = vmatpush.msra.mxu0 %v643
      %2254 = vmatpush.msra.mxu0 %v627
      %2255 = vmatpush.msra.mxu0 %v611
      %2256 = vmatpush.msra.mxu0 %v595
      %2257 = vmatpush.msra.mxu0 %v579
      %2258 = vmatpush.msra.mxu0 %v563
      %2259 = vmatpush.msra.mxu0 %v547
      %2260 = vmatpush.msra.mxu0 %v531
      %2261 = vmatpush.msra.mxu0 %v515
      %2262 = vmatpush.msra.mxu0 %v499
      %2263 = vmatpush.msra.mxu0 %v483
      %2264 = vmatpush.msra.mxu0 %v467
      %2265 = vmatpush.msra.mxu0 %v451
      %2266 = vmatpush.msra.mxu0 %v435
      %2267 = vmatpush.msra.mxu0 %v419
      %2268 = vmatpush.msra.mxu0 %v403
      %2269 = vmatmul.f32.gmra.mxu0 %v389
      %v2270 = vpop.f32.mrf.mxu0
      %v2271 = vadd.f32 %v1431, %v2270
      %2272 = vdwg.mxu0
      %2273 = vmatpush.msra.mxu0 %v899
      %2274 = vmatpush.msra.mxu0 %v883
      %2275 = vmatpush.msra.mxu0 %v867
      %2276 = vmatpush.msra.mxu0 %v851
      %2277 = vmatpush.msra.mxu0 %v835
      %2278 = vmatpush.msra.mxu0 %v819
      %2279 = vmatpush.msra.mxu0 %v803
      %2280 = vmatpush.msra.mxu0 %v787
      %2281 = vmatpush.msra.mxu0 %v771
      %2282 = vmatpush.msra.mxu0 %v755
      %2283 = vmatpush.msra.mxu0 %v739
      %2284 = vmatpush.msra.mxu0 %v723
      %2285 = vmatpush.msra.mxu0 %v707
      %2286 = vmatpush.msra.mxu0 %v691
      %2287 = vmatpush.msra.mxu0 %v675
      %2288 = vmatpush.msra.mxu0 %v659
      %2289 = vmatmul.f32.gmra.mxu0 %v390
      %v2290 = vpop.f32.mrf.mxu0
      %v2291 = vadd.f32 %v2271, %v2290
      %2292 = vdwg.mxu0
      %2293 = vmatpush.msra.mxu0 %v1155
      %2294 = vmatpush.msra.mxu0 %v1139
      %2295 = vmatpush.msra.mxu0 %v1123
      %2296 = vmatpush.msra.mxu0 %v1107
      %2297 = vmatpush.msra.mxu0 %v1091
      %2298 = vmatpush.msra.mxu0 %v1075
      %2299 = vmatpush.msra.mxu0 %v1059
      %2300 = vmatpush.msra.mxu0 %v1043
      %2301 = vmatpush.msra.mxu0 %v1027
      %2302 = vmatpush.msra.mxu0 %v1011
      %2303 = vmatpush.msra.mxu0 %v995
      %2304 = vmatpush.msra.mxu0 %v979
      %2305 = vmatpush.msra.mxu0 %v963
      %2306 = vmatpush.msra.mxu0 %v947
      %2307 = vmatpush.msra.mxu0 %v931
      %2308 = vmatpush.msra.mxu0 %v915
      %2309 = vmatmul.f32.gmra.mxu0 %v391
      %v2310 = vpop.f32.mrf.mxu0
      %v2311 = vadd.f32 %v2291, %v2310
      %2312 = vdwg.mxu0
      %2313 = vmatpush.msra.mxu0 %v1411
      %2314 = vmatpush.msra.mxu0 %v1395
      %2315 = vmatpush.msra.mxu0 %v1379
      %2316 = vmatpush.msra.mxu0 %v1363
      %2317 = vmatpush.msra.mxu0 %v1347
      %2318 = vmatpush.msra.mxu0 %v1331
      %2319 = vmatpush.msra.mxu0 %v1315
      %2320 = vmatpush.msra.mxu0 %v1299
      %2321 = vmatpush.msra.mxu0 %v1283
      %2322 = vmatpush.msra.mxu0 %v1267
      %2323 = vmatpush.msra.mxu0 %v1251
      %2324 = vmatpush.msra.mxu0 %v1235
      %2325 = vmatpush.msra.mxu0 %v1219
      %2326 = vmatpush.msra.mxu0 %v1203
      %2327 = vmatpush.msra.mxu0 %v1187
      %2328 = vmatpush.msra.mxu0 %v1171
      %2329 = vmatmul.f32.gmra.mxu0 %v392
      %v2330 = vpop.f32.mrf.mxu0
      %v2331 = vadd.f32 %v2311, %v2330
      %2332 = vdwg.mxu0
      %2333 = vmatpush.msra.mxu0 %v644
      %2334 = vmatpush.msra.mxu0 %v628
      %2335 = vmatpush.msra.mxu0 %v612
      %2336 = vmatpush.msra.mxu0 %v596
      %2337 = vmatpush.msra.mxu0 %v580
      %2338 = vmatpush.msra.mxu0 %v564
      %2339 = vmatpush.msra.mxu0 %v548
      %2340 = vmatpush.msra.mxu0 %v532
      %2341 = vmatpush.msra.mxu0 %v516
      %2342 = vmatpush.msra.mxu0 %v500
      %2343 = vmatpush.msra.mxu0 %v484
      %2344 = vmatpush.msra.mxu0 %v468
      %2345 = vmatpush.msra.mxu0 %v452
      %2346 = vmatpush.msra.mxu0 %v436
      %2347 = vmatpush.msra.mxu0 %v420
      %2348 = vmatpush.msra.mxu0 %v404
      %2349 = vmatmul.f32.gmra.mxu0 %v389
      %v2350 = vpop.f32.mrf.mxu0
      %v2351 = vadd.f32 %v1432, %v2350
      %2352 = vdwg.mxu0
      %2353 = vmatpush.msra.mxu0 %v900
      %2354 = vmatpush.msra.mxu0 %v884
      %2355 = vmatpush.msra.mxu0 %v868
      %2356 = vmatpush.msra.mxu0 %v852
      %2357 = vmatpush.msra.mxu0 %v836
      %2358 = vmatpush.msra.mxu0 %v820
      %2359 = vmatpush.msra.mxu0 %v804
      %2360 = vmatpush.msra.mxu0 %v788
      %2361 = vmatpush.msra.mxu0 %v772
      %2362 = vmatpush.msra.mxu0 %v756
      %2363 = vmatpush.msra.mxu0 %v740
      %2364 = vmatpush.msra.mxu0 %v724
      %2365 = vmatpush.msra.mxu0 %v708
      %2366 = vmatpush.msra.mxu0 %v692
      %2367 = vmatpush.msra.mxu0 %v676
      %2368 = vmatpush.msra.mxu0 %v660
      %2369 = vmatmul.f32.gmra.mxu0 %v390
      %v2370 = vpop.f32.mrf.mxu0
      %v2371 = vadd.f32 %v2351, %v2370
      %2372 = vdwg.mxu0
      %2373 = vmatpush.msra.mxu0 %v1156
      %2374 = vmatpush.msra.mxu0 %v1140
      %2375 = vmatpush.msra.mxu0 %v1124
      %2376 = vmatpush.msra.mxu0 %v1108
      %2377 = vmatpush.msra.mxu0 %v1092
      %2378 = vmatpush.msra.mxu0 %v1076
      %2379 = vmatpush.msra.mxu0 %v1060
      %2380 = vmatpush.msra.mxu0 %v1044
      %2381 = vmatpush.msra.mxu0 %v1028
      %2382 = vmatpush.msra.mxu0 %v1012
      %2383 = vmatpush.msra.mxu0 %v996
      %2384 = vmatpush.msra.mxu0 %v980
      %2385 = vmatpush.msra.mxu0 %v964
      %2386 = vmatpush.msra.mxu0 %v948
      %2387 = vmatpush.msra.mxu0 %v932
      %2388 = vmatpush.msra.mxu0 %v916
      %2389 = vmatmul.f32.gmra.mxu0 %v391
      %v2390 = vpop.f32.mrf.mxu0
      %v2391 = vadd.f32 %v2371, %v2390
      %2392 = vdwg.mxu0
      %2393 = vmatpush.msra.mxu0 %v1412
      %2394 = vmatpush.msra.mxu0 %v1396
      %2395 = vmatpush.msra.mxu0 %v1380
      %2396 = vmatpush.msra.mxu0 %v1364
      %2397 = vmatpush.msra.mxu0 %v1348
      %2398 = vmatpush.msra.mxu0 %v1332
      %2399 = vmatpush.msra.mxu0 %v1316
      %2400 = vmatpush.msra.mxu0 %v1300
      %2401 = vmatpush.msra.mxu0 %v1284
      %2402 = vmatpush.msra.mxu0 %v1268
      %2403 = vmatpush.msra.mxu0 %v1252
      %2404 = vmatpush.msra.mxu0 %v1236
      %2405 = vmatpush.msra.mxu0 %v1220
      %2406 = vmatpush.msra.mxu0 %v1204
      %2407 = vmatpush.msra.mxu0 %v1188
      %2408 = vmatpush.msra.mxu0 %v1172
      %2409 = vmatmul.f32.gmra.mxu0 %v392
      %v2410 = vpop.f32.mrf.mxu0
      %v2411 = vadd.f32 %v2391, %v2410
      %2412 = vdwg.mxu0
      %2413 = vmatpush.msra.mxu0 %v645
      %2414 = vmatpush.msra.mxu0 %v629
      %2415 = vmatpush.msra.mxu0 %v613
      %2416 = vmatpush.msra.mxu0 %v597
      %2417 = vmatpush.msra.mxu0 %v581
      %2418 = vmatpush.msra.mxu0 %v565
      %2419 = vmatpush.msra.mxu0 %v549
      %2420 = vmatpush.msra.mxu0 %v533
      %2421 = vmatpush.msra.mxu0 %v517
      %2422 = vmatpush.msra.mxu0 %v501
      %2423 = vmatpush.msra.mxu0 %v485
      %2424 = vmatpush.msra.mxu0 %v469
      %2425 = vmatpush.msra.mxu0 %v453
      %2426 = vmatpush.msra.mxu0 %v437
      %2427 = vmatpush.msra.mxu0 %v421
      %2428 = vmatpush.msra.mxu0 %v405
      %2429 = vmatmul.f32.gmra.mxu0 %v389
      %v2430 = vpop.f32.mrf.mxu0
      %v2431 = vadd.f32 %v1433, %v2430
      %2432 = vdwg.mxu0
      %2433 = vmatpush.msra.mxu0 %v901
      %2434 = vmatpush.msra.mxu0 %v885
      %2435 = vmatpush.msra.mxu0 %v869
      %2436 = vmatpush.msra.mxu0 %v853
      %2437 = vmatpush.msra.mxu0 %v837
      %2438 = vmatpush.msra.mxu0 %v821
      %2439 = vmatpush.msra.mxu0 %v805
      %2440 = vmatpush.msra.mxu0 %v789
      %2441 = vmatpush.msra.mxu0 %v773
      %2442 = vmatpush.msra.mxu0 %v757
      %2443 = vmatpush.msra.mxu0 %v741
      %2444 = vmatpush.msra.mxu0 %v725
      %2445 = vmatpush.msra.mxu0 %v709
      %2446 = vmatpush.msra.mxu0 %v693
      %2447 = vmatpush.msra.mxu0 %v677
      %2448 = vmatpush.msra.mxu0 %v661
      %2449 = vmatmul.f32.gmra.mxu0 %v390
      %v2450 = vpop.f32.mrf.mxu0
      %v2451 = vadd.f32 %v2431, %v2450
      %2452 = vdwg.mxu0
      %2453 = vmatpush.msra.mxu0 %v1157
      %2454 = vmatpush.msra.mxu0 %v1141
      %2455 = vmatpush.msra.mxu0 %v1125
      %2456 = vmatpush.msra.mxu0 %v1109
      %2457 = vmatpush.msra.mxu0 %v1093
      %2458 = vmatpush.msra.mxu0 %v1077
      %2459 = vmatpush.msra.mxu0 %v1061
      %2460 = vmatpush.msra.mxu0 %v1045
      %2461 = vmatpush.msra.mxu0 %v1029
      %2462 = vmatpush.msra.mxu0 %v1013
      %2463 = vmatpush.msra.mxu0 %v997
      %2464 = vmatpush.msra.mxu0 %v981
      %2465 = vmatpush.msra.mxu0 %v965
      %2466 = vmatpush.msra.mxu0 %v949
      %2467 = vmatpush.msra.mxu0 %v933
      %2468 = vmatpush.msra.mxu0 %v917
      %2469 = vmatmul.f32.gmra.mxu0 %v391
      %v2470 = vpop.f32.mrf.mxu0
      %v2471 = vadd.f32 %v2451, %v2470
      %2472 = vdwg.mxu0
      %2473 = vmatpush.msra.mxu0 %v1413
      %2474 = vmatpush.msra.mxu0 %v1397
      %2475 = vmatpush.msra.mxu0 %v1381
      %2476 = vmatpush.msra.mxu0 %v1365
      %2477 = vmatpush.msra.mxu0 %v1349
      %2478 = vmatpush.msra.mxu0 %v1333
      %2479 = vmatpush.msra.mxu0 %v1317
      %2480 = vmatpush.msra.mxu0 %v1301
      %2481 = vmatpush.msra.mxu0 %v1285
      %2482 = vmatpush.msra.mxu0 %v1269
      %2483 = vmatpush.msra.mxu0 %v1253
      %2484 = vmatpush.msra.mxu0 %v1237
      %2485 = vmatpush.msra.mxu0 %v1221
      %2486 = vmatpush.msra.mxu0 %v1205
      %2487 = vmatpush.msra.mxu0 %v1189
      %2488 = vmatpush.msra.mxu0 %v1173
      %2489 = vmatmul.f32.gmra.mxu0 %v392
      %v2490 = vpop.f32.mrf.mxu0
      %v2491 = vadd.f32 %v2471, %v2490
      %2492 = vdwg.mxu0
      %2493 = vmatpush.msra.mxu0 %v646
      %2494 = vmatpush.msra.mxu0 %v630
      %2495 = vmatpush.msra.mxu0 %v614
      %2496 = vmatpush.msra.mxu0 %v598
      %2497 = vmatpush.msra.mxu0 %v582
      %2498 = vmatpush.msra.mxu0 %v566
      %2499 = vmatpush.msra.mxu0 %v550
      %2500 = vmatpush.msra.mxu0 %v534
      %2501 = vmatpush.msra.mxu0 %v518
      %2502 = vmatpush.msra.mxu0 %v502
      %2503 = vmatpush.msra.mxu0 %v486
      %2504 = vmatpush.msra.mxu0 %v470
      %2505 = vmatpush.msra.mxu0 %v454
      %2506 = vmatpush.msra.mxu0 %v438
      %2507 = vmatpush.msra.mxu0 %v422
      %2508 = vmatpush.msra.mxu0 %v406
      %2509 = vmatmul.f32.gmra.mxu0 %v389
      %v2510 = vpop.f32.mrf.mxu0
      %v2511 = vadd.f32 %v1434, %v2510
      %2512 = vdwg.mxu0
      %2513 = vmatpush.msra.mxu0 %v902
      %2514 = vmatpush.msra.mxu0 %v886
      %2515 = vmatpush.msra.mxu0 %v870
      %2516 = vmatpush.msra.mxu0 %v854
      %2517 = vmatpush.msra.mxu0 %v838
      %2518 = vmatpush.msra.mxu0 %v822
      %2519 = vmatpush.msra.mxu0 %v806
      %2520 = vmatpush.msra.mxu0 %v790
      %2521 = vmatpush.msra.mxu0 %v774
      %2522 = vmatpush.msra.mxu0 %v758
      %2523 = vmatpush.msra.mxu0 %v742
      %2524 = vmatpush.msra.mxu0 %v726
      %2525 = vmatpush.msra.mxu0 %v710
      %2526 = vmatpush.msra.mxu0 %v694
      %2527 = vmatpush.msra.mxu0 %v678
      %2528 = vmatpush.msra.mxu0 %v662
      %2529 = vmatmul.f32.gmra.mxu0 %v390
      %v2530 = vpop.f32.mrf.mxu0
      %v2531 = vadd.f32 %v2511, %v2530
      %2532 = vdwg.mxu0
      %2533 = vmatpush.msra.mxu0 %v1158
      %2534 = vmatpush.msra.mxu0 %v1142
      %2535 = vmatpush.msra.mxu0 %v1126
      %2536 = vmatpush.msra.mxu0 %v1110
      %2537 = vmatpush.msra.mxu0 %v1094
      %2538 = vmatpush.msra.mxu0 %v1078
      %2539 = vmatpush.msra.mxu0 %v1062
      %2540 = vmatpush.msra.mxu0 %v1046
      %2541 = vmatpush.msra.mxu0 %v1030
      %2542 = vmatpush.msra.mxu0 %v1014
      %2543 = vmatpush.msra.mxu0 %v998
      %2544 = vmatpush.msra.mxu0 %v982
      %2545 = vmatpush.msra.mxu0 %v966
      %2546 = vmatpush.msra.mxu0 %v950
      %2547 = vmatpush.msra.mxu0 %v934
      %2548 = vmatpush.msra.mxu0 %v918
      %2549 = vmatmul.f32.gmra.mxu0 %v391
      %v2550 = vpop.f32.mrf.mxu0
      %v2551 = vadd.f32 %v2531, %v2550
      %2552 = vdwg.mxu0
      %2553 = vmatpush.msra.mxu0 %v1414
      %2554 = vmatpush.msra.mxu0 %v1398
      %2555 = vmatpush.msra.mxu0 %v1382
      %2556 = vmatpush.msra.mxu0 %v1366
      %2557 = vmatpush.msra.mxu0 %v1350
      %2558 = vmatpush.msra.mxu0 %v1334
      %2559 = vmatpush.msra.mxu0 %v1318
      %2560 = vmatpush.msra.mxu0 %v1302
      %2561 = vmatpush.msra.mxu0 %v1286
      %2562 = vmatpush.msra.mxu0 %v1270
      %2563 = vmatpush.msra.mxu0 %v1254
      %2564 = vmatpush.msra.mxu0 %v1238
      %2565 = vmatpush.msra.mxu0 %v1222
      %2566 = vmatpush.msra.mxu0 %v1206
      %2567 = vmatpush.msra.mxu0 %v1190
      %2568 = vmatpush.msra.mxu0 %v1174
      %2569 = vmatmul.f32.gmra.mxu0 %v392
      %v2570 = vpop.f32.mrf.mxu0
      %v2571 = vadd.f32 %v2551, %v2570
      %2572 = vdwg.mxu0
      %2573 = vmatpush.msra.mxu0 %v647
      %2574 = vmatpush.msra.mxu0 %v631
      %2575 = vmatpush.msra.mxu0 %v615
      %2576 = vmatpush.msra.mxu0 %v599
      %2577 = vmatpush.msra.mxu0 %v583
      %2578 = vmatpush.msra.mxu0 %v567
      %2579 = vmatpush.msra.mxu0 %v551
      %2580 = vmatpush.msra.mxu0 %v535
      %2581 = vmatpush.msra.mxu0 %v519
      %2582 = vmatpush.msra.mxu0 %v503
      %2583 = vmatpush.msra.mxu0 %v487
      %2584 = vmatpush.msra.mxu0 %v471
      %2585 = vmatpush.msra.mxu0 %v455
      %2586 = vmatpush.msra.mxu0 %v439
      %2587 = vmatpush.msra.mxu0 %v423
      %2588 = vmatpush.msra.mxu0 %v407
      %2589 = vmatmul.f32.gmra.mxu0 %v389
      %v2590 = vpop.f32.mrf.mxu0
      %v2591 = vadd.f32 %v1435, %v2590
      %2592 = vdwg.mxu0
      %2593 = vmatpush.msra.mxu0 %v903
      %2594 = vmatpush.msra.mxu0 %v887
      %2595 = vmatpush.msra.mxu0 %v871
      %2596 = vmatpush.msra.mxu0 %v855
      %2597 = vmatpush.msra.mxu0 %v839
      %2598 = vmatpush.msra.mxu0 %v823
      %2599 = vmatpush.msra.mxu0 %v807
      %2600 = vmatpush.msra.mxu0 %v791
      %2601 = vmatpush.msra.mxu0 %v775
      %2602 = vmatpush.msra.mxu0 %v759
      %2603 = vmatpush.msra.mxu0 %v743
      %2604 = vmatpush.msra.mxu0 %v727
      %2605 = vmatpush.msra.mxu0 %v711
      %2606 = vmatpush.msra.mxu0 %v695
      %2607 = vmatpush.msra.mxu0 %v679
      %2608 = vmatpush.msra.mxu0 %v663
      %2609 = vmatmul.f32.gmra.mxu0 %v390
      %v2610 = vpop.f32.mrf.mxu0
      %v2611 = vadd.f32 %v2591, %v2610
      %2612 = vdwg.mxu0
      %2613 = vmatpush.msra.mxu0 %v1159
      %2614 = vmatpush.msra.mxu0 %v1143
      %2615 = vmatpush.msra.mxu0 %v1127
      %2616 = vmatpush.msra.mxu0 %v1111
      %2617 = vmatpush.msra.mxu0 %v1095
      %2618 = vmatpush.msra.mxu0 %v1079
      %2619 = vmatpush.msra.mxu0 %v1063
      %2620 = vmatpush.msra.mxu0 %v1047
      %2621 = vmatpush.msra.mxu0 %v1031
      %2622 = vmatpush.msra.mxu0 %v1015
      %2623 = vmatpush.msra.mxu0 %v999
      %2624 = vmatpush.msra.mxu0 %v983
      %2625 = vmatpush.msra.mxu0 %v967
      %2626 = vmatpush.msra.mxu0 %v951
      %2627 = vmatpush.msra.mxu0 %v935
      %2628 = vmatpush.msra.mxu0 %v919
      %2629 = vmatmul.f32.gmra.mxu0 %v391
      %v2630 = vpop.f32.mrf.mxu0
      %v2631 = vadd.f32 %v2611, %v2630
      %2632 = vdwg.mxu0
      %2633 = vmatpush.msra.mxu0 %v1415
      %2634 = vmatpush.msra.mxu0 %v1399
      %2635 = vmatpush.msra.mxu0 %v1383
      %2636 = vmatpush.msra.mxu0 %v1367
      %2637 = vmatpush.msra.mxu0 %v1351
      %2638 = vmatpush.msra.mxu0 %v1335
      %2639 = vmatpush.msra.mxu0 %v1319
      %2640 = vmatpush.msra.mxu0 %v1303
      %2641 = vmatpush.msra.mxu0 %v1287
      %2642 = vmatpush.msra.mxu0 %v1271
      %2643 = vmatpush.msra.mxu0 %v1255
      %2644 = vmatpush.msra.mxu0 %v1239
      %2645 = vmatpush.msra.mxu0 %v1223
      %2646 = vmatpush.msra.mxu0 %v1207
      %2647 = vmatpush.msra.mxu0 %v1191
      %2648 = vmatpush.msra.mxu0 %v1175
      %2649 = vmatmul.f32.gmra.mxu0 %v392
      %v2650 = vpop.f32.mrf.mxu0
      %v2651 = vadd.f32 %v2631, %v2650
      %2652 = vdwg.mxu0
      %2653 = vmatpush.msra.mxu0 %v648
      %2654 = vmatpush.msra.mxu0 %v632
      %2655 = vmatpush.msra.mxu0 %v616
      %2656 = vmatpush.msra.mxu0 %v600
      %2657 = vmatpush.msra.mxu0 %v584
      %2658 = vmatpush.msra.mxu0 %v568
      %2659 = vmatpush.msra.mxu0 %v552
      %2660 = vmatpush.msra.mxu0 %v536
      %2661 = vmatpush.msra.mxu0 %v520
      %2662 = vmatpush.msra.mxu0 %v504
      %2663 = vmatpush.msra.mxu0 %v488
      %2664 = vmatpush.msra.mxu0 %v472
      %2665 = vmatpush.msra.mxu0 %v456
      %2666 = vmatpush.msra.mxu0 %v440
      %2667 = vmatpush.msra.mxu0 %v424
      %2668 = vmatpush.msra.mxu0 %v408
      %2669 = vmatmul.f32.gmra.mxu0 %v389
      %v2670 = vpop.f32.mrf.mxu0
      %v2671 = vadd.f32 %v1436, %v2670
      %2672 = vdwg.mxu0
      %2673 = vmatpush.msra.mxu0 %v904
      %2674 = vmatpush.msra.mxu0 %v888
      %2675 = vmatpush.msra.mxu0 %v872
      %2676 = vmatpush.msra.mxu0 %v856
      %2677 = vmatpush.msra.mxu0 %v840
      %2678 = vmatpush.msra.mxu0 %v824
      %2679 = vmatpush.msra.mxu0 %v808
      %2680 = vmatpush.msra.mxu0 %v792
      %2681 = vmatpush.msra.mxu0 %v776
      %2682 = vmatpush.msra.mxu0 %v760
      %2683 = vmatpush.msra.mxu0 %v744
      %2684 = vmatpush.msra.mxu0 %v728
      %2685 = vmatpush.msra.mxu0 %v712
      %2686 = vmatpush.msra.mxu0 %v696
      %2687 = vmatpush.msra.mxu0 %v680
      %2688 = vmatpush.msra.mxu0 %v664
      %2689 = vmatmul.f32.gmra.mxu0 %v390
      %v2690 = vpop.f32.mrf.mxu0
      %v2691 = vadd.f32 %v2671, %v2690
      %2692 = vdwg.mxu0
      %2693 = vmatpush.msra.mxu0 %v1160
      %2694 = vmatpush.msra.mxu0 %v1144
      %2695 = vmatpush.msra.mxu0 %v1128
      %2696 = vmatpush.msra.mxu0 %v1112
      %2697 = vmatpush.msra.mxu0 %v1096
      %2698 = vmatpush.msra.mxu0 %v1080
      %2699 = vmatpush.msra.mxu0 %v1064
      %2700 = vmatpush.msra.mxu0 %v1048
      %2701 = vmatpush.msra.mxu0 %v1032
      %2702 = vmatpush.msra.mxu0 %v1016
      %2703 = vmatpush.msra.mxu0 %v1000
      %2704 = vmatpush.msra.mxu0 %v984
      %2705 = vmatpush.msra.mxu0 %v968
      %2706 = vmatpush.msra.mxu0 %v952
      %2707 = vmatpush.msra.mxu0 %v936
      %2708 = vmatpush.msra.mxu0 %v920
      %2709 = vmatmul.f32.gmra.mxu0 %v391
      %v2710 = vpop.f32.mrf.mxu0
      %v2711 = vadd.f32 %v2691, %v2710
      %2712 = vdwg.mxu0
      %2713 = vmatpush.msra.mxu0 %v1416
      %2714 = vmatpush.msra.mxu0 %v1400
      %2715 = vmatpush.msra.mxu0 %v1384
      %2716 = vmatpush.msra.mxu0 %v1368
      %2717 = vmatpush.msra.mxu0 %v1352
      %2718 = vmatpush.msra.mxu0 %v1336
      %2719 = vmatpush.msra.mxu0 %v1320
      %2720 = vmatpush.msra.mxu0 %v1304
      %2721 = vmatpush.msra.mxu0 %v1288
      %2722 = vmatpush.msra.mxu0 %v1272
      %2723 = vmatpush.msra.mxu0 %v1256
      %2724 = vmatpush.msra.mxu0 %v1240
      %2725 = vmatpush.msra.mxu0 %v1224
      %2726 = vmatpush.msra.mxu0 %v1208
      %2727 = vmatpush.msra.mxu0 %v1192
      %2728 = vmatpush.msra.mxu0 %v1176
      %2729 = vmatmul.f32.gmra.mxu0 %v392
      %v2730 = vpop.f32.mrf.mxu0
      %v2731 = vadd.f32 %v2711, %v2730
      %2732 = vdwg.mxu0
      %v2733 = vtanh.pop %v1531
      %v2734 = vtanh.pop %v1611
      %v2735 = vtanh.pop %v1691
      %v2736 = vtanh.pop %v1771
      %v2737 = vtanh.pop %v1851
      %v2738 = vtanh.pop %v1931
      %v2739 = vtanh.pop %v2011
      %v2740 = vtanh.pop %v2091
      %v2741 = vtanh.pop %v2171
      %v2742 = vtanh.pop %v2251
      %v2743 = vtanh.pop %v2331
      %v2744 = vtanh.pop %v2411
      %v2745 = vtanh.pop %v2491
      %v2746 = vtanh.pop %v2571
      %v2747 = vtanh.pop %v2651
      %v2748 = vtanh.pop %v2731
      %2749 = vst [vmem:[%s221] sm:$0xff] %v2733
      %2750 = vst [vmem:[%s221 + $0x8] sm:$0xff] %v2734
      %2751 = vst [vmem:[%s221 + $0x10] sm:$0xff] %v2735
      %2752 = vst [vmem:[%s221 + $0x18] sm:$0xff] %v2736
      %2753 = vst [vmem:[%s221 + $0x20] sm:$0xff] %v2737
      %2754 = vst [vmem:[%s221 + $0x28] sm:$0xff] %v2738
      %2755 = vst [vmem:[%s221 + $0x30] sm:$0xff] %v2739
      %2756 = vst [vmem:[%s221 + $0x38] sm:$0xff] %v2740
      %2757 = vst [vmem:[%s221 + $0x40] sm:$0xff] %v2741
      %2758 = vst [vmem:[%s221 + $0x48] sm:$0xff] %v2742
      %2759 = vst [vmem:[%s221 + $0x50] sm:$0xff] %v2743
      %2760 = vst [vmem:[%s221 + $0x58] sm:$0xff] %v2744
      %2761 = vst [vmem:[%s221 + $0x60] sm:$0xff] %v2745
      %2762 = vst [vmem:[%s221 + $0x68] sm:$0xff] %v2746
      %2763 = vst [vmem:[%s221 + $0x70] sm:$0xff] %v2747
      %2764 = vst [vmem:[%s221 + $0x78] sm:$0xff] %v2748
      %p2765 = scmp.lt.s32.totalorder %s16, 1
      %s2766 = scalar_select %p2765, %s16, 1
      %s2767 = smul.addr %s2766, 16
      %s2768 = smul.addr %s2767, 8
      %s2769 = scalar_lea.vmem %s5, %s2768
      // Predicated region
      $region41: #{edge_nn_forward.1} parent=39 // pred_check
        %p2770 = pneg %p144
      $region42: #{edge_nn_forward.1} parent=39 // pred_check_branch
        %2772 = sbr.rel (%p2770) target = $region44
      $region43: #{edge_nn_forward.1} parent=39 // pred_region
        _
      $region44: #{edge_nn_forward.1} parent=39 // pred_fallthru
        _
    $region40: #{edge_nn_forward.1} parent=5 // pred_fallthru
      _
    %p2773 = scmp.le.s32.totalorder 2, %s11
    // Predicated region
    $region45: #{edge_nn_forward.1} parent=5 // pred_check
      %p2774 = pneg %p2773
    $region46: #{edge_nn_forward.1} parent=5 // pred_check_branch
      %2776 = sbr.rel (%p2774) target = $region48
    $region47: #{edge_nn_forward.1} parent=5 // pred_region
      %s2777 = ssub.s32 %s11, 2
      // Predicated region
      $region49: #{edge_nn_forward.1} parent=47 // pred_check
        %p2778 = pneg %p150
      $region50: #{edge_nn_forward.1} parent=47 // pred_check_branch
        %2780 = sbr.rel (%p2778) target = $region52
      $region51: #{edge_nn_forward.1} parent=47 // pred_region
        %p2781 = scmp.lt.s32.totalorder %s17, 1
        %s2782 = scalar_select %p2781, %s17, 1
        %s2783 = smul.addr %s2782, 16
        %s2784 = smul.addr %s2783, 8
        %s2785 = scalar_lea.vmem %s5, %s2784
      $region52: #{edge_nn_forward.1} parent=47 // pred_fallthru
        _
    $region48: #{edge_nn_forward.1} parent=5 // pred_fallthru
      _
  $region6: #{edge_nn_forward.1} parent=0 // loop_footer
    %s15 = sadd.s32 1, %s11
  $region7: #{edge_nn_forward.1} parent=0 // loop_footer_branch
    %10 = sbr.rel target = $region3
  $region8: #{edge_nn_forward.1} parent=0 // loop_exit
    _

</llo_original>
